<compile_context>
chip_gen: v6e
topology: v6e:2x2x1
jax: 0.10.0
libtpu: 0.0.40
codegen_flags: <defaults>
</compile_context>

<pallas_src>
import math
import functools

import jax
import jax.numpy as jnp
from jax.experimental import pallas as pl
from jax.experimental.pallas import tpu as pltpu

BN_EPS = 1e-5
_BN_SCALE = 1.0 / math.sqrt(1.0 + BN_EPS)   # inference BN with default stats
_VMEM_LIMIT = 32 * 1024 * 1024              # safe on v5e/v6e/v7x


# ----------------------------------------------------------------------------
# Kernel 1: fused 1x1 conv (MXU matmul) + optional ReLU6 + optional residual.
# ----------------------------------------------------------------------------
def _pw_kernel(x_ref, w_ref, o_ref, *, relu6):
    acc = jnp.dot(x_ref[...], w_ref[...], preferred_element_type=jnp.float32)
    if relu6:
        acc = jnp.clip(acc, 0.0, 6.0)
    o_ref[...] = acc.astype(o_ref.dtype)


def _pw_res_kernel(x_ref, w_ref, r_ref, o_ref):
    acc = jnp.dot(x_ref[...], w_ref[...], preferred_element_type=jnp.float32)
    acc = acc + r_ref[...].astype(jnp.float32)      # fused residual epilogue
    o_ref[...] = acc.astype(o_ref.dtype)


def _choose_m_tile(m):
    """Largest power-of-two row tile that divides M and yields >=2 grid steps
    (pipelining + megacore sharding); fall back to a single full block."""
    for tm in (512, 256, 128, 64, 32, 16, 8):
        if m >= 2 * tm and m % tm == 0:
            return tm
    return m


def pointwise_conv(x, w, *, relu6, residual=None):
    """x:(M,K) bf16, w:(K,N) bf16 (BN scale pre-folded), residual:(M,N)|None."""
    M, K = x.shape
    N = w.shape[1]
    tm = _choose_m_tile(M)
    grid = (M // tm,)
    has_res = residual is not None

    in_specs = [
        pl.BlockSpec((tm, K), lambda i: (i, 0)),      # activation: tiled over M
        pl.BlockSpec((K, N), lambda i: (0, 0)),       # weight: resident
    ]
    args = [x, w]
    if has_res:
        in_specs.append(pl.BlockSpec((tm, N), lambda i: (i, 0)))
        args.append(residual)
        kernel = _pw_res_kernel
    else:
        kernel = functools.partial(_pw_kernel, relu6=relu6)

    bytes_accessed = (x.size * x.dtype.itemsize + w.size * w.dtype.itemsize
                      + M * N * 2 + (residual.size * 2 if has_res else 0))
    return pl.pallas_call(
        kernel,
        out_shape=jax.ShapeDtypeStruct((M, N), jnp.bfloat16),
        grid=grid,
        in_specs=in_specs,
        out_specs=pl.BlockSpec((tm, N), lambda i: (i, 0)),
        compiler_params=pltpu.CompilerParams(
            dimension_semantics=("parallel",),
            vmem_limit_bytes=_VMEM_LIMIT),
        cost_estimate=pl.CostEstimate(
            flops=2 * M * K * N,
            transcendentals=0,
            bytes_accessed=int(bytes_accessed)),
    )(*args)


# ----------------------------------------------------------------------------
# Kernel 2: fused 3x3 depthwise conv + folded BN + ReLU6, taps built in-kernel.
# ----------------------------------------------------------------------------
def _dw_kernel(x_ref, w_ref, o_ref, *, stride, phase_rows, out_h, out_w):
    c = o_ref.shape[-1]
    acc = jnp.zeros((1, out_h, out_w, c), jnp.float32)
    for di in range(3):
        for dj in range(3):
            if stride == 1:
                r0, c0 = di, dj
            else:
                p = (di % 2) * 2 + (dj % 2)           # 2x2 row/col phase
                r0, c0 = p * phase_rows + di // 2, dj // 2
            tap = x_ref[0:1, r0:r0 + out_h, c0:c0 + out_w, :]
            acc = acc + tap.astype(jnp.float32) * w_ref[di * 3 + dj]
    o_ref[...] = jnp.clip(acc, 0.0, 6.0).astype(o_ref.dtype)


def depthwise_conv3x3(x, w9, stride):
    """x:(B,H,W,C) bf16; w9:(9,C) f32 (BN folded). Returns (B,Ho,Wo,C) bf16."""
    B, H, W, C = x.shape
    out_h = (H + 2 - 3) // stride + 1
    out_w = (W + 2 - 3) // stride + 1
    xp = jnp.pad(x, ((0, 0), (1, 1), (1, 1), (0, 0)))
    if stride == 1:
        phases = xp                                   # (B, H+2, W+2, C)
        phase_rows = H + 2
    else:
        # Split into 2x2 row/col phases so every in-kernel tap is a contiguous
        # slice (no strided VMEM access); ~1x extra traffic vs 9x for im2col.
        phase_rows, pw_cols = out_h + 1, out_w + 1
        plist = []
        for pr in range(2):
            for pc in range(2):
                ph = xp[:, pr::2, pc::2, :][:, :phase_rows, :pw_cols, :]
                ph = jnp.pad(ph, ((0, 0),
                                  (0, phase_rows - ph.shape[1]),
                                  (0, pw_cols - ph.shape[2]),
                                  (0, 0)))
                plist.append(ph)
        phases = jnp.concatenate(plist, axis=1)       # (B, 4*phase_rows, Wo+1, C)

    _, PR, PC, _ = phases.shape
    kernel = functools.partial(_dw_kernel, stride=stride,
                               phase_rows=phase_rows, out_h=out_h, out_w=out_w)
    return pl.pallas_call(
        kernel,
        out_shape=jax.ShapeDtypeStruct((B, out_h, out_w, C), jnp.bfloat16),
        grid=(B,),
        in_specs=[
            pl.BlockSpec((1, PR, PC, C), lambda b: (b, 0, 0, 0)),
            pl.BlockSpec((9, 1, 1, C), lambda b: (0, 0, 0, 0)),
        ],
        out_specs=pl.BlockSpec((1, out_h, out_w, C), lambda b: (b, 0, 0, 0)),
        compiler_params=pltpu.CompilerParams(
            dimension_semantics=("parallel",),
            vmem_limit_bytes=_VMEM_LIMIT),
        cost_estimate=pl.CostEstimate(
            flops=2 * 9 * B * out_h * out_w * C,
            transcendentals=0,
            bytes_accessed=int(phases.size * 2 + B * out_h * out_w * C * 2
                               + w9.size * 4)),
    )(phases, w9.reshape(9, 1, 1, C))


# ----------------------------------------------------------------------------
# Parameter construction (deterministic; BN scale folded into weights).
# ----------------------------------------------------------------------------
def make_bottleneck_params(key, input_channel, config):
    """Params for bottleneck(inputChannel, config=(t, c, n, s))."""
    t, c, n, s = config
    blocks = []
    cnt = [0]

    def conv_w(shape, fan):
        cnt[0] += 1
        k = jax.random.fold_in(key, cnt[0])
        return jax.random.normal(k, shape, jnp.float32) * math.sqrt(2.0 / fan)

    for i in range(n):
        stride = s if i == 0 else 1
        inp, oup = input_channel, c
        hidden = int(round(inp * t))
        blk = {'stride': stride, 'identity': (stride == 1 and inp == oup)}
        if t != 1:
            w = conv_w((inp, hidden), inp) * _BN_SCALE          # 1x1 expand
            blk['pw1_w'] = w.astype(jnp.bfloat16)
        else:
            blk['pw1_w'] = None
        blk['dw_w'] = conv_w((9, hidden), 9) * _BN_SCALE        # 3x3 depthwise (f32)
        w = conv_w((hidden, oup), hidden) * _BN_SCALE           # 1x1 project
        blk['pw2_w'] = w.astype(jnp.bfloat16)
        blocks.append(blk)
        input_channel = oup
    return blocks


# ----------------------------------------------------------------------------
# Forward pass (bottleneck = sequence of InvertedResidual blocks).
# ----------------------------------------------------------------------------
def bottleneck_forward(params, x_nchw):
    x = jnp.transpose(x_nchw, (0, 2, 3, 1)).astype(jnp.bfloat16)   # NCHW -> NHWC
    for p in params:
        B, H, W, C = x.shape
        blk_in = x
        if p['pw1_w'] is not None:
            h = pointwise_conv(x.reshape(B * H * W, C), p['pw1_w'], relu6=True)
            x = h.reshape(B, H, W, -1)
        x = depthwise_conv3x3(x, p['dw_w'], p['stride'])
        B2, Ho, Wo, Ch = x.shape
        res = None
        if p['identity']:
            assert (Ho, Wo) == (H, W), "identity path requires unchanged spatial dims"
            res = blk_in.reshape(B * H * W, C)
        h = pointwise_conv(x.reshape(B2 * Ho * Wo, Ch), p['pw2_w'],
                           relu6=False, residual=res)
        x = h.reshape(B2, Ho, Wo, -1)
    return jnp.transpose(x, (0, 3, 1, 2)).astype(jnp.float32)      # back to NCHW


# ----------------------------------------------------------------------------
# Pure-JAX f32 reference (same folded weights) for a sanity check.
# ----------------------------------------------------------------------------
def reference_forward(params, x_nchw):
    x = jnp.transpose(x_nchw, (0, 2, 3, 1)).astype(jnp.float32)
    for p in params:
        blk_in = x
        if p['pw1_w'] is not None:
            x = jnp.clip(x @ p['pw1_w'].astype(jnp.float32), 0.0, 6.0)
        s = p['stride']
        B, H, W, C = x.shape
        Ho = (H + 2 - 3) // s + 1
        Wo = (W + 2 - 3) // s + 1
        xp = jnp.pad(x, ((0, 0), (1, 1), (1, 1), (0, 0)))
        acc = jnp.zeros((B, Ho, Wo, C), jnp.float32)
        for di in range(3):
            for dj in range(3):
                tap = xp[:, di:di + (Ho - 1) * s + 1:s,
                         dj:dj + (Wo - 1) * s + 1:s, :]
                acc = acc + tap * p['dw_w'][di * 3 + dj]
        x = jnp.clip(acc, 0.0, 6.0)
        x = x @ p['pw2_w'].astype(jnp.float32)
        if p['identity']:
            x = x + blk_in
    return jnp.transpose(x, (0, 3, 1, 2))


# ----------------------------------------------------------------------------
if __name__ == "__main__":
    key = jax.random.PRNGKey(0)
    pkey, xkey = jax.random.split(key)

    # bottleneck(inputChannel=16, config=[6, 24, 2, 2]):
    #   block 0: 16 -> (expand 96) -> dw stride 2 -> 24
    #   block 1: 24 -> (expand 144) -> dw stride 1 -> 24 (identity residual)
    input_channel = 16
    config = (6, 24, 2, 2)
    params = make_bottleneck_params(pkey, input_channel, config)

    x = jax.random.normal(xkey, (2, input_channel, 16, 16), jnp.float32)

    fwd = jax.jit(lambda inp: bottleneck_forward(params, inp))
    out = jax.block_until_ready(fwd(x))

    assert out.shape == (2, 24, 8, 8), out.shape
    assert out.dtype == jnp.float32
    assert bool(jnp.all(jnp.isfinite(out)))

    ref = reference_forward(params, x)
    rel_err = float(jnp.linalg.norm(out - ref) / (jnp.linalg.norm(ref) + 1e-6))
    assert rel_err < 5e-2, f"relative error too large: {rel_err}"

    print("KERNEL_OK")
</pallas_src>

<mosaic_0001>
module attributes {stable_mosaic.version = 11 : i64} {
  func.func @_pw_kernel(%arg0: i32, %arg1: memref<256x16xbf16, #tpu.memory_space<vmem>>, %arg2: memref<16x96xbf16, #tpu.memory_space<vmem>>, %arg3: memref<256x96xbf16, #tpu.memory_space<vmem>>) attributes {dimension_semantics = [#tpu.dimension_semantics<parallel>], iteration_bounds = array<i64: 2>, scalar_prefetch = 0 : i64, scratch_operands = 0 : i64, tpu.core_type = #tpu.core_type<tc>, window_params = [{transform_indices = @transform_0, window_bounds = array<i64: 256, 16>}, {pipeline_mode = #tpu.pipeline_mode<synchronous>, transform_indices = @transform_1, window_bounds = array<i64: 16, 96>}, {transform_indices = @transform_2, window_bounds = array<i64: 256, 96>}]} {
    %c0 = arith.constant 0 : index
    %c0_0 = arith.constant 0 : index
    %0 = vector.load %arg1[%c0, %c0_0] : memref<256x16xbf16, #tpu.memory_space<vmem>>, vector<256x16xbf16>
    %c0_1 = arith.constant 0 : index
    %c0_2 = arith.constant 0 : index
    %1 = vector.load %arg2[%c0_1, %c0_2] : memref<16x96xbf16, #tpu.memory_space<vmem>>, vector<16x96xbf16>
    %cst = arith.constant dense<0.000000e+00> : vector<256x96xf32>
    %2 = tpu.matmul %0, %1, %cst {dimension_numbers = #tpu.dot_dimension_numbers<[1], [0], [0], [1], [0, 0, 1, 1], [], []>} : vector<256x16xbf16>, vector<16x96xbf16>, vector<256x96xf32> -> vector<256x96xf32>
    %cst_3 = arith.constant 0.000000e+00 : f32
    %cst_4 = arith.constant 6.000000e+00 : f32
    %3 = vector.broadcast %cst_3 : f32 to vector<256x96xf32>
    %4 = arith.maximumf %3, %2 : vector<256x96xf32>
    %5 = vector.broadcast %cst_4 : f32 to vector<256x96xf32>
    %6 = arith.minimumf %5, %4 : vector<256x96xf32>
    %7 = arith.truncf %6 : vector<256x96xf32> to vector<256x96xbf16>
    %c0_5 = arith.constant 0 : index
    %c0_6 = arith.constant 0 : index
    %8 = vector.load %arg3[%c0_5, %c0_6] : memref<256x96xbf16, #tpu.memory_space<vmem>>, vector<256x96xbf16>
    tpu.vector_store %arg3[%c0_5, %c0_6], %7 {strides = array<i32>} : memref<256x96xbf16, #tpu.memory_space<vmem>>, vector<256x96xbf16>,
    return
  }
  func.func @transform_0(%arg0: i32) -> (i32, i32) {
    %c0_i32 = arith.constant 0 : i32
    %c0_i32_0 = arith.constant 0 : i32
    return %arg0, %c0_i32 : i32, i32
  }
  func.func @transform_1(%arg0: i32) -> (i32, i32) {
    %c0_i32 = arith.constant 0 : i32
    %c0_i32_0 = arith.constant 0 : i32
    %c0_i32_1 = arith.constant 0 : i32
    return %c0_i32, %c0_i32_0 : i32, i32
  }
  func.func @transform_2(%arg0: i32) -> (i32, i32) {
    %c0_i32 = arith.constant 0 : i32
    %c0_i32_0 = arith.constant 0 : i32
    return %arg0, %c0_i32 : i32, i32
  }
}

module attributes {stable_mosaic.version = 11 : i64} {
  func.func @_dw_kernel(%arg0: i32, %arg1: memref<1x36x9x96xbf16, #tpu.memory_space<vmem>>, %arg2: memref<9x1x1x96xf32, #tpu.memory_space<vmem>>, %arg3: memref<1x8x8x96xbf16, #tpu.memory_space<vmem>>) attributes {dimension_semantics = [#tpu.dimension_semantics<parallel>], iteration_bounds = array<i64: 2>, scalar_prefetch = 0 : i64, scratch_operands = 0 : i64, tpu.core_type = #tpu.core_type<tc>, window_params = [{transform_indices = @transform_0, window_bounds = array<i64: 1, 36, 9, 96>}, {pipeline_mode = #tpu.pipeline_mode<synchronous>, transform_indices = @transform_1, window_bounds = array<i64: 9, 1, 1, 96>}, {transform_indices = @transform_2, window_bounds = array<i64: 1, 8, 8, 96>}]} {
    %cst = arith.constant 0.000000e+00 : f32
    %0 = vector.broadcast %cst : f32 to vector<1x8x8x96xf32>
    %c0 = arith.constant 0 : index
    %c0_0 = arith.constant 0 : index
    %c0_1 = arith.constant 0 : index
    %c0_2 = arith.constant 0 : index
    %1 = vector.load %arg1[%c0, %c0_0, %c0_1, %c0_2] : memref<1x36x9x96xbf16, #tpu.memory_space<vmem>>, vector<1x8x8x96xbf16>
    %2 = arith.extf %1 : vector<1x8x8x96xbf16> to vector<1x8x8x96xf32>
    %c0_3 = arith.constant 0 : index
    %c0_4 = arith.constant 0 : index
    %c0_5 = arith.constant 0 : index
    %c0_6 = arith.constant 0 : index
    %3 = vector.load %arg2[%c0_3, %c0_4, %c0_5, %c0_6] : memref<9x1x1x96xf32, #tpu.memory_space<vmem>>, vector<1x1x1x96xf32>
    %4 = vector.shape_cast %3 : vector<1x1x1x96xf32> to vector<1x1x96xf32>
    %5 = vector.shape_cast %4 : vector<1x1x96xf32> to vector<1x1x1x96xf32>
    %6 = vector.broadcast %5 : vector<1x1x1x96xf32> to vector<1x8x8x96xf32>
    %7 = arith.mulf %2, %6 : vector<1x8x8x96xf32>
    %8 = arith.addf %0, %7 : vector<1x8x8x96xf32>
    %c0_7 = arith.constant 0 : index
    %c9 = arith.constant 9 : index
    %c0_8 = arith.constant 0 : index
    %c0_9 = arith.constant 0 : index
    %9 = vector.load %arg1[%c0_7, %c9, %c0_8, %c0_9] : memref<1x36x9x96xbf16, #tpu.memory_space<vmem>>, vector<1x8x8x96xbf16>
    %10 = arith.extf %9 : vector<1x8x8x96xbf16> to vector<1x8x8x96xf32>
    %c1 = arith.constant 1 : index
    %c0_10 = arith.constant 0 : index
    %c0_11 = arith.constant 0 : index
    %c0_12 = arith.constant 0 : index
    %11 = vector.load %arg2[%c1, %c0_10, %c0_11, %c0_12] : memref<9x1x1x96xf32, #tpu.memory_space<vmem>>, vector<1x1x1x96xf32>
    %12 = vector.shape_cast %11 : vector<1x1x1x96xf32> to vector<1x1x96xf32>
    %13 = vector.shape_cast %12 : vector<1x1x96xf32> to vector<1x1x1x96xf32>
    %14 = vector.broadcast %13 : vector<1x1x1x96xf32> to vector<1x8x8x96xf32>
    %15 = arith.mulf %10, %14 : vector<1x8x8x96xf32>
    %16 = arith.addf %8, %15 : vector<1x8x8x96xf32>
    %c0_13 = arith.constant 0 : index
    %c0_14 = arith.constant 0 : index
    %c1_15 = arith.constant 1 : index
    %c0_16 = arith.constant 0 : index
    %17 = vector.load %arg1[%c0_13, %c0_14, %c1_15, %c0_16] : memref<1x36x9x96xbf16, #tpu.memory_space<vmem>>, vector<1x8x8x96xbf16>
    %18 = arith.extf %17 : vector<1x8x8x96xbf16> to vector<1x8x8x96xf32>
    %c2 = arith.constant 2 : index
    %c0_17 = arith.constant 0 : index
    %c0_18 = arith.constant 0 : index
    %c0_19 = arith.constant 0 : index
    %19 = vector.load %arg2[%c2, %c0_17, %c0_18, %c0_19] : memref<9x1x1x96xf32, #tpu.memory_space<vmem>>, vector<1x1x1x96xf32>
    %20 = vector.shape_cast %19 : vector<1x1x1x96xf32> to vector<1x1x96xf32>
    %21 = vector.shape_cast %20 : vector<1x1x96xf32> to vector<1x1x1x96xf32>
    %22 = vector.broadcast %21 : vector<1x1x1x96xf32> to vector<1x8x8x96xf32>
    %23 = arith.mulf %18, %22 : vector<1x8x8x96xf32>
    %24 = arith.addf %16, %23 : vector<1x8x8x96xf32>
    %c0_20 = arith.constant 0 : index
    %c18 = arith.constant 18 : index
    %c0_21 = arith.constant 0 : index
    %c0_22 = arith.constant 0 : index
    %25 = vector.load %arg1[%c0_20, %c18, %c0_21, %c0_22] : memref<1x36x9x96xbf16, #tpu.memory_space<vmem>>, vector<1x8x8x96xbf16>
    %26 = arith.extf %25 : vector<1x8x8x96xbf16> to vector<1x8x8x96xf32>
    %c3 = arith.constant 3 : index
    %c0_23 = arith.constant 0 : index
    %c0_24 = arith.constant 0 : index
    %c0_25 = arith.constant 0 : index
    %27 = vector.load %arg2[%c3, %c0_23, %c0_24, %c0_25] : memref<9x1x1x96xf32, #tpu.memory_space<vmem>>, vector<1x1x1x96xf32>
    %28 = vector.shape_cast %27 : vector<1x1x1x96xf32> to vector<1x1x96xf32>
    %29 = vector.shape_cast %28 : vector<1x1x96xf32> to vector<1x1x1x96xf32>
    %30 = vector.broadcast %29 : vector<1x1x1x96xf32> to vector<1x8x8x96xf32>
    %31 = arith.mulf %26, %30 : vector<1x8x8x96xf32>
    %32 = arith.addf %24, %31 : vector<1x8x8x96xf32>
    %c0_26 = arith.constant 0 : index
    %c27 = arith.constant 27 : index
    %c0_27 = arith.constant 0 : index
    %c0_28 = arith.constant 0 : index
    %33 = vector.load %arg1[%c0_26, %c27, %c0_27, %c0_28] : memref<1x36x9x96xbf16, #tpu.memory_space<vmem>>, vector<1x8x8x96xbf16>
    %34 = arith.extf %33 : vector<1x8x8x96xbf16> to vector<1x8x8x96xf32>
    %c4 = arith.constant 4 : index
    %c0_29 = arith.constant 0 : index
    %c0_30 = arith.constant 0 : index
    %c0_31 = arith.constant 0 : index
    %35 = vector.load %arg2[%c4, %c0_29, %c0_30, %c0_31] : memref<9x1x1x96xf32, #tpu.memory_space<vmem>>, vector<1x1x1x96xf32>
    %36 = vector.shape_cast %35 : vector<1x1x1x96xf32> to vector<1x1x96xf32>
    %37 = vector.shape_cast %36 : vector<1x1x96xf32> to vector<1x1x1x96xf32>
    %38 = vector.broadcast %37 : vector<1x1x1x96xf32> to vector<1x8x8x96xf32>
    %39 = arith.mulf %34, %38 : vector<1x8x8x96xf32>
    %40 = arith.addf %32, %39 : vector<1x8x8x96xf32>
    %c0_32 = arith.constant 0 : index
    %c18_33 = arith.constant 18 : index
    %c1_34 = arith.constant 1 : index
    %c0_35 = arith.constant 0 : index
    %41 = vector.load %arg1[%c0_32, %c18_33, %c1_34, %c0_35] : memref<1x36x9x96xbf16, #tpu.memory_space<vmem>>, vector<1x8x8x96xbf16>
    %42 = arith.extf %41 : vector<1x8x8x96xbf16> to vector<1x8x8x96xf32>
    %c5 = arith.constant 5 : index
    %c0_36 = arith.constant 0 : index
    %c0_37 = arith.constant 0 : index
    %c0_38 = arith.constant 0 : index
    %43 = vector.load %arg2[%c5, %c0_36, %c0_37, %c0_38] : memref<9x1x1x96xf32, #tpu.memory_space<vmem>>, vector<1x1x1x96xf32>
    %44 = vector.shape_cast %43 : vector<1x1x1x96xf32> to vector<1x1x96xf32>
    %45 = vector.shape_cast %44 : vector<1x1x96xf32> to vector<1x1x1x96xf32>
    %46 = vector.broadcast %45 : vector<1x1x1x96xf32> to vector<1x8x8x96xf32>
    %47 = arith.mulf %42, %46 : vector<1x8x8x96xf32>
    %48 = arith.addf %40, %47 : vector<1x8x8x96xf32>
    %c0_39 = arith.constant 0 : index
    %c1_40 = arith.constant 1 : index
    %c0_41 = arith.constant 0 : index
    %c0_42 = arith.constant 0 : index
    %49 = vector.load %arg1[%c0_39, %c1_40, %c0_41, %c0_42] : memref<1x36x9x96xbf16, #tpu.memory_space<vmem>>, vector<1x8x8x96xbf16>
    %50 = arith.extf %49 : vector<1x8x8x96xbf16> to vector<1x8x8x96xf32>
    %c6 = arith.constant 6 : index
    %c0_43 = arith.constant 0 : index
    %c0_44 = arith.constant 0 : index
    %c0_45 = arith.constant 0 : index
    %51 = vector.load %arg2[%c6, %c0_43, %c0_44, %c0_45] : memref<9x1x1x96xf32, #tpu.memory_space<vmem>>, vector<1x1x1x96xf32>
    %52 = vector.shape_cast %51 : vector<1x1x1x96xf32> to vector<1x1x96xf32>
    %53 = vector.shape_cast %52 : vector<1x1x96xf32> to vector<1x1x1x96xf32>
    %54 = vector.broadcast %53 : vector<1x1x1x96xf32> to vector<1x8x8x96xf32>
    %55 = arith.mulf %50, %54 : vector<1x8x8x96xf32>
    %56 = arith.addf %48, %55 : vector<1x8x8x96xf32>
    %c0_46 = arith.constant 0 : index
    %c10 = arith.constant 10 : index
    %c0_47 = arith.constant 0 : index
    %c0_48 = arith.constant 0 : index
    %57 = vector.load %arg1[%c0_46, %c10, %c0_47, %c0_48] : memref<1x36x9x96xbf16, #tpu.memory_space<vmem>>, vector<1x8x8x96xbf16>
    %58 = arith.extf %57 : vector<1x8x8x96xbf16> to vector<1x8x8x96xf32>
    %c7 = arith.constant 7 : index
    %c0_49 = arith.constant 0 : index
    %c0_50 = arith.constant 0 : index
    %c0_51 = arith.constant 0 : index
    %59 = vector.load %arg2[%c7, %c0_49, %c0_50, %c0_51] : memref<9x1x1x96xf32, #tpu.memory_space<vmem>>, vector<1x1x1x96xf32>
    %60 = vector.shape_cast %59 : vector<1x1x1x96xf32> to vector<1x1x96xf32>
    %61 = vector.shape_cast %60 : vector<1x1x96xf32> to vector<1x1x1x96xf32>
    %62 = vector.broadcast %61 : vector<1x1x1x96xf32> to vector<1x8x8x96xf32>
    %63 = arith.mulf %58, %62 : vector<1x8x8x96xf32>
    %64 = arith.addf %56, %63 : vector<1x8x8x96xf32>
    %c0_52 = arith.constant 0 : index
    %c1_53 = arith.constant 1 : index
    %c1_54 = arith.constant 1 : index
    %c0_55 = arith.constant 0 : index
    %65 = vector.load %arg1[%c0_52, %c1_53, %c1_54, %c0_55] : memref<1x36x9x96xbf16, #tpu.memory_space<vmem>>, vector<1x8x8x96xbf16>
    %66 = arith.extf %65 : vector<1x8x8x96xbf16> to vector<1x8x8x96xf32>
    %c8 = arith.constant 8 : index
    %c0_56 = arith.constant 0 : index
    %c0_57 = arith.constant 0 : index
    %c0_58 = arith.constant 0 : index
    %67 = vector.load %arg2[%c8, %c0_56, %c0_57, %c0_58] : memref<9x1x1x96xf32, #tpu.memory_space<vmem>>, vector<1x1x1x96xf32>
    %68 = vector.shape_cast %67 : vector<1x1x1x96xf32> to vector<1x1x96xf32>
    %69 = vector.shape_cast %68 : vector<1x1x96xf32> to vector<1x1x1x96xf32>
    %70 = vector.broadcast %69 : vector<1x1x1x96xf32> to vector<1x8x8x96xf32>
    %71 = arith.mulf %66, %70 : vector<1x8x8x96xf32>
    %72 = arith.addf %64, %71 : vector<1x8x8x96xf32>
    %cst_59 = arith.constant 0.000000e+00 : f32
    %cst_60 = arith.constant 6.000000e+00 : f32
    %73 = vector.broadcast %cst_59 : f32 to vector<1x8x8x96xf32>
    %74 = arith.maximumf %73, %72 : vector<1x8x8x96xf32>
    %75 = vector.broadcast %cst_60 : f32 to vector<1x8x8x96xf32>
    %76 = arith.minimumf %75, %74 : vector<1x8x8x96xf32>
    %77 = arith.truncf %76 : vector<1x8x8x96xf32> to vector<1x8x8x96xbf16>
    %c0_61 = arith.constant 0 : index
    %c0_62 = arith.constant 0 : index
    %c0_63 = arith.constant 0 : index
    %c0_64 = arith.constant 0 : index
    %78 = vector.load %arg3[%c0_61, %c0_62, %c0_63, %c0_64] : memref<1x8x8x96xbf16, #tpu.memory_space<vmem>>, vector<1x8x8x96xbf16>
    tpu.vector_store %arg3[%c0_61, %c0_62, %c0_63, %c0_64], %77 {strides = array<i32>} : memref<1x8x8x96xbf16, #tpu.memory_space<vmem>>, vector<1x8x8x96xbf16>,
    return
  }
  func.func @transform_0(%arg0: i32) -> (i32, i32, i32, i32) {
    %c0_i32 = arith.constant 0 : i32
    %c0_i32_0 = arith.constant 0 : i32
    %c0_i32_1 = arith.constant 0 : i32
    %c0_i32_2 = arith.constant 0 : i32
    return %arg0, %c0_i32, %c0_i32_0, %c0_i32_1 : i32, i32, i32, i32
  }
  func.func @transform_1(%arg0: i32) -> (i32, i32, i32, i32) {
    %c0_i32 = arith.constant 0 : i32
    %c0_i32_0 = arith.constant 0 : i32
    %c0_i32_1 = arith.constant 0 : i32
    %c0_i32_2 = arith.constant 0 : i32
    %c0_i32_3 = arith.constant 0 : i32
    return %c0_i32, %c0_i32_0, %c0_i32_1, %c0_i32_2 : i32, i32, i32, i32
  }
  func.func @transform_2(%arg0: i32) -> (i32, i32, i32, i32) {
    %c0_i32 = arith.constant 0 : i32
    %c0_i32_0 = arith.constant 0 : i32
    %c0_i32_1 = arith.constant 0 : i32
    %c0_i32_2 = arith.constant 0 : i32
    return %arg0, %c0_i32, %c0_i32_0, %c0_i32_1 : i32, i32, i32, i32
  }
}

module attributes {stable_mosaic.version = 11 : i64} {
  func.func @_pw_kernel(%arg0: i32, %arg1: memref<64x96xbf16, #tpu.memory_space<vmem>>, %arg2: memref<96x24xbf16, #tpu.memory_space<vmem>>, %arg3: memref<64x24xbf16, #tpu.memory_space<vmem>>) attributes {dimension_semantics = [#tpu.dimension_semantics<parallel>], iteration_bounds = array<i64: 2>, scalar_prefetch = 0 : i64, scratch_operands = 0 : i64, tpu.core_type = #tpu.core_type<tc>, window_params = [{transform_indices = @transform_0, window_bounds = array<i64: 64, 96>}, {pipeline_mode = #tpu.pipeline_mode<synchronous>, transform_indices = @transform_1, window_bounds = array<i64: 96, 24>}, {transform_indices = @transform_2, window_bounds = array<i64: 64, 24>}]} {
    %c0 = arith.constant 0 : index
    %c0_0 = arith.constant 0 : index
    %0 = vector.load %arg1[%c0, %c0_0] : memref<64x96xbf16, #tpu.memory_space<vmem>>, vector<64x96xbf16>
    %c0_1 = arith.constant 0 : index
    %c0_2 = arith.constant 0 : index
    %1 = vector.load %arg2[%c0_1, %c0_2] : memref<96x24xbf16, #tpu.memory_space<vmem>>, vector<96x24xbf16>
    %cst = arith.constant dense<0.000000e+00> : vector<64x24xf32>
    %2 = tpu.matmul %0, %1, %cst {dimension_numbers = #tpu.dot_dimension_numbers<[1], [0], [0], [1], [0, 0, 1, 1], [], []>} : vector<64x96xbf16>, vector<96x24xbf16>, vector<64x24xf32> -> vector<64x24xf32>
    %3 = arith.truncf %2 : vector<64x24xf32> to vector<64x24xbf16>
    %c0_3 = arith.constant 0 : index
    %c0_4 = arith.constant 0 : index
    %4 = vector.load %arg3[%c0_3, %c0_4] : memref<64x24xbf16, #tpu.memory_space<vmem>>, vector<64x24xbf16>
    tpu.vector_store %arg3[%c0_3, %c0_4], %3 {strides = array<i32>} : memref<64x24xbf16, #tpu.memory_space<vmem>>, vector<64x24xbf16>,
    return
  }
  func.func @transform_0(%arg0: i32) -> (i32, i32) {
    %c0_i32 = arith.constant 0 : i32
    %c0_i32_0 = arith.constant 0 : i32
    return %arg0, %c0_i32 : i32, i32
  }
  func.func @transform_1(%arg0: i32) -> (i32, i32) {
    %c0_i32 = arith.constant 0 : i32
    %c0_i32_0 = arith.constant 0 : i32
    %c0_i32_1 = arith.constant 0 : i32
    return %c0_i32, %c0_i32_0 : i32, i32
  }
  func.func @transform_2(%arg0: i32) -> (i32, i32) {
    %c0_i32 = arith.constant 0 : i32
    %c0_i32_0 = arith.constant 0 : i32
    return %arg0, %c0_i32 : i32, i32
  }
}

module attributes {stable_mosaic.version = 11 : i64} {
  func.func @_pw_kernel(%arg0: i32, %arg1: memref<64x24xbf16, #tpu.memory_space<vmem>>, %arg2: memref<24x144xbf16, #tpu.memory_space<vmem>>, %arg3: memref<64x144xbf16, #tpu.memory_space<vmem>>) attributes {dimension_semantics = [#tpu.dimension_semantics<parallel>], iteration_bounds = array<i64: 2>, scalar_prefetch = 0 : i64, scratch_operands = 0 : i64, tpu.core_type = #tpu.core_type<tc>, window_params = [{transform_indices = @transform_0, window_bounds = array<i64: 64, 24>}, {pipeline_mode = #tpu.pipeline_mode<synchronous>, transform_indices = @transform_1, window_bounds = array<i64: 24, 144>}, {transform_indices = @transform_2, window_bounds = array<i64: 64, 144>}]} {
    %c0 = arith.constant 0 : index
    %c0_0 = arith.constant 0 : index
    %0 = vector.load %arg1[%c0, %c0_0] : memref<64x24xbf16, #tpu.memory_space<vmem>>, vector<64x24xbf16>
    %c0_1 = arith.constant 0 : index
    %c0_2 = arith.constant 0 : index
    %1 = vector.load %arg2[%c0_1, %c0_2] : memref<24x144xbf16, #tpu.memory_space<vmem>>, vector<24x144xbf16>
    %cst = arith.constant dense<0.000000e+00> : vector<64x144xf32>
    %2 = tpu.matmul %0, %1, %cst {dimension_numbers = #tpu.dot_dimension_numbers<[1], [0], [0], [1], [0, 0, 1, 1], [], []>} : vector<64x24xbf16>, vector<24x144xbf16>, vector<64x144xf32> -> vector<64x144xf32>
    %cst_3 = arith.constant 0.000000e+00 : f32
    %cst_4 = arith.constant 6.000000e+00 : f32
    %3 = vector.broadcast %cst_3 : f32 to vector<64x144xf32>
    %4 = arith.maximumf %3, %2 : vector<64x144xf32>
    %5 = vector.broadcast %cst_4 : f32 to vector<64x144xf32>
    %6 = arith.minimumf %5, %4 : vector<64x144xf32>
    %7 = arith.truncf %6 : vector<64x144xf32> to vector<64x144xbf16>
    %c0_5 = arith.constant 0 : index
    %c0_6 = arith.constant 0 : index
    %8 = vector.load %arg3[%c0_5, %c0_6] : memref<64x144xbf16, #tpu.memory_space<vmem>>, vector<64x144xbf16>
    tpu.vector_store %arg3[%c0_5, %c0_6], %7 {strides = array<i32>} : memref<64x144xbf16, #tpu.memory_space<vmem>>, vector<64x144xbf16>,
    return
  }
  func.func @transform_0(%arg0: i32) -> (i32, i32) {
    %c0_i32 = arith.constant 0 : i32
    %c0_i32_0 = arith.constant 0 : i32
    return %arg0, %c0_i32 : i32, i32
  }
  func.func @transform_1(%arg0: i32) -> (i32, i32) {
    %c0_i32 = arith.constant 0 : i32
    %c0_i32_0 = arith.constant 0 : i32
    %c0_i32_1 = arith.constant 0 : i32
    return %c0_i32, %c0_i32_0 : i32, i32
  }
  func.func @transform_2(%arg0: i32) -> (i32, i32) {
    %c0_i32 = arith.constant 0 : i32
    %c0_i32_0 = arith.constant 0 : i32
    return %arg0, %c0_i32 : i32, i32
  }
}

module attributes {stable_mosaic.version = 11 : i64} {
  func.func @_dw_kernel(%arg0: i32, %arg1: memref<1x10x10x144xbf16, #tpu.memory_space<vmem>>, %arg2: memref<9x1x1x144xf32, #tpu.memory_space<vmem>>, %arg3: memref<1x8x8x144xbf16, #tpu.memory_space<vmem>>) attributes {dimension_semantics = [#tpu.dimension_semantics<parallel>], iteration_bounds = array<i64: 2>, scalar_prefetch = 0 : i64, scratch_operands = 0 : i64, tpu.core_type = #tpu.core_type<tc>, window_params = [{transform_indices = @transform_0, window_bounds = array<i64: 1, 10, 10, 144>}, {pipeline_mode = #tpu.pipeline_mode<synchronous>, transform_indices = @transform_1, window_bounds = array<i64: 9, 1, 1, 144>}, {transform_indices = @transform_2, window_bounds = array<i64: 1, 8, 8, 144>}]} {
    %cst = arith.constant 0.000000e+00 : f32
    %0 = vector.broadcast %cst : f32 to vector<1x8x8x144xf32>
    %c0 = arith.constant 0 : index
    %c0_0 = arith.constant 0 : index
    %c0_1 = arith.constant 0 : index
    %c0_2 = arith.constant 0 : index
    %1 = vector.load %arg1[%c0, %c0_0, %c0_1, %c0_2] : memref<1x10x10x144xbf16, #tpu.memory_space<vmem>>, vector<1x8x8x144xbf16>
    %2 = arith.extf %1 : vector<1x8x8x144xbf16> to vector<1x8x8x144xf32>
    %c0_3 = arith.constant 0 : index
    %c0_4 = arith.constant 0 : index
    %c0_5 = arith.constant 0 : index
    %c0_6 = arith.constant 0 : index
    %3 = vector.load %arg2[%c0_3, %c0_4, %c0_5, %c0_6] : memref<9x1x1x144xf32, #tpu.memory_space<vmem>>, vector<1x1x1x144xf32>
    %4 = vector.shape_cast %3 : vector<1x1x1x144xf32> to vector<1x1x144xf32>
    %5 = vector.shape_cast %4 : vector<1x1x144xf32> to vector<1x1x1x144xf32>
    %6 = vector.broadcast %5 : vector<1x1x1x144xf32> to vector<1x8x8x144xf32>
    %7 = arith.mulf %2, %6 : vector<1x8x8x144xf32>
    %8 = arith.addf %0, %7 : vector<1x8x8x144xf32>
    %c0_7 = arith.constant 0 : index
    %c0_8 = arith.constant 0 : index
    %c1 = arith.constant 1 : index
    %c0_9 = arith.constant 0 : index
    %9 = vector.load %arg1[%c0_7, %c0_8, %c1, %c0_9] : memref<1x10x10x144xbf16, #tpu.memory_space<vmem>>, vector<1x8x8x144xbf16>
    %10 = arith.extf %9 : vector<1x8x8x144xbf16> to vector<1x8x8x144xf32>
    %c1_10 = arith.constant 1 : index
    %c0_11 = arith.constant 0 : index
    %c0_12 = arith.constant 0 : index
    %c0_13 = arith.constant 0 : index
    %11 = vector.load %arg2[%c1_10, %c0_11, %c0_12, %c0_13] : memref<9x1x1x144xf32, #tpu.memory_space<vmem>>, vector<1x1x1x144xf32>
    %12 = vector.shape_cast %11 : vector<1x1x1x144xf32> to vector<1x1x144xf32>
    %13 = vector.shape_cast %12 : vector<1x1x144xf32> to vector<1x1x1x144xf32>
    %14 = vector.broadcast %13 : vector<1x1x1x144xf32> to vector<1x8x8x144xf32>
    %15 = arith.mulf %10, %14 : vector<1x8x8x144xf32>
    %16 = arith.addf %8, %15 : vector<1x8x8x144xf32>
    %c0_14 = arith.constant 0 : index
    %c0_15 = arith.constant 0 : index
    %c2 = arith.constant 2 : index
    %c0_16 = arith.constant 0 : index
    %17 = vector.load %arg1[%c0_14, %c0_15, %c2, %c0_16] : memref<1x10x10x144xbf16, #tpu.memory_space<vmem>>, vector<1x8x8x144xbf16>
    %18 = arith.extf %17 : vector<1x8x8x144xbf16> to vector<1x8x8x144xf32>
    %c2_17 = arith.constant 2 : index
    %c0_18 = arith.constant 0 : index
    %c0_19 = arith.constant 0 : index
    %c0_20 = arith.constant 0 : index
    %19 = vector.load %arg2[%c2_17, %c0_18, %c0_19, %c0_20] : memref<9x1x1x144xf32, #tpu.memory_space<vmem>>, vector<1x1x1x144xf32>
    %20 = vector.shape_cast %19 : vector<1x1x1x144xf32> to vector<1x1x144xf32>
    %21 = vector.shape_cast %20 : vector<1x1x144xf32> to vector<1x1x1x144xf32>
    %22 = vector.broadcast %21 : vector<1x1x1x144xf32> to vector<1x8x8x144xf32>
    %23 = arith.mulf %18, %22 : vector<1x8x8x144xf32>
    %24 = arith.addf %16, %23 : vector<1x8x8x144xf32>
    %c0_21 = arith.constant 0 : index
    %c1_22 = arith.constant 1 : index
    %c0_23 = arith.constant 0 : index
    %c0_24 = arith.constant 0 : index
    %25 = vector.load %arg1[%c0_21, %c1_22, %c0_23, %c0_24] : memref<1x10x10x144xbf16, #tpu.memory_space<vmem>>, vector<1x8x8x144xbf16>
    %26 = arith.extf %25 : vector<1x8x8x144xbf16> to vector<1x8x8x144xf32>
    %c3 = arith.constant 3 : index
    %c0_25 = arith.constant 0 : index
    %c0_26 = arith.constant 0 : index
    %c0_27 = arith.constant 0 : index
    %27 = vector.load %arg2[%c3, %c0_25, %c0_26, %c0_27] : memref<9x1x1x144xf32, #tpu.memory_space<vmem>>, vector<1x1x1x144xf32>
    %28 = vector.shape_cast %27 : vector<1x1x1x144xf32> to vector<1x1x144xf32>
    %29 = vector.shape_cast %28 : vector<1x1x144xf32> to vector<1x1x1x144xf32>
    %30 = vector.broadcast %29 : vector<1x1x1x144xf32> to vector<1x8x8x144xf32>
    %31 = arith.mulf %26, %30 : vector<1x8x8x144xf32>
    %32 = arith.addf %24, %31 : vector<1x8x8x144xf32>
    %c0_28 = arith.constant 0 : index
    %c1_29 = arith.constant 1 : index
    %c1_30 = arith.constant 1 : index
    %c0_31 = arith.constant 0 : index
    %33 = vector.load %arg1[%c0_28, %c1_29, %c1_30, %c0_31] : memref<1x10x10x144xbf16, #tpu.memory_space<vmem>>, vector<1x8x8x144xbf16>
    %34 = arith.extf %33 : vector<1x8x8x144xbf16> to vector<1x8x8x144xf32>
    %c4 = arith.constant 4 : index
    %c0_32 = arith.constant 0 : index
    %c0_33 = arith.constant 0 : index
    %c0_34 = arith.constant 0 : index
    %35 = vector.load %arg2[%c4, %c0_32, %c0_33, %c0_34] : memref<9x1x1x144xf32, #tpu.memory_space<vmem>>, vector<1x1x1x144xf32>
    %36 = vector.shape_cast %35 : vector<1x1x1x144xf32> to vector<1x1x144xf32>
    %37 = vector.shape_cast %36 : vector<1x1x144xf32> to vector<1x1x1x144xf32>
    %38 = vector.broadcast %37 : vector<1x1x1x144xf32> to vector<1x8x8x144xf32>
    %39 = arith.mulf %34, %38 : vector<1x8x8x144xf32>
    %40 = arith.addf %32, %39 : vector<1x8x8x144xf32>
    %c0_35 = arith.constant 0 : index
    %c1_36 = arith.constant 1 : index
    %c2_37 = arith.constant 2 : index
    %c0_38 = arith.constant 0 : index
    %41 = vector.load %arg1[%c0_35, %c1_36, %c2_37, %c0_38] : memref<1x10x10x144xbf16, #tpu.memory_space<vmem>>, vector<1x8x8x144xbf16>
    %42 = arith.extf %41 : vector<1x8x8x144xbf16> to vector<1x8x8x144xf32>
    %c5 = arith.constant 5 : index
    %c0_39 = arith.constant 0 : index
    %c0_40 = arith.constant 0 : index
    %c0_41 = arith.constant 0 : index
    %43 = vector.load %arg2[%c5, %c0_39, %c0_40, %c0_41] : memref<9x1x1x144xf32, #tpu.memory_space<vmem>>, vector<1x1x1x144xf32>
    %44 = vector.shape_cast %43 : vector<1x1x1x144xf32> to vector<1x1x144xf32>
    %45 = vector.shape_cast %44 : vector<1x1x144xf32> to vector<1x1x1x144xf32>
    %46 = vector.broadcast %45 : vector<1x1x1x144xf32> to vector<1x8x8x144xf32>
    %47 = arith.mulf %42, %46 : vector<1x8x8x144xf32>
    %48 = arith.addf %40, %47 : vector<1x8x8x144xf32>
    %c0_42 = arith.constant 0 : index
    %c2_43 = arith.constant 2 : index
    %c0_44 = arith.constant 0 : index
    %c0_45 = arith.constant 0 : index
    %49 = vector.load %arg1[%c0_42, %c2_43, %c0_44, %c0_45] : memref<1x10x10x144xbf16, #tpu.memory_space<vmem>>, vector<1x8x8x144xbf16>
    %50 = arith.extf %49 : vector<1x8x8x144xbf16> to vector<1x8x8x144xf32>
    %c6 = arith.constant 6 : index
    %c0_46 = arith.constant 0 : index
    %c0_47 = arith.constant 0 : index
    %c0_48 = arith.constant 0 : index
    %51 = vector.load %arg2[%c6, %c0_46, %c0_47, %c0_48] : memref<9x1x1x144xf32, #tpu.memory_space<vmem>>, vector<1x1x1x144xf32>
    %52 = vector.shape_cast %51 : vector<1x1x1x144xf32> to vector<1x1x144xf32>
    %53 = vector.shape_cast %52 : vector<1x1x144xf32> to vector<1x1x1x144xf32>
    %54 = vector.broadcast %53 : vector<1x1x1x144xf32> to vector<1x8x8x144xf32>
    %55 = arith.mulf %50, %54 : vector<1x8x8x144xf32>
    %56 = arith.addf %48, %55 : vector<1x8x8x144xf32>
    %c0_49 = arith.constant 0 : index
    %c2_50 = arith.constant 2 : index
    %c1_51 = arith.constant 1 : index
    %c0_52 = arith.constant 0 : index
    %57 = vector.load %arg1[%c0_49, %c2_50, %c1_51, %c0_52] : memref<1x10x10x144xbf16, #tpu.memory_space<vmem>>, vector<1x8x8x144xbf16>
    %58 = arith.extf %57 : vector<1x8x8x144xbf16> to vector<1x8x8x144xf32>
    %c7 = arith.constant 7 : index
    %c0_53 = arith.constant 0 : index
    %c0_54 = arith.constant 0 : index
    %c0_55 = arith.constant 0 : index
    %59 = vector.load %arg2[%c7, %c0_53, %c0_54, %c0_55] : memref<9x1x1x144xf32, #tpu.memory_space<vmem>>, vector<1x1x1x144xf32>
    %60 = vector.shape_cast %59 : vector<1x1x1x144xf32> to vector<1x1x144xf32>
    %61 = vector.shape_cast %60 : vector<1x1x144xf32> to vector<1x1x1x144xf32>
    %62 = vector.broadcast %61 : vector<1x1x1x144xf32> to vector<1x8x8x144xf32>
    %63 = arith.mulf %58, %62 : vector<1x8x8x144xf32>
    %64 = arith.addf %56, %63 : vector<1x8x8x144xf32>
    %c0_56 = arith.constant 0 : index
    %c2_57 = arith.constant 2 : index
    %c2_58 = arith.constant 2 : index
    %c0_59 = arith.constant 0 : index
    %65 = vector.load %arg1[%c0_56, %c2_57, %c2_58, %c0_59] : memref<1x10x10x144xbf16, #tpu.memory_space<vmem>>, vector<1x8x8x144xbf16>
    %66 = arith.extf %65 : vector<1x8x8x144xbf16> to vector<1x8x8x144xf32>
    %c8 = arith.constant 8 : index
    %c0_60 = arith.constant 0 : index
    %c0_61 = arith.constant 0 : index
    %c0_62 = arith.constant 0 : index
    %67 = vector.load %arg2[%c8, %c0_60, %c0_61, %c0_62] : memref<9x1x1x144xf32, #tpu.memory_space<vmem>>, vector<1x1x1x144xf32>
    %68 = vector.shape_cast %67 : vector<1x1x1x144xf32> to vector<1x1x144xf32>
    %69 = vector.shape_cast %68 : vector<1x1x144xf32> to vector<1x1x1x144xf32>
    %70 = vector.broadcast %69 : vector<1x1x1x144xf32> to vector<1x8x8x144xf32>
    %71 = arith.mulf %66, %70 : vector<1x8x8x144xf32>
    %72 = arith.addf %64, %71 : vector<1x8x8x144xf32>
    %cst_63 = arith.constant 0.000000e+00 : f32
    %cst_64 = arith.constant 6.000000e+00 : f32
    %73 = vector.broadcast %cst_63 : f32 to vector<1x8x8x144xf32>
    %74 = arith.maximumf %73, %72 : vector<1x8x8x144xf32>
    %75 = vector.broadcast %cst_64 : f32 to vector<1x8x8x144xf32>
    %76 = arith.minimumf %75, %74 : vector<1x8x8x144xf32>
    %77 = arith.truncf %76 : vector<1x8x8x144xf32> to vector<1x8x8x144xbf16>
    %c0_65 = arith.constant 0 : index
    %c0_66 = arith.constant 0 : index
    %c0_67 = arith.constant 0 : index
    %c0_68 = arith.constant 0 : index
    %78 = vector.load %arg3[%c0_65, %c0_66, %c0_67, %c0_68] : memref<1x8x8x144xbf16, #tpu.memory_space<vmem>>, vector<1x8x8x144xbf16>
    tpu.vector_store %arg3[%c0_65, %c0_66, %c0_67, %c0_68], %77 {strides = array<i32>} : memref<1x8x8x144xbf16, #tpu.memory_space<vmem>>, vector<1x8x8x144xbf16>,
    return
  }
  func.func @transform_0(%arg0: i32) -> (i32, i32, i32, i32) {
    %c0_i32 = arith.constant 0 : i32
    %c0_i32_0 = arith.constant 0 : i32
    %c0_i32_1 = arith.constant 0 : i32
    %c0_i32_2 = arith.constant 0 : i32
    return %arg0, %c0_i32, %c0_i32_0, %c0_i32_1 : i32, i32, i32, i32
  }
  func.func @transform_1(%arg0: i32) -> (i32, i32, i32, i32) {
    %c0_i32 = arith.constant 0 : i32
    %c0_i32_0 = arith.constant 0 : i32
    %c0_i32_1 = arith.constant 0 : i32
    %c0_i32_2 = arith.constant 0 : i32
    %c0_i32_3 = arith.constant 0 : i32
    return %c0_i32, %c0_i32_0, %c0_i32_1, %c0_i32_2 : i32, i32, i32, i32
  }
  func.func @transform_2(%arg0: i32) -> (i32, i32, i32, i32) {
    %c0_i32 = arith.constant 0 : i32
    %c0_i32_0 = arith.constant 0 : i32
    %c0_i32_1 = arith.constant 0 : i32
    %c0_i32_2 = arith.constant 0 : i32
    return %arg0, %c0_i32, %c0_i32_0, %c0_i32_1 : i32, i32, i32, i32
  }
}

module attributes {stable_mosaic.version = 11 : i64} {
  func.func @_pw_res_kernel(%arg0: i32, %arg1: memref<64x144xbf16, #tpu.memory_space<vmem>>, %arg2: memref<144x24xbf16, #tpu.memory_space<vmem>>, %arg3: memref<64x24xbf16, #tpu.memory_space<vmem>>, %arg4: memref<64x24xbf16, #tpu.memory_space<vmem>>) attributes {dimension_semantics = [#tpu.dimension_semantics<parallel>], iteration_bounds = array<i64: 2>, scalar_prefetch = 0 : i64, scratch_operands = 0 : i64, tpu.core_type = #tpu.core_type<tc>, window_params = [{transform_indices = @transform_0, window_bounds = array<i64: 64, 144>}, {pipeline_mode = #tpu.pipeline_mode<synchronous>, transform_indices = @transform_1, window_bounds = array<i64: 144, 24>}, {transform_indices = @transform_2, window_bounds = array<i64: 64, 24>}, {transform_indices = @transform_3, window_bounds = array<i64: 64, 24>}]} {
    %c0 = arith.constant 0 : index
    %c0_0 = arith.constant 0 : index
    %0 = vector.load %arg1[%c0, %c0_0] : memref<64x144xbf16, #tpu.memory_space<vmem>>, vector<64x144xbf16>
    %c0_1 = arith.constant 0 : index
    %c0_2 = arith.constant 0 : index
    %1 = vector.load %arg2[%c0_1, %c0_2] : memref<144x24xbf16, #tpu.memory_space<vmem>>, vector<144x24xbf16>
    %cst = arith.constant dense<0.000000e+00> : vector<64x24xf32>
    %2 = tpu.matmul %0, %1, %cst {dimension_numbers = #tpu.dot_dimension_numbers<[1], [0], [0], [1], [0, 0, 1, 1], [], []>} : vector<64x144xbf16>, vector<144x24xbf16>, vector<64x24xf32> -> vector<64x24xf32>
    %c0_3 = arith.constant 0 : index
    %c0_4 = arith.constant 0 : index
    %3 = vector.load %arg3[%c0_3, %c0_4] : memref<64x24xbf16, #tpu.memory_space<vmem>>, vector<64x24xbf16>
    %4 = arith.extf %3 : vector<64x24xbf16> to vector<64x24xf32>
    %5 = arith.addf %2, %4 : vector<64x24xf32>
    %6 = arith.truncf %5 : vector<64x24xf32> to vector<64x24xbf16>
    %c0_5 = arith.constant 0 : index
    %c0_6 = arith.constant 0 : index
    %7 = vector.load %arg4[%c0_5, %c0_6] : memref<64x24xbf16, #tpu.memory_space<vmem>>, vector<64x24xbf16>
    tpu.vector_store %arg4[%c0_5, %c0_6], %6 {strides = array<i32>} : memref<64x24xbf16, #tpu.memory_space<vmem>>, vector<64x24xbf16>,
    return
  }
  func.func @transform_0(%arg0: i32) -> (i32, i32) {
    %c0_i32 = arith.constant 0 : i32
    %c0_i32_0 = arith.constant 0 : i32
    return %arg0, %c0_i32 : i32, i32
  }
  func.func @transform_1(%arg0: i32) -> (i32, i32) {
    %c0_i32 = arith.constant 0 : i32
    %c0_i32_0 = arith.constant 0 : i32
    %c0_i32_1 = arith.constant 0 : i32
    return %c0_i32, %c0_i32_0 : i32, i32
  }
  func.func @transform_2(%arg0: i32) -> (i32, i32) {
    %c0_i32 = arith.constant 0 : i32
    %c0_i32_0 = arith.constant 0 : i32
    return %arg0, %c0_i32 : i32, i32
  }
  func.func @transform_3(%arg0: i32) -> (i32, i32) {
    %c0_i32 = arith.constant 0 : i32
    %c0_i32_0 = arith.constant 0 : i32
    return %arg0, %c0_i32 : i32, i32
  }
}

</mosaic_0001>

<llo_original>
// kernel: _lambda_.6
$region0: #{_lambda_.6}
  #allocation0 [shape = 'u32[]', space=smem, size = 0x4, offset = 0x4, fixed_abs, tag = 'smem constant byte address 0x4 - core index']
  #allocation1 [shape = 'u32[144,128]{1,0:T(1,128)}', space=vmem, size = 0x12000, scoped, tag = 'internal scratch']
  %s0 = inlined_call_operand.vmem [shape: bf16[512,16], index: 0, kind: input, shape index: {}]
  %s1 = inlined_call_operand.vmem [shape: bf16[16,96], index: 1, kind: input, shape index: {}]
  %s2 = inlined_call_operand.vmem [shape: bf16[512,96], index: 2, kind: output, shape index: {}]
  %s3 = sld [smem:[#allocation0]]
  $region41: #{_lambda_.6} parent=0
    _
  %s5 = ssub.s32 1, %s3
  %s6 = scalar_select 0, %s5, %s3
  loop: start=0, step=1, limit=4
  $region2: #{_lambda_.6} parent=0 // loop_pre_header
    _
  $region3: #{_lambda_.6} parent=0 // loop_header
    %s8 = sphi 0, %s12
    %p9 = scmp.ge.s32.totalorder %s8, 4
    %s18 = sphi 0, %s20
    %s21 = sphi 0, %s18
    %s22 = sphi 0, %s21
    %s38 = sphi 0, %s22
    %s42 = sphi 0, %s42
    %s44 = sphi 0, %s42
    %s45 = sphi 0, %s44
    %s59 = sphi 0, %s45
    %s65 = sphi 0, %s67
    %s68 = sphi 0, %s65
    %s69 = sphi 0, %s68
    %s85 = sphi 0, %s69
  $region4: #{_lambda_.6} parent=0 // loop_header_branch
    %11 = sbr.rel (%p9) target = $region8
  $region5: #{_lambda_.6} parent=0 // loop_body
    %s13 = ssub.s32 %s8, 1
    %s14 = ssub.s32 %s8, 2
    %s15 = sadd.s32 %s8, 1
    %s16 = ssub.s32 %s8, %s15
    %p17 = scmp.eq.s32.totalorder %s16, 0
    %s19 = sadd.s32 %s18, 1
    %s20 = scalar_select %p17, %s18, %s19
    %p23 = pneg %p17
    %p24 = scmp.eq.s32.totalorder %s8, 1
    %p25 = por %p23, %p24
    %p26 = scmp.ne.s32.totalorder %s18, %s21
    %p27 = scmp.eq.s32.totalorder %s8, 0
    %p28 = por %p26, %p27
    %p29 = scmp.ne.s32.totalorder %s18, %s21
    %p30 = scmp.eq.s32.totalorder %s13, 1
    %p31 = por %p29, %p30
    %p32 = scmp.ne.s32.totalorder %s21, %s22
    %p33 = scmp.eq.s32.totalorder %s13, 0
    %p34 = por %p32, %p33
    %p35 = scmp.ne.s32.totalorder %s21, %s22
    %p36 = scmp.eq.s32.totalorder %s14, 1
    %p37 = por %p35, %p36
    %p39 = scmp.ne.s32.totalorder %s22, %s38
    %p40 = scmp.eq.s32.totalorder %s14, 0
    %p41 = por %p39, %p40
    %s43 = sadd.s32 %s42, 1
    %p46 = scmp.eq.s32.totalorder %s8, 1
    %p47 = scmp.ne.s32.totalorder %s42, %s44
    %p48 = scmp.eq.s32.totalorder %s8, 0
    %p49 = por %p47, %p48
    %p50 = scmp.ne.s32.totalorder %s42, %s44
    %p51 = scmp.eq.s32.totalorder %s13, 1
    %p52 = por %p50, %p51
    %p53 = scmp.ne.s32.totalorder %s44, %s45
    %p54 = scmp.eq.s32.totalorder %s13, 0
    %p55 = por %p53, %p54
    %p56 = scmp.ne.s32.totalorder %s44, %s45
    %p57 = scmp.eq.s32.totalorder %s14, 1
    %p58 = por %p56, %p57
    %p60 = scmp.ne.s32.totalorder %s45, %s59
    %p61 = scmp.eq.s32.totalorder %s14, 0
    %p62 = por %p60, %p61
    %s63 = ssub.s32 %s8, %s15
    %p64 = scmp.eq.s32.totalorder %s63, 0
    %s66 = sadd.s32 %s65, 1
    %s67 = scalar_select %p64, %s65, %s66
    %p70 = pneg %p64
    %p71 = scmp.eq.s32.totalorder %s8, 1
    %p72 = por %p70, %p71
    %p73 = scmp.ne.s32.totalorder %s65, %s68
    %p74 = scmp.eq.s32.totalorder %s8, 0
    %p75 = por %p73, %p74
    %p76 = scmp.ne.s32.totalorder %s65, %s68
    %p77 = scmp.eq.s32.totalorder %s13, 1
    %p78 = por %p76, %p77
    %p79 = scmp.ne.s32.totalorder %s68, %s69
    %p80 = scmp.eq.s32.totalorder %s13, 0
    %p81 = por %p79, %p80
    %p82 = scmp.ne.s32.totalorder %s68, %s69
    %p83 = scmp.eq.s32.totalorder %s14, 1
    %p84 = por %p82, %p83
    %p86 = scmp.ne.s32.totalorder %s69, %s85
    %p87 = scmp.eq.s32.totalorder %s14, 0
    %p88 = por %p86, %p87
    %p89 = scmp.le.s32.totalorder 1, %s8
    %p90 = scmp.lt.s32.totalorder %s8, 3
    %p91 = pnand %p89, %p90
    %p92 = pneg %p91
    // Predicated region
    $region9: #{_lambda_.6} parent=5 // pred_check
      _
    $region10: #{_lambda_.6} parent=5 // pred_check_branch
      %94 = sbr.rel (%p91) target = $region12
    $region11: #{_lambda_.6} parent=5 // pred_region
      %s95 = ssub.s32 %s8, 1
      // Predicated region
      $region13: #{_lambda_.6} parent=11 // pred_check
        %p96 = pneg %p55
      $region14: #{_lambda_.6} parent=11 // pred_check_branch
        %98 = sbr.rel (%p96) target = $region16
      $region15: #{_lambda_.6} parent=11 // pred_region
        _
      $region16: #{_lambda_.6} parent=11 // pred_fallthru
        _
    $region12: #{_lambda_.6} parent=5 // pred_fallthru
      _
    %p99 = scmp.lt.s32.totalorder %s8, 2
    // Predicated region
    $region17: #{_lambda_.6} parent=5 // pred_check
      %p100 = pneg %p99
    $region18: #{_lambda_.6} parent=5 // pred_check_branch
      %102 = sbr.rel (%p100) target = $region20
    $region19: #{_lambda_.6} parent=5 // pred_region
      // Predicated region
      $region21: #{_lambda_.6} parent=19 // pred_check
        %p103 = pneg %p28
      $region22: #{_lambda_.6} parent=19 // pred_check_branch
        %105 = sbr.rel (%p103) target = $region24
      $region23: #{_lambda_.6} parent=19 // pred_region
        %s106 = smul.u32 32, %s8
        %p107 = scmp.lt.s32.totalorder %s106, 63
        %s108 = scalar_select %p107, %s106, 63
        %s109 = smul.addr %s108, 4
        %s110 = scalar_lea.vmem %s0, %s109
        %s111 = smul.u32 32, %s8
      $region24: #{_lambda_.6} parent=19 // pred_fallthru
        _
    $region20: #{_lambda_.6} parent=5 // pred_fallthru
      _
    %p112 = scmp.le.s32.totalorder 1, %s8
    %p113 = scmp.lt.s32.totalorder %s8, 3
    %p114 = pnand %p112, %p113
    %p115 = pneg %p114
    // Predicated region
    $region25: #{_lambda_.6} parent=5 // pred_check
      _
    $region26: #{_lambda_.6} parent=5 // pred_check_branch
      %117 = sbr.rel (%p114) target = $region28
    $region27: #{_lambda_.6} parent=5 // pred_region
      %s118 = ssub.s32 %s8, 1
      %s119 = smul.u32 32, %s13
      %p120 = scmp.lt.s32.totalorder %s119, 63
      %s121 = scalar_select %p120, %s119, 63
      %s122 = smul.addr %s121, 4
      %s123 = scalar_lea.vmem %s0, %s122
      %p124 = pneg %p34
      %p125 = pneg %p31
      %p126 = pneg %p55
      %p127 = pneg %p52
      %p128 = pneg %p81
      %p129 = pneg %p78
      %s130 = smul.u32 32, %s13
      %p131 = scmp.lt.s32.totalorder %s130, 63
      %s132 = scalar_select %p131, %s130, 63
      %s133 = smul.addr %s132, 4
      %s134 = scalar_lea.vmem %s2, %s133
      %s135 = smul.u32 32, %s13
      %p136 = scmp.lt.s32.totalorder %s135, 63
      %s137 = scalar_select %p136, %s135, 63
      %s138 = smul.addr %s137, 4
      %s139 = scalar_lea.vmem %s0, %s138
      %s140 = smul.u32 32, %s13
      %s141 = smul.u32 32, %s13
      %p142 = scmp.lt.s32.totalorder %s141, 63
      %s143 = scalar_select %p142, %s141, 63
      %s144 = smul.addr %s143, 4
      %s145 = scalar_lea.vmem %s2, %s144
      %s146 = smul.u32 32, %s13
      %v148 = vld [vmem:[%s139] sm:$0xf]
      %v149 = vld [vmem:[%s139 + $0x4] sm:$0xf]
      %v150 = vld [vmem:[%s139 + $0x8] sm:$0xf]
      %v151 = vld [vmem:[%s139 + $0xc] sm:$0xf]
      %v152 = vld [vmem:[%s139 + $0x10] sm:$0xf]
      %v153 = vld [vmem:[%s139 + $0x14] sm:$0xf]
      %v154 = vld [vmem:[%s139 + $0x18] sm:$0xf]
      %v155 = vld [vmem:[%s139 + $0x1c] sm:$0xf]
      %v156 = vld [vmem:[%s139 + $0x20] sm:$0xf]
      %v157 = vld [vmem:[%s139 + $0x24] sm:$0xf]
      %v158 = vld [vmem:[%s139 + $0x28] sm:$0xf]
      %v159 = vld [vmem:[%s139 + $0x2c] sm:$0xf]
      %v160 = vld [vmem:[%s139 + $0x30] sm:$0xf]
      %v161 = vld [vmem:[%s139 + $0x34] sm:$0xf]
      %v162 = vld [vmem:[%s139 + $0x38] sm:$0xf]
      %v163 = vld [vmem:[%s139 + $0x3c] sm:$0xf]
      %v164 = vld [vmem:[%s139 + $0x40] sm:$0xf]
      %v165 = vld [vmem:[%s139 + $0x44] sm:$0xf]
      %v166 = vld [vmem:[%s139 + $0x48] sm:$0xf]
      %v167 = vld [vmem:[%s139 + $0x4c] sm:$0xf]
      %v168 = vld [vmem:[%s139 + $0x50] sm:$0xf]
      %v169 = vld [vmem:[%s139 + $0x54] sm:$0xf]
      %v170 = vld [vmem:[%s139 + $0x58] sm:$0xf]
      %v171 = vld [vmem:[%s139 + $0x5c] sm:$0xf]
      %v172 = vld [vmem:[%s139 + $0x60] sm:$0xf]
      %v173 = vld [vmem:[%s139 + $0x64] sm:$0xf]
      %v174 = vld [vmem:[%s139 + $0x68] sm:$0xf]
      %v175 = vld [vmem:[%s139 + $0x6c] sm:$0xf]
      %v176 = vld [vmem:[%s139 + $0x70] sm:$0xf]
      %v177 = vld [vmem:[%s139 + $0x74] sm:$0xf]
      %v178 = vld [vmem:[%s139 + $0x78] sm:$0xf]
      %v179 = vld [vmem:[%s139 + $0x7c] sm:$0xf]
      %v180 = vld [vmem:[%s1] sm:$0xf]
      %v181 = vld [vmem:[%s1 + $0x4] sm:$0xf]
      %v214 = vunpack.c.l.b16 %v148
      %v215 = vunpack.c.l.b16 %v149
      %v216 = vunpack.c.l.b16 %v150
      %v217 = vunpack.c.l.b16 %v151
      %v218 = vunpack.c.l.b16 %v152
      %v219 = vunpack.c.l.b16 %v153
      %v220 = vunpack.c.l.b16 %v154
      %v221 = vunpack.c.l.b16 %v155
      %v222 = vunpack.c.l.b16 %v156
      %v223 = vunpack.c.l.b16 %v157
      %v224 = vunpack.c.l.b16 %v158
      %v225 = vunpack.c.l.b16 %v159
      %v226 = vunpack.c.l.b16 %v160
      %v227 = vunpack.c.l.b16 %v161
      %v228 = vunpack.c.l.b16 %v162
      %v229 = vunpack.c.l.b16 %v163
      %v230 = vunpack.c.l.b16 %v164
      %v231 = vunpack.c.l.b16 %v165
      %v232 = vunpack.c.l.b16 %v166
      %v233 = vunpack.c.l.b16 %v167
      %v234 = vunpack.c.l.b16 %v168
      %v235 = vunpack.c.l.b16 %v169
      %v236 = vunpack.c.l.b16 %v170
      %v237 = vunpack.c.l.b16 %v171
      %v238 = vunpack.c.l.b16 %v172
      %v239 = vunpack.c.l.b16 %v173
      %v240 = vunpack.c.l.b16 %v174
      %v241 = vunpack.c.l.b16 %v175
      %v242 = vunpack.c.l.b16 %v176
      %v243 = vunpack.c.l.b16 %v177
      %v244 = vunpack.c.l.b16 %v178
      %v245 = vunpack.c.l.b16 %v179
      %v246 = vpack.c.b16 %v215, %v214
      %v247 = vpack.c.b16 %v217, %v216
      %v248 = vpack.c.b16 %v219, %v218
      %v249 = vpack.c.b16 %v221, %v220
      %v250 = vpack.c.b16 %v223, %v222
      %v251 = vpack.c.b16 %v225, %v224
      %v252 = vpack.c.b16 %v227, %v226
      %v253 = vpack.c.b16 %v229, %v228
      %v254 = vpack.c.b16 %v231, %v230
      %v255 = vpack.c.b16 %v233, %v232
      %v256 = vpack.c.b16 %v235, %v234
      %v257 = vpack.c.b16 %v237, %v236
      %v258 = vpack.c.b16 %v239, %v238
      %v259 = vpack.c.b16 %v241, %v240
      %v260 = vpack.c.b16 %v243, %v242
      %v261 = vpack.c.b16 %v245, %v244
      %v264 = vunpack.c.l.b16 %v180
      %v265 = vunpack.c.l.b16 %v181
      %v266 = vpack.c.b16 %v265, %v264
      %vm268 = vcmask 130048
      %v270 = vsel %vm268, %v246, 0
      %v273 = vsel %vm268, %v247, 0
      %v276 = vsel %vm268, %v248, 0
      %v279 = vsel %vm268, %v249, 0
      %v282 = vsel %vm268, %v250, 0
      %v285 = vsel %vm268, %v251, 0
      %v288 = vsel %vm268, %v252, 0
      %v291 = vsel %vm268, %v253, 0
      %v294 = vsel %vm268, %v254, 0
      %v297 = vsel %vm268, %v255, 0
      %v300 = vsel %vm268, %v256, 0
      %v303 = vsel %vm268, %v257, 0
      %v306 = vsel %vm268, %v258, 0
      %v309 = vsel %vm268, %v259, 0
      %v312 = vsel %vm268, %v260, 0
      %v315 = vsel %vm268, %v261, 0
      %317 = vmatprep.subr.bf16.mxu0 0
      %318 = vmatpush1.bf16.msra.mxu0 0
      %319 = vmatprep.subr.bf16.mxu0 0
      %320 = vmatpush1.bf16.msra.mxu0 0
      %321 = vmatprep.subr.bf16.mxu0 0
      %322 = vmatpush1.bf16.msra.mxu0 0
      %323 = vmatprep.subr.bf16.mxu0 0
      %324 = vmatpush1.bf16.msra.mxu0 0
      %325 = vmatprep.subr.bf16.mxu0 0
      %326 = vmatpush1.bf16.msra.mxu0 0
      %327 = vmatprep.subr.bf16.mxu0 0
      %328 = vmatpush1.bf16.msra.mxu0 0
      %329 = vmatprep.subr.bf16.mxu0 0
      %330 = vmatpush1.bf16.msra.mxu0 0
      %331 = vmatprep.subr.bf16.mxu0 0
      %332 = vmatpush1.bf16.msra.mxu0 %v266
      %333 = vmatprep.subr.bf16.mxu0 0
      %334 = vmatpush2.bf16.msra.mxu0 0
      %335 = vmatprep.subr.bf16.mxu0 0
      %336 = vmatpush2.bf16.msra.mxu0 0
      %337 = vmatprep.subr.bf16.mxu0 0
      %338 = vmatpush2.bf16.msra.mxu0 0
      %339 = vmatprep.subr.bf16.mxu0 0
      %340 = vmatpush2.bf16.msra.mxu0 0
      %341 = vmatprep.subr.bf16.mxu0 0
      %342 = vmatpush2.bf16.msra.mxu0 0
      %343 = vmatprep.subr.bf16.mxu0 0
      %344 = vmatpush2.bf16.msra.mxu0 0
      %345 = vmatprep.subr.bf16.mxu0 0
      %346 = vmatpush2.bf16.msra.mxu0 0
      %347 = vmatprep.subr.bf16.mxu0 0
      %348 = vmatpush2.bf16.msra.mxu0 0
      %349 = vmatprep.mubr.bf16.mxu0 0
      %350 = vmatmul.mubr.bf16.gmra.mxu0 %v270
      %v351 = vpop.f32.mrf.mxu0
      %v352 = vadd.f32 0.0, %v351
      %v353 = vpop.f32.mrf.mxu0
      %v354 = vpop.f32.mrf.mxu0
      %v355 = vadd.f32 0.0, %v354
      %v356 = vpop.f32.mrf.mxu0
      %357 = vmatprep.mubr.bf16.mxu0 0
      %358 = vmatmul.mubr.bf16.gmra.mxu0 %v273
      %v359 = vpop.f32.mrf.mxu0
      %v360 = vadd.f32 0.0, %v359
      %v361 = vpop.f32.mrf.mxu0
      %v362 = vpop.f32.mrf.mxu0
      %v363 = vadd.f32 0.0, %v362
      %v364 = vpop.f32.mrf.mxu0
      %365 = vmatprep.mubr.bf16.mxu0 0
      %366 = vmatmul.mubr.bf16.gmra.mxu0 %v276
      %v367 = vpop.f32.mrf.mxu0
      %v368 = vadd.f32 0.0, %v367
      %v369 = vpop.f32.mrf.mxu0
      %v370 = vpop.f32.mrf.mxu0
      %v371 = vadd.f32 0.0, %v370
      %v372 = vpop.f32.mrf.mxu0
      %373 = vmatprep.mubr.bf16.mxu0 0
      %374 = vmatmul.mubr.bf16.gmra.mxu0 %v279
      %v375 = vpop.f32.mrf.mxu0
      %v376 = vadd.f32 0.0, %v375
      %v377 = vpop.f32.mrf.mxu0
      %v378 = vpop.f32.mrf.mxu0
      %v379 = vadd.f32 0.0, %v378
      %v380 = vpop.f32.mrf.mxu0
      %381 = vmatprep.mubr.bf16.mxu0 0
      %382 = vmatmul.mubr.bf16.gmra.mxu0 %v282
      %v383 = vpop.f32.mrf.mxu0
      %v384 = vadd.f32 0.0, %v383
      %v385 = vpop.f32.mrf.mxu0
      %v386 = vpop.f32.mrf.mxu0
      %v387 = vadd.f32 0.0, %v386
      %v388 = vpop.f32.mrf.mxu0
      %389 = vmatprep.mubr.bf16.mxu0 0
      %390 = vmatmul.mubr.bf16.gmra.mxu0 %v285
      %v391 = vpop.f32.mrf.mxu0
      %v392 = vadd.f32 0.0, %v391
      %v393 = vpop.f32.mrf.mxu0
      %v394 = vpop.f32.mrf.mxu0
      %v395 = vadd.f32 0.0, %v394
      %v396 = vpop.f32.mrf.mxu0
      %397 = vmatprep.mubr.bf16.mxu0 0
      %398 = vmatmul.mubr.bf16.gmra.mxu0 %v288
      %v399 = vpop.f32.mrf.mxu0
      %v400 = vadd.f32 0.0, %v399
      %v401 = vpop.f32.mrf.mxu0
      %v402 = vpop.f32.mrf.mxu0
      %v403 = vadd.f32 0.0, %v402
      %v404 = vpop.f32.mrf.mxu0
      %405 = vmatprep.mubr.bf16.mxu0 0
      %406 = vmatmul.mubr.bf16.gmra.mxu0 %v291
      %v407 = vpop.f32.mrf.mxu0
      %v408 = vadd.f32 0.0, %v407
      %v409 = vpop.f32.mrf.mxu0
      %v410 = vpop.f32.mrf.mxu0
      %v411 = vadd.f32 0.0, %v410
      %v412 = vpop.f32.mrf.mxu0
      %413 = vmatprep.mubr.bf16.mxu0 0
      %414 = vmatmul.mubr.bf16.gmra.mxu0 %v294
      %v415 = vpop.f32.mrf.mxu0
      %v416 = vadd.f32 0.0, %v415
      %v417 = vpop.f32.mrf.mxu0
      %v418 = vpop.f32.mrf.mxu0
      %v419 = vadd.f32 0.0, %v418
      %v420 = vpop.f32.mrf.mxu0
      %421 = vmatprep.mubr.bf16.mxu0 0
      %422 = vmatmul.mubr.bf16.gmra.mxu0 %v297
      %v423 = vpop.f32.mrf.mxu0
      %v424 = vadd.f32 0.0, %v423
      %v425 = vpop.f32.mrf.mxu0
      %v426 = vpop.f32.mrf.mxu0
      %v427 = vadd.f32 0.0, %v426
      %v428 = vpop.f32.mrf.mxu0
      %429 = vmatprep.mubr.bf16.mxu0 0
      %430 = vmatmul.mubr.bf16.gmra.mxu0 %v300
      %v431 = vpop.f32.mrf.mxu0
      %v432 = vadd.f32 0.0, %v431
      %v433 = vpop.f32.mrf.mxu0
      %v434 = vpop.f32.mrf.mxu0
      %v435 = vadd.f32 0.0, %v434
      %v436 = vpop.f32.mrf.mxu0
      %437 = vmatprep.mubr.bf16.mxu0 0
      %438 = vmatmul.mubr.bf16.gmra.mxu0 %v303
      %v439 = vpop.f32.mrf.mxu0
      %v440 = vadd.f32 0.0, %v439
      %v441 = vpop.f32.mrf.mxu0
      %v442 = vpop.f32.mrf.mxu0
      %v443 = vadd.f32 0.0, %v442
      %v444 = vpop.f32.mrf.mxu0
      %445 = vmatprep.mubr.bf16.mxu0 0
      %446 = vmatmul.mubr.bf16.gmra.mxu0 %v306
      %v447 = vpop.f32.mrf.mxu0
      %v448 = vadd.f32 0.0, %v447
      %v449 = vpop.f32.mrf.mxu0
      %v450 = vpop.f32.mrf.mxu0
      %v451 = vadd.f32 0.0, %v450
      %v452 = vpop.f32.mrf.mxu0
      %453 = vmatprep.mubr.bf16.mxu0 0
      %454 = vmatmul.mubr.bf16.gmra.mxu0 %v309
      %v455 = vpop.f32.mrf.mxu0
      %v456 = vadd.f32 0.0, %v455
      %v457 = vpop.f32.mrf.mxu0
      %v458 = vpop.f32.mrf.mxu0
      %v459 = vadd.f32 0.0, %v458
      %v460 = vpop.f32.mrf.mxu0
      %461 = vmatprep.mubr.bf16.mxu0 0
      %462 = vmatmul.mubr.bf16.gmra.mxu0 %v312
      %v463 = vpop.f32.mrf.mxu0
      %v464 = vadd.f32 0.0, %v463
      %v465 = vpop.f32.mrf.mxu0
      %v466 = vpop.f32.mrf.mxu0
      %v467 = vadd.f32 0.0, %v466
      %v468 = vpop.f32.mrf.mxu0
      %469 = vmatprep.mubr.bf16.mxu0 0
      %470 = vmatmul.mubr.bf16.gmra.mxu0 %v315
      %v471 = vpop.f32.mrf.mxu0
      %v472 = vadd.f32 0.0, %v471
      %v473 = vpop.f32.mrf.mxu0
      %v474 = vpop.f32.mrf.mxu0
      %v475 = vadd.f32 0.0, %v474
      %v476 = vpop.f32.mrf.mxu0
      %477 = vdwg.mxu0
      %v478 = vmax.f32 %v352, 0.0
      %v479 = vmax.f32 %v355, 0.0
      %v480 = vmax.f32 %v360, 0.0
      %v481 = vmax.f32 %v363, 0.0
      %v482 = vmax.f32 %v368, 0.0
      %v483 = vmax.f32 %v371, 0.0
      %v484 = vmax.f32 %v376, 0.0
      %v485 = vmax.f32 %v379, 0.0
      %v486 = vmax.f32 %v384, 0.0
      %v487 = vmax.f32 %v387, 0.0
      %v488 = vmax.f32 %v392, 0.0
      %v489 = vmax.f32 %v395, 0.0
      %v490 = vmax.f32 %v400, 0.0
      %v491 = vmax.f32 %v403, 0.0
      %v492 = vmax.f32 %v408, 0.0
      %v493 = vmax.f32 %v411, 0.0
      %v494 = vmax.f32 %v416, 0.0
      %v495 = vmax.f32 %v419, 0.0
      %v496 = vmax.f32 %v424, 0.0
      %v497 = vmax.f32 %v427, 0.0
      %v498 = vmax.f32 %v432, 0.0
      %v499 = vmax.f32 %v435, 0.0
      %v500 = vmax.f32 %v440, 0.0
      %v501 = vmax.f32 %v443, 0.0
      %v502 = vmax.f32 %v448, 0.0
      %v503 = vmax.f32 %v451, 0.0
      %v504 = vmax.f32 %v456, 0.0
      %v505 = vmax.f32 %v459, 0.0
      %v506 = vmax.f32 %v464, 0.0
      %v507 = vmax.f32 %v467, 0.0
      %v508 = vmax.f32 %v472, 0.0
      %v509 = vmax.f32 %v475, 0.0
      %v510 = vmin.f32 %v478, 6.0
      %v511 = vmin.f32 %v479, 6.0
      %v512 = vmin.f32 %v480, 6.0
      %v513 = vmin.f32 %v481, 6.0
      %v514 = vmin.f32 %v482, 6.0
      %v515 = vmin.f32 %v483, 6.0
      %v516 = vmin.f32 %v484, 6.0
      %v517 = vmin.f32 %v485, 6.0
      %v518 = vmin.f32 %v486, 6.0
      %v519 = vmin.f32 %v487, 6.0
      %v520 = vmin.f32 %v488, 6.0
      %v521 = vmin.f32 %v489, 6.0
      %v522 = vmin.f32 %v490, 6.0
      %v523 = vmin.f32 %v491, 6.0
      %v524 = vmin.f32 %v492, 6.0
      %v525 = vmin.f32 %v493, 6.0
      %v526 = vmin.f32 %v494, 6.0
      %v527 = vmin.f32 %v495, 6.0
      %v528 = vmin.f32 %v496, 6.0
      %v529 = vmin.f32 %v497, 6.0
      %v530 = vmin.f32 %v498, 6.0
      %v531 = vmin.f32 %v499, 6.0
      %v532 = vmin.f32 %v500, 6.0
      %v533 = vmin.f32 %v501, 6.0
      %v534 = vmin.f32 %v502, 6.0
      %v535 = vmin.f32 %v503, 6.0
      %v536 = vmin.f32 %v504, 6.0
      %v537 = vmin.f32 %v505, 6.0
      %v538 = vmin.f32 %v506, 6.0
      %v539 = vmin.f32 %v507, 6.0
      %v540 = vmin.f32 %v508, 6.0
      %v541 = vmin.f32 %v509, 6.0
      %v542 = vpack.c.bf16 %v511, %v510
      %v543 = vpack.c.bf16 %v513, %v512
      %v544 = vpack.c.bf16 %v515, %v514
      %v545 = vpack.c.bf16 %v517, %v516
      %v546 = vpack.c.bf16 %v519, %v518
      %v547 = vpack.c.bf16 %v521, %v520
      %v548 = vpack.c.bf16 %v523, %v522
      %v549 = vpack.c.bf16 %v525, %v524
      %v550 = vpack.c.bf16 %v527, %v526
      %v551 = vpack.c.bf16 %v529, %v528
      %v552 = vpack.c.bf16 %v531, %v530
      %v553 = vpack.c.bf16 %v533, %v532
      %v554 = vpack.c.bf16 %v535, %v534
      %v555 = vpack.c.bf16 %v537, %v536
      %v556 = vpack.c.bf16 %v539, %v538
      %v557 = vpack.c.bf16 %v541, %v540
      %v574 = vunpack.c.l.b16 %v542
      %v575 = vunpack.c.h.b16 %v542
      %v576 = vunpack.c.l.b16 %v543
      %v577 = vunpack.c.h.b16 %v543
      %v578 = vunpack.c.l.b16 %v544
      %v579 = vunpack.c.h.b16 %v544
      %v580 = vunpack.c.l.b16 %v545
      %v581 = vunpack.c.h.b16 %v545
      %v582 = vunpack.c.l.b16 %v546
      %v583 = vunpack.c.h.b16 %v546
      %v584 = vunpack.c.l.b16 %v547
      %v585 = vunpack.c.h.b16 %v547
      %v586 = vunpack.c.l.b16 %v548
      %v587 = vunpack.c.h.b16 %v548
      %v588 = vunpack.c.l.b16 %v549
      %v589 = vunpack.c.h.b16 %v549
      %v590 = vunpack.c.l.b16 %v550
      %v591 = vunpack.c.h.b16 %v550
      %v592 = vunpack.c.l.b16 %v551
      %v593 = vunpack.c.h.b16 %v551
      %v594 = vunpack.c.l.b16 %v552
      %v595 = vunpack.c.h.b16 %v552
      %v596 = vunpack.c.l.b16 %v553
      %v597 = vunpack.c.h.b16 %v553
      %v598 = vunpack.c.l.b16 %v554
      %v599 = vunpack.c.h.b16 %v554
      %v600 = vunpack.c.l.b16 %v555
      %v601 = vunpack.c.h.b16 %v555
      %v602 = vunpack.c.l.b16 %v556
      %v603 = vunpack.c.h.b16 %v556
      %v604 = vunpack.c.l.b16 %v557
      %v605 = vunpack.c.h.b16 %v557
      %v606 = vpack.c.b16 %v574, %v574
      %v607 = vpack.c.b16 %v575, %v575
      %v608 = vpack.c.b16 %v576, %v576
      %v609 = vpack.c.b16 %v577, %v577
      %v610 = vpack.c.b16 %v578, %v578
      %v611 = vpack.c.b16 %v579, %v579
      %v612 = vpack.c.b16 %v580, %v580
      %v613 = vpack.c.b16 %v581, %v581
      %v614 = vpack.c.b16 %v582, %v582
      %v615 = vpack.c.b16 %v583, %v583
      %v616 = vpack.c.b16 %v584, %v584
      %v617 = vpack.c.b16 %v585, %v585
      %v618 = vpack.c.b16 %v586, %v586
      %v619 = vpack.c.b16 %v587, %v587
      %v620 = vpack.c.b16 %v588, %v588
      %v621 = vpack.c.b16 %v589, %v589
      %v622 = vpack.c.b16 %v590, %v590
      %v623 = vpack.c.b16 %v591, %v591
      %v624 = vpack.c.b16 %v592, %v592
      %v625 = vpack.c.b16 %v593, %v593
      %v626 = vpack.c.b16 %v594, %v594
      %v627 = vpack.c.b16 %v595, %v595
      %v628 = vpack.c.b16 %v596, %v596
      %v629 = vpack.c.b16 %v597, %v597
      %v630 = vpack.c.b16 %v598, %v598
      %v631 = vpack.c.b16 %v599, %v599
      %v632 = vpack.c.b16 %v600, %v600
      %v633 = vpack.c.b16 %v601, %v601
      %v634 = vpack.c.b16 %v602, %v602
      %v635 = vpack.c.b16 %v603, %v603
      %v636 = vpack.c.b16 %v604, %v604
      %v637 = vpack.c.b16 %v605, %v605
      %vm670 = vcmask 781312
      %671 = vst.msk [vmem:[%s145] sm:$0xf] %vm670, %v606
      %672 = vst.msk [vmem:[%s145 + $0x4] sm:$0xf] %vm670, %v607
      %673 = vst.msk [vmem:[%s145 + $0x8] sm:$0xf] %vm670, %v608
      %674 = vst.msk [vmem:[%s145 + $0xc] sm:$0xf] %vm670, %v609
      %675 = vst.msk [vmem:[%s145 + $0x10] sm:$0xf] %vm670, %v610
      %676 = vst.msk [vmem:[%s145 + $0x14] sm:$0xf] %vm670, %v611
      %677 = vst.msk [vmem:[%s145 + $0x18] sm:$0xf] %vm670, %v612
      %678 = vst.msk [vmem:[%s145 + $0x1c] sm:$0xf] %vm670, %v613
      %679 = vst.msk [vmem:[%s145 + $0x20] sm:$0xf] %vm670, %v614
      %680 = vst.msk [vmem:[%s145 + $0x24] sm:$0xf] %vm670, %v615
      %681 = vst.msk [vmem:[%s145 + $0x28] sm:$0xf] %vm670, %v616
      %682 = vst.msk [vmem:[%s145 + $0x2c] sm:$0xf] %vm670, %v617
      %683 = vst.msk [vmem:[%s145 + $0x30] sm:$0xf] %vm670, %v618
      %684 = vst.msk [vmem:[%s145 + $0x34] sm:$0xf] %vm670, %v619
      %685 = vst.msk [vmem:[%s145 + $0x38] sm:$0xf] %vm670, %v620
      %686 = vst.msk [vmem:[%s145 + $0x3c] sm:$0xf] %vm670, %v621
      %687 = vst.msk [vmem:[%s145 + $0x40] sm:$0xf] %vm670, %v622
      %688 = vst.msk [vmem:[%s145 + $0x44] sm:$0xf] %vm670, %v623
      %689 = vst.msk [vmem:[%s145 + $0x48] sm:$0xf] %vm670, %v624
      %690 = vst.msk [vmem:[%s145 + $0x4c] sm:$0xf] %vm670, %v625
      %691 = vst.msk [vmem:[%s145 + $0x50] sm:$0xf] %vm670, %v626
      %692 = vst.msk [vmem:[%s145 + $0x54] sm:$0xf] %vm670, %v627
      %693 = vst.msk [vmem:[%s145 + $0x58] sm:$0xf] %vm670, %v628
      %694 = vst.msk [vmem:[%s145 + $0x5c] sm:$0xf] %vm670, %v629
      %695 = vst.msk [vmem:[%s145 + $0x60] sm:$0xf] %vm670, %v630
      %696 = vst.msk [vmem:[%s145 + $0x64] sm:$0xf] %vm670, %v631
      %697 = vst.msk [vmem:[%s145 + $0x68] sm:$0xf] %vm670, %v632
      %698 = vst.msk [vmem:[%s145 + $0x6c] sm:$0xf] %vm670, %v633
      %699 = vst.msk [vmem:[%s145 + $0x70] sm:$0xf] %vm670, %v634
      %700 = vst.msk [vmem:[%s145 + $0x74] sm:$0xf] %vm670, %v635
      %701 = vst.msk [vmem:[%s145 + $0x78] sm:$0xf] %vm670, %v636
      %702 = vst.msk [vmem:[%s145 + $0x7c] sm:$0xf] %vm670, %v637
      %s703 = smul.u32 32, %s13
      %p704 = scmp.lt.s32.totalorder %s703, 63
      %s705 = scalar_select %p704, %s703, 63
      %s706 = smul.addr %s705, 4
      %s707 = scalar_lea.vmem %s2, %s706
      // Predicated region
      $region29: #{_lambda_.6} parent=27 // pred_check
        %p708 = pneg %p78
      $region30: #{_lambda_.6} parent=27 // pred_check_branch
        %710 = sbr.rel (%p708) target = $region32
      $region31: #{_lambda_.6} parent=27 // pred_region
        %s711 = smul.u32 32, %s13
      $region32: #{_lambda_.6} parent=27 // pred_fallthru
        _
    $region28: #{_lambda_.6} parent=5 // pred_fallthru
      _
    %p712 = scmp.le.s32.totalorder 2, %s8
    // Predicated region
    $region33: #{_lambda_.6} parent=5 // pred_check
      %p713 = pneg %p712
    $region34: #{_lambda_.6} parent=5 // pred_check_branch
      %715 = sbr.rel (%p713) target = $region36
    $region35: #{_lambda_.6} parent=5 // pred_region
      %s716 = ssub.s32 %s8, 2
      // Predicated region
      $region37: #{_lambda_.6} parent=35 // pred_check
        %p717 = pneg %p84
      $region38: #{_lambda_.6} parent=35 // pred_check_branch
        %719 = sbr.rel (%p717) target = $region40
      $region39: #{_lambda_.6} parent=35 // pred_region
        %s720 = smul.u32 32, %s14
        %p721 = scmp.lt.s32.totalorder %s720, 63
        %s722 = scalar_select %p721, %s720, 63
        %s723 = smul.addr %s722, 4
        %s724 = scalar_lea.vmem %s2, %s723
      $region40: #{_lambda_.6} parent=35 // pred_fallthru
        _
    $region36: #{_lambda_.6} parent=5 // pred_fallthru
      _
  $region6: #{_lambda_.6} parent=0 // loop_footer
    %s12 = sadd.s32 1, %s8
  $region7: #{_lambda_.6} parent=0 // loop_footer_branch
    %7 = sbr.rel target = $region3
  $region8: #{_lambda_.6} parent=0 // loop_exit
    _

// kernel: _lambda_.8
$region0: #{_lambda_.8}
  #allocation0 [shape = 'u32[]', space=smem, size = 0x4, offset = 0x4, fixed_abs, tag = 'smem constant byte address 0x4 - core index']
  #allocation1 [shape = 'u32[144,128]{1,0:T(1,128)}', space=vmem, size = 0x12000, scoped, tag = 'internal scratch']
  %s0 = inlined_call_operand.vmem [shape: bf16[128,96], index: 0, kind: input, shape index: {}]
  %s1 = inlined_call_operand.vmem [shape: bf16[96,24], index: 1, kind: input, shape index: {}]
  %s2 = inlined_call_operand.vmem [shape: bf16[128,24], index: 2, kind: output, shape index: {}]
  %s3 = sld [smem:[#allocation0]]
  $region41: #{_lambda_.8} parent=0
    _
  %s5 = ssub.s32 1, %s3
  %s6 = scalar_select 0, %s5, %s3
  loop: start=0, step=1, limit=4
  $region2: #{_lambda_.8} parent=0 // loop_pre_header
    _
  $region3: #{_lambda_.8} parent=0 // loop_header
    %s8 = sphi 0, %s12
    %p9 = scmp.ge.s32.totalorder %s8, 4
    %s18 = sphi 0, %s20
    %s21 = sphi 0, %s18
    %s22 = sphi 0, %s21
    %s38 = sphi 0, %s22
    %s42 = sphi 0, %s42
    %s44 = sphi 0, %s42
    %s45 = sphi 0, %s44
    %s59 = sphi 0, %s45
    %s65 = sphi 0, %s67
    %s68 = sphi 0, %s65
    %s69 = sphi 0, %s68
    %s85 = sphi 0, %s69
  $region4: #{_lambda_.8} parent=0 // loop_header_branch
    %11 = sbr.rel (%p9) target = $region8
  $region5: #{_lambda_.8} parent=0 // loop_body
    %s13 = ssub.s32 %s8, 1
    %s14 = ssub.s32 %s8, 2
    %s15 = sadd.s32 %s8, 1
    %s16 = ssub.s32 %s8, %s15
    %p17 = scmp.eq.s32.totalorder %s16, 0
    %s19 = sadd.s32 %s18, 1
    %s20 = scalar_select %p17, %s18, %s19
    %p23 = pneg %p17
    %p24 = scmp.eq.s32.totalorder %s8, 1
    %p25 = por %p23, %p24
    %p26 = scmp.ne.s32.totalorder %s18, %s21
    %p27 = scmp.eq.s32.totalorder %s8, 0
    %p28 = por %p26, %p27
    %p29 = scmp.ne.s32.totalorder %s18, %s21
    %p30 = scmp.eq.s32.totalorder %s13, 1
    %p31 = por %p29, %p30
    %p32 = scmp.ne.s32.totalorder %s21, %s22
    %p33 = scmp.eq.s32.totalorder %s13, 0
    %p34 = por %p32, %p33
    %p35 = scmp.ne.s32.totalorder %s21, %s22
    %p36 = scmp.eq.s32.totalorder %s14, 1
    %p37 = por %p35, %p36
    %p39 = scmp.ne.s32.totalorder %s22, %s38
    %p40 = scmp.eq.s32.totalorder %s14, 0
    %p41 = por %p39, %p40
    %s43 = sadd.s32 %s42, 1
    %p46 = scmp.eq.s32.totalorder %s8, 1
    %p47 = scmp.ne.s32.totalorder %s42, %s44
    %p48 = scmp.eq.s32.totalorder %s8, 0
    %p49 = por %p47, %p48
    %p50 = scmp.ne.s32.totalorder %s42, %s44
    %p51 = scmp.eq.s32.totalorder %s13, 1
    %p52 = por %p50, %p51
    %p53 = scmp.ne.s32.totalorder %s44, %s45
    %p54 = scmp.eq.s32.totalorder %s13, 0
    %p55 = por %p53, %p54
    %p56 = scmp.ne.s32.totalorder %s44, %s45
    %p57 = scmp.eq.s32.totalorder %s14, 1
    %p58 = por %p56, %p57
    %p60 = scmp.ne.s32.totalorder %s45, %s59
    %p61 = scmp.eq.s32.totalorder %s14, 0
    %p62 = por %p60, %p61
    %s63 = ssub.s32 %s8, %s15
    %p64 = scmp.eq.s32.totalorder %s63, 0
    %s66 = sadd.s32 %s65, 1
    %s67 = scalar_select %p64, %s65, %s66
    %p70 = pneg %p64
    %p71 = scmp.eq.s32.totalorder %s8, 1
    %p72 = por %p70, %p71
    %p73 = scmp.ne.s32.totalorder %s65, %s68
    %p74 = scmp.eq.s32.totalorder %s8, 0
    %p75 = por %p73, %p74
    %p76 = scmp.ne.s32.totalorder %s65, %s68
    %p77 = scmp.eq.s32.totalorder %s13, 1
    %p78 = por %p76, %p77
    %p79 = scmp.ne.s32.totalorder %s68, %s69
    %p80 = scmp.eq.s32.totalorder %s13, 0
    %p81 = por %p79, %p80
    %p82 = scmp.ne.s32.totalorder %s68, %s69
    %p83 = scmp.eq.s32.totalorder %s14, 1
    %p84 = por %p82, %p83
    %p86 = scmp.ne.s32.totalorder %s69, %s85
    %p87 = scmp.eq.s32.totalorder %s14, 0
    %p88 = por %p86, %p87
    %p89 = scmp.le.s32.totalorder 1, %s8
    %p90 = scmp.lt.s32.totalorder %s8, 3
    %p91 = pnand %p89, %p90
    %p92 = pneg %p91
    // Predicated region
    $region9: #{_lambda_.8} parent=5 // pred_check
      _
    $region10: #{_lambda_.8} parent=5 // pred_check_branch
      %94 = sbr.rel (%p91) target = $region12
    $region11: #{_lambda_.8} parent=5 // pred_region
      %s95 = ssub.s32 %s8, 1
      // Predicated region
      $region13: #{_lambda_.8} parent=11 // pred_check
        %p96 = pneg %p55
      $region14: #{_lambda_.8} parent=11 // pred_check_branch
        %98 = sbr.rel (%p96) target = $region16
      $region15: #{_lambda_.8} parent=11 // pred_region
        _
      $region16: #{_lambda_.8} parent=11 // pred_fallthru
        _
    $region12: #{_lambda_.8} parent=5 // pred_fallthru
      _
    %p99 = scmp.lt.s32.totalorder %s8, 2
    // Predicated region
    $region17: #{_lambda_.8} parent=5 // pred_check
      %p100 = pneg %p99
    $region18: #{_lambda_.8} parent=5 // pred_check_branch
      %102 = sbr.rel (%p100) target = $region20
    $region19: #{_lambda_.8} parent=5 // pred_region
      // Predicated region
      $region21: #{_lambda_.8} parent=19 // pred_check
        %p103 = pneg %p28
      $region22: #{_lambda_.8} parent=19 // pred_check_branch
        %105 = sbr.rel (%p103) target = $region24
      $region23: #{_lambda_.8} parent=19 // pred_region
        %s106 = smul.u32 8, %s8
        %p107 = scmp.lt.s32.totalorder %s106, 15
        %s108 = scalar_select %p107, %s106, 15
        %s109 = smul.addr %s108, 4
        %s110 = scalar_lea.vmem %s0, %s109
        %s111 = smul.u32 8, %s8
      $region24: #{_lambda_.8} parent=19 // pred_fallthru
        _
    $region20: #{_lambda_.8} parent=5 // pred_fallthru
      _
    %p112 = scmp.le.s32.totalorder 1, %s8
    %p113 = scmp.lt.s32.totalorder %s8, 3
    %p114 = pnand %p112, %p113
    %p115 = pneg %p114
    // Predicated region
    $region25: #{_lambda_.8} parent=5 // pred_check
      _
    $region26: #{_lambda_.8} parent=5 // pred_check_branch
      %117 = sbr.rel (%p114) target = $region28
    $region27: #{_lambda_.8} parent=5 // pred_region
      %s118 = ssub.s32 %s8, 1
      %s119 = smul.u32 8, %s13
      %p120 = scmp.lt.s32.totalorder %s119, 15
      %s121 = scalar_select %p120, %s119, 15
      %s122 = smul.addr %s121, 4
      %s123 = scalar_lea.vmem %s0, %s122
      %p124 = pneg %p34
      %p125 = pneg %p31
      %p126 = pneg %p55
      %p127 = pneg %p52
      %p128 = pneg %p81
      %p129 = pneg %p78
      %s130 = smul.u32 8, %s13
      %p131 = scmp.lt.s32.totalorder %s130, 15
      %s132 = scalar_select %p131, %s130, 15
      %s133 = smul.addr %s132, 4
      %s134 = scalar_lea.vmem %s2, %s133
      %s135 = smul.u32 8, %s13
      %p136 = scmp.lt.s32.totalorder %s135, 15
      %s137 = scalar_select %p136, %s135, 15
      %s138 = smul.addr %s137, 4
      %s139 = scalar_lea.vmem %s0, %s138
      %s140 = smul.u32 8, %s13
      %s141 = smul.u32 8, %s13
      %p142 = scmp.lt.s32.totalorder %s141, 15
      %s143 = scalar_select %p142, %s141, 15
      %s144 = smul.addr %s143, 4
      %s145 = scalar_lea.vmem %s2, %s144
      %s146 = smul.u32 8, %s13
      %v148 = vld [vmem:[%s139] sm:$0xf]
      %v149 = vld [vmem:[%s139 + $0x4] sm:$0xf]
      %v150 = vld [vmem:[%s139 + $0x8] sm:$0xf]
      %v151 = vld [vmem:[%s139 + $0xc] sm:$0xf]
      %v152 = vld [vmem:[%s139 + $0x10] sm:$0xf]
      %v153 = vld [vmem:[%s139 + $0x14] sm:$0xf]
      %v154 = vld [vmem:[%s139 + $0x18] sm:$0xf]
      %v155 = vld [vmem:[%s139 + $0x1c] sm:$0xf]
      %v156 = vld [vmem:[%s1] sm:$0xf]
      %v157 = vld [vmem:[%s1 + $0x4] sm:$0xf]
      %v158 = vld [vmem:[%s1 + $0x8] sm:$0xf]
      %v159 = vld [vmem:[%s1 + $0xc] sm:$0xf]
      %v160 = vld [vmem:[%s1 + $0x10] sm:$0xf]
      %v161 = vld [vmem:[%s1 + $0x14] sm:$0xf]
      %v162 = vld [vmem:[%s1 + $0x18] sm:$0xf]
      %v163 = vld [vmem:[%s1 + $0x1c] sm:$0xf]
      %v164 = vld [vmem:[%s1 + $0x20] sm:$0xf]
      %v165 = vld [vmem:[%s1 + $0x24] sm:$0xf]
      %v166 = vld [vmem:[%s1 + $0x28] sm:$0xf]
      %v167 = vld [vmem:[%s1 + $0x2c] sm:$0xf]
      %v176 = vunpack.c.l.b16 %v148
      %v177 = vunpack.c.l.b16 %v149
      %v178 = vunpack.c.l.b16 %v150
      %v179 = vunpack.c.l.b16 %v151
      %v180 = vunpack.c.l.b16 %v152
      %v181 = vunpack.c.l.b16 %v153
      %v182 = vunpack.c.l.b16 %v154
      %v183 = vunpack.c.l.b16 %v155
      %v184 = vpack.c.b16 %v177, %v176
      %v185 = vpack.c.b16 %v179, %v178
      %v186 = vpack.c.b16 %v181, %v180
      %v187 = vpack.c.b16 %v183, %v182
      %v200 = vunpack.c.l.b16 %v156
      %v201 = vunpack.c.l.b16 %v157
      %v202 = vunpack.c.l.b16 %v158
      %v203 = vunpack.c.l.b16 %v159
      %v204 = vunpack.c.l.b16 %v160
      %v205 = vunpack.c.l.b16 %v161
      %v206 = vunpack.c.l.b16 %v162
      %v207 = vunpack.c.l.b16 %v163
      %v208 = vunpack.c.l.b16 %v164
      %v209 = vunpack.c.l.b16 %v165
      %v210 = vunpack.c.l.b16 %v166
      %v211 = vunpack.c.l.b16 %v167
      %v212 = vpack.c.b16 %v201, %v200
      %v213 = vpack.c.b16 %v203, %v202
      %v214 = vpack.c.b16 %v205, %v204
      %v215 = vpack.c.b16 %v207, %v206
      %v216 = vpack.c.b16 %v209, %v208
      %v217 = vpack.c.b16 %v211, %v210
      %vm224 = vcmask 785408
      %v226 = vsel %vm224, %v184, 0
      %v229 = vsel %vm224, %v185, 0
      %v232 = vsel %vm224, %v186, 0
      %v235 = vsel %vm224, %v187, 0
      %237 = vmatprep.subr.bf16.mxu0 0
      %238 = vmatpush1.bf16.msra.mxu0 0
      %239 = vmatprep.subr.bf16.mxu0 0
      %240 = vmatpush1.bf16.msra.mxu0 0
      %241 = vmatprep.subr.bf16.mxu0 0
      %242 = vmatpush1.bf16.msra.mxu0 %v217
      %243 = vmatprep.subr.bf16.mxu0 0
      %244 = vmatpush1.bf16.msra.mxu0 %v216
      %245 = vmatprep.subr.bf16.mxu0 0
      %246 = vmatpush1.bf16.msra.mxu0 %v215
      %247 = vmatprep.subr.bf16.mxu0 0
      %248 = vmatpush1.bf16.msra.mxu0 %v214
      %249 = vmatprep.subr.bf16.mxu0 0
      %250 = vmatpush1.bf16.msra.mxu0 %v213
      %251 = vmatprep.subr.bf16.mxu0 0
      %252 = vmatpush1.bf16.msra.mxu0 %v212
      %253 = vmatprep.subr.bf16.mxu0 0
      %254 = vmatpush2.bf16.msra.mxu0 0
      %255 = vmatprep.subr.bf16.mxu0 0
      %256 = vmatpush2.bf16.msra.mxu0 0
      %257 = vmatprep.subr.bf16.mxu0 0
      %258 = vmatpush2.bf16.msra.mxu0 0
      %259 = vmatprep.subr.bf16.mxu0 0
      %260 = vmatpush2.bf16.msra.mxu0 0
      %261 = vmatprep.subr.bf16.mxu0 0
      %262 = vmatpush2.bf16.msra.mxu0 0
      %263 = vmatprep.subr.bf16.mxu0 0
      %264 = vmatpush2.bf16.msra.mxu0 0
      %265 = vmatprep.subr.bf16.mxu0 0
      %266 = vmatpush2.bf16.msra.mxu0 0
      %267 = vmatprep.subr.bf16.mxu0 0
      %268 = vmatpush2.bf16.msra.mxu0 0
      %269 = vmatprep.mubr.bf16.mxu0 0
      %270 = vmatmul.mubr.bf16.gmra.mxu0 %v226
      %v271 = vpop.f32.mrf.mxu0
      %v272 = vadd.f32 0.0, %v271
      %v273 = vpop.f32.mrf.mxu0
      %v274 = vpop.f32.mrf.mxu0
      %v275 = vadd.f32 0.0, %v274
      %v276 = vpop.f32.mrf.mxu0
      %277 = vmatprep.mubr.bf16.mxu0 0
      %278 = vmatmul.mubr.bf16.gmra.mxu0 %v229
      %v279 = vpop.f32.mrf.mxu0
      %v280 = vadd.f32 0.0, %v279
      %v281 = vpop.f32.mrf.mxu0
      %v282 = vpop.f32.mrf.mxu0
      %v283 = vadd.f32 0.0, %v282
      %v284 = vpop.f32.mrf.mxu0
      %285 = vmatprep.mubr.bf16.mxu0 0
      %286 = vmatmul.mubr.bf16.gmra.mxu0 %v232
      %v287 = vpop.f32.mrf.mxu0
      %v288 = vadd.f32 0.0, %v287
      %v289 = vpop.f32.mrf.mxu0
      %v290 = vpop.f32.mrf.mxu0
      %v291 = vadd.f32 0.0, %v290
      %v292 = vpop.f32.mrf.mxu0
      %293 = vmatprep.mubr.bf16.mxu0 0
      %294 = vmatmul.mubr.bf16.gmra.mxu0 %v235
      %v295 = vpop.f32.mrf.mxu0
      %v296 = vadd.f32 0.0, %v295
      %v297 = vpop.f32.mrf.mxu0
      %v298 = vpop.f32.mrf.mxu0
      %v299 = vadd.f32 0.0, %v298
      %v300 = vpop.f32.mrf.mxu0
      %301 = vdwg.mxu0
      %v302 = vpack.c.bf16 %v275, %v272
      %v303 = vpack.c.bf16 %v283, %v280
      %v304 = vpack.c.bf16 %v291, %v288
      %v305 = vpack.c.bf16 %v299, %v296
      %v310 = vunpack.c.l.b16 %v302
      %v311 = vunpack.c.h.b16 %v302
      %v312 = vunpack.c.l.b16 %v303
      %v313 = vunpack.c.h.b16 %v303
      %v314 = vunpack.c.l.b16 %v304
      %v315 = vunpack.c.h.b16 %v304
      %v316 = vunpack.c.l.b16 %v305
      %v317 = vunpack.c.h.b16 %v305
      %v318 = vpack.c.b16 %v310, %v310
      %v319 = vpack.c.b16 %v311, %v311
      %v320 = vpack.c.b16 %v312, %v312
      %v321 = vpack.c.b16 %v313, %v313
      %v322 = vpack.c.b16 %v314, %v314
      %v323 = vpack.c.b16 %v315, %v315
      %v324 = vpack.c.b16 %v316, %v316
      %v325 = vpack.c.b16 %v317, %v317
      %vm334 = vcmask 191488
      %335 = vst.msk [vmem:[%s145] sm:$0xf] %vm334, %v318
      %336 = vst.msk [vmem:[%s145 + $0x4] sm:$0xf] %vm334, %v319
      %337 = vst.msk [vmem:[%s145 + $0x8] sm:$0xf] %vm334, %v320
      %338 = vst.msk [vmem:[%s145 + $0xc] sm:$0xf] %vm334, %v321
      %339 = vst.msk [vmem:[%s145 + $0x10] sm:$0xf] %vm334, %v322
      %340 = vst.msk [vmem:[%s145 + $0x14] sm:$0xf] %vm334, %v323
      %341 = vst.msk [vmem:[%s145 + $0x18] sm:$0xf] %vm334, %v324
      %342 = vst.msk [vmem:[%s145 + $0x1c] sm:$0xf] %vm334, %v325
      %s343 = smul.u32 8, %s13
      %p344 = scmp.lt.s32.totalorder %s343, 15
      %s345 = scalar_select %p344, %s343, 15
      %s346 = smul.addr %s345, 4
      %s347 = scalar_lea.vmem %s2, %s346
      // Predicated region
      $region29: #{_lambda_.8} parent=27 // pred_check
        %p348 = pneg %p78
      $region30: #{_lambda_.8} parent=27 // pred_check_branch
        %350 = sbr.rel (%p348) target = $region32
      $region31: #{_lambda_.8} parent=27 // pred_region
        %s351 = smul.u32 8, %s13
      $region32: #{_lambda_.8} parent=27 // pred_fallthru
        _
    $region28: #{_lambda_.8} parent=5 // pred_fallthru
      _
    %p352 = scmp.le.s32.totalorder 2, %s8
    // Predicated region
    $region33: #{_lambda_.8} parent=5 // pred_check
      %p353 = pneg %p352
    $region34: #{_lambda_.8} parent=5 // pred_check_branch
      %355 = sbr.rel (%p353) target = $region36
    $region35: #{_lambda_.8} parent=5 // pred_region
      %s356 = ssub.s32 %s8, 2
      // Predicated region
      $region37: #{_lambda_.8} parent=35 // pred_check
        %p357 = pneg %p84
      $region38: #{_lambda_.8} parent=35 // pred_check_branch
        %359 = sbr.rel (%p357) target = $region40
      $region39: #{_lambda_.8} parent=35 // pred_region
        %s360 = smul.u32 8, %s14
        %p361 = scmp.lt.s32.totalorder %s360, 15
        %s362 = scalar_select %p361, %s360, 15
        %s363 = smul.addr %s362, 4
        %s364 = scalar_lea.vmem %s2, %s363
      $region40: #{_lambda_.8} parent=35 // pred_fallthru
        _
    $region36: #{_lambda_.8} parent=5 // pred_fallthru
      _
  $region6: #{_lambda_.8} parent=0 // loop_footer
    %s12 = sadd.s32 1, %s8
  $region7: #{_lambda_.8} parent=0 // loop_footer_branch
    %7 = sbr.rel target = $region3
  $region8: #{_lambda_.8} parent=0 // loop_exit
    _

// kernel: _lambda_.7
$region0: #{_lambda_.7}
  #allocation0 [shape = 'u32[]', space=smem, size = 0x4, offset = 0x4, fixed_abs, tag = 'smem constant byte address 0x4 - core index']
  #allocation1 [shape = 'u32[144,128]{1,0:T(1,128)}', space=vmem, size = 0x12000, scoped, tag = 'internal scratch']
  %s0 = inlined_call_operand.vmem [shape: bf16[2,36,9,96], index: 0, kind: input, shape index: {}]
  %s1 = inlined_call_operand.vmem [shape: f32[9,1,1,96], index: 1, kind: input, shape index: {}]
  %s2 = inlined_call_operand.vmem [shape: bf16[2,8,8,96], index: 2, kind: output, shape index: {}]
  %s3 = sld [smem:[#allocation0]]
  $region41: #{_lambda_.7} parent=0
    _
  %s5 = ssub.s32 1, %s3
  %s6 = scalar_select 0, %s5, %s3
  loop: start=0, step=1, limit=4
  $region2: #{_lambda_.7} parent=0 // loop_pre_header
    _
  $region3: #{_lambda_.7} parent=0 // loop_header
    %s8 = sphi 0, %s12
    %p9 = scmp.ge.s32.totalorder %s8, 4
    %s18 = sphi 0, %s20
    %s21 = sphi 0, %s18
    %s22 = sphi 0, %s21
    %s38 = sphi 0, %s22
    %s42 = sphi 0, %s42
    %s44 = sphi 0, %s42
    %s45 = sphi 0, %s44
    %s59 = sphi 0, %s45
    %s65 = sphi 0, %s67
    %s68 = sphi 0, %s65
    %s69 = sphi 0, %s68
    %s85 = sphi 0, %s69
  $region4: #{_lambda_.7} parent=0 // loop_header_branch
    %11 = sbr.rel (%p9) target = $region8
  $region5: #{_lambda_.7} parent=0 // loop_body
    %s13 = ssub.s32 %s8, 1
    %s14 = ssub.s32 %s8, 2
    %s15 = sadd.s32 %s8, 1
    %s16 = ssub.s32 %s8, %s15
    %p17 = scmp.eq.s32.totalorder %s16, 0
    %s19 = sadd.s32 %s18, 1
    %s20 = scalar_select %p17, %s18, %s19
    %p23 = pneg %p17
    %p24 = scmp.eq.s32.totalorder %s8, 1
    %p25 = por %p23, %p24
    %p26 = scmp.ne.s32.totalorder %s18, %s21
    %p27 = scmp.eq.s32.totalorder %s8, 0
    %p28 = por %p26, %p27
    %p29 = scmp.ne.s32.totalorder %s18, %s21
    %p30 = scmp.eq.s32.totalorder %s13, 1
    %p31 = por %p29, %p30
    %p32 = scmp.ne.s32.totalorder %s21, %s22
    %p33 = scmp.eq.s32.totalorder %s13, 0
    %p34 = por %p32, %p33
    %p35 = scmp.ne.s32.totalorder %s21, %s22
    %p36 = scmp.eq.s32.totalorder %s14, 1
    %p37 = por %p35, %p36
    %p39 = scmp.ne.s32.totalorder %s22, %s38
    %p40 = scmp.eq.s32.totalorder %s14, 0
    %p41 = por %p39, %p40
    %s43 = sadd.s32 %s42, 1
    %p46 = scmp.eq.s32.totalorder %s8, 1
    %p47 = scmp.ne.s32.totalorder %s42, %s44
    %p48 = scmp.eq.s32.totalorder %s8, 0
    %p49 = por %p47, %p48
    %p50 = scmp.ne.s32.totalorder %s42, %s44
    %p51 = scmp.eq.s32.totalorder %s13, 1
    %p52 = por %p50, %p51
    %p53 = scmp.ne.s32.totalorder %s44, %s45
    %p54 = scmp.eq.s32.totalorder %s13, 0
    %p55 = por %p53, %p54
    %p56 = scmp.ne.s32.totalorder %s44, %s45
    %p57 = scmp.eq.s32.totalorder %s14, 1
    %p58 = por %p56, %p57
    %p60 = scmp.ne.s32.totalorder %s45, %s59
    %p61 = scmp.eq.s32.totalorder %s14, 0
    %p62 = por %p60, %p61
    %s63 = ssub.s32 %s8, %s15
    %p64 = scmp.eq.s32.totalorder %s63, 0
    %s66 = sadd.s32 %s65, 1
    %s67 = scalar_select %p64, %s65, %s66
    %p70 = pneg %p64
    %p71 = scmp.eq.s32.totalorder %s8, 1
    %p72 = por %p70, %p71
    %p73 = scmp.ne.s32.totalorder %s65, %s68
    %p74 = scmp.eq.s32.totalorder %s8, 0
    %p75 = por %p73, %p74
    %p76 = scmp.ne.s32.totalorder %s65, %s68
    %p77 = scmp.eq.s32.totalorder %s13, 1
    %p78 = por %p76, %p77
    %p79 = scmp.ne.s32.totalorder %s68, %s69
    %p80 = scmp.eq.s32.totalorder %s13, 0
    %p81 = por %p79, %p80
    %p82 = scmp.ne.s32.totalorder %s68, %s69
    %p83 = scmp.eq.s32.totalorder %s14, 1
    %p84 = por %p82, %p83
    %p86 = scmp.ne.s32.totalorder %s69, %s85
    %p87 = scmp.eq.s32.totalorder %s14, 0
    %p88 = por %p86, %p87
    %p89 = scmp.le.s32.totalorder 1, %s8
    %p90 = scmp.lt.s32.totalorder %s8, 3
    %p91 = pnand %p89, %p90
    %p92 = pneg %p91
    // Predicated region
    $region9: #{_lambda_.7} parent=5 // pred_check
      _
    $region10: #{_lambda_.7} parent=5 // pred_check_branch
      %94 = sbr.rel (%p91) target = $region12
    $region11: #{_lambda_.7} parent=5 // pred_region
      %s95 = ssub.s32 %s8, 1
      // Predicated region
      $region13: #{_lambda_.7} parent=11 // pred_check
        %p96 = pneg %p55
      $region14: #{_lambda_.7} parent=11 // pred_check_branch
        %98 = sbr.rel (%p96) target = $region16
      $region15: #{_lambda_.7} parent=11 // pred_region
        _
      $region16: #{_lambda_.7} parent=11 // pred_fallthru
        _
    $region12: #{_lambda_.7} parent=5 // pred_fallthru
      _
    %p99 = scmp.lt.s32.totalorder %s8, 2
    // Predicated region
    $region17: #{_lambda_.7} parent=5 // pred_check
      %p100 = pneg %p99
    $region18: #{_lambda_.7} parent=5 // pred_check_branch
      %102 = sbr.rel (%p100) target = $region20
    $region19: #{_lambda_.7} parent=5 // pred_region
      // Predicated region
      $region21: #{_lambda_.7} parent=19 // pred_check
        %p103 = pneg %p28
      $region22: #{_lambda_.7} parent=19 // pred_check_branch
        %105 = sbr.rel (%p103) target = $region24
      $region23: #{_lambda_.7} parent=19 // pred_region
        %p106 = scmp.lt.s32.totalorder %s8, 1
        %s107 = scalar_select %p106, %s8, 1
        %s108 = smul.addr %s107, 72
        %s109 = smul.addr %s108, 4
        %s110 = scalar_lea.vmem %s0, %s109
      $region24: #{_lambda_.7} parent=19 // pred_fallthru
        _
    $region20: #{_lambda_.7} parent=5 // pred_fallthru
      _
    %p111 = scmp.le.s32.totalorder 1, %s8
    %p112 = scmp.lt.s32.totalorder %s8, 3
    %p113 = pnand %p111, %p112
    %p114 = pneg %p113
    // Predicated region
    $region25: #{_lambda_.7} parent=5 // pred_check
      _
    $region26: #{_lambda_.7} parent=5 // pred_check_branch
      %116 = sbr.rel (%p113) target = $region28
    $region27: #{_lambda_.7} parent=5 // pred_region
      %s117 = ssub.s32 %s8, 1
      %p118 = scmp.lt.s32.totalorder %s13, 1
      %s119 = scalar_select %p118, %s13, 1
      %s120 = smul.addr %s119, 72
      %s121 = smul.addr %s120, 4
      %s122 = scalar_lea.vmem %s0, %s121
      %p123 = pneg %p34
      %p124 = pneg %p31
      %p125 = pneg %p55
      %p126 = pneg %p52
      %p127 = pneg %p81
      %p128 = pneg %p78
      %p129 = scmp.lt.s32.totalorder %s13, 1
      %s130 = scalar_select %p129, %s13, 1
      %s131 = smul.addr %s130, 8
      %s132 = smul.addr %s131, 4
      %s133 = scalar_lea.vmem %s2, %s132
      %p134 = scmp.lt.s32.totalorder %s13, 1
      %s135 = scalar_select %p134, %s13, 1
      %s136 = smul.addr %s135, 72
      %s137 = smul.addr %s136, 4
      %s138 = scalar_lea.vmem %s0, %s137
      %p139 = scmp.lt.s32.totalorder %s13, 1
      %s140 = scalar_select %p139, %s13, 1
      %s141 = smul.addr %s140, 8
      %s142 = smul.addr %s141, 4
      %s143 = scalar_lea.vmem %s2, %s142
      %v144 = vld [vmem:[%s138] sm:$0xf]
      %v145 = vld [vmem:[%s138 + $0x8] sm:$0xf]
      %v146 = vld [vmem:[%s138 + $0x10] sm:$0xf]
      %v147 = vld [vmem:[%s138 + $0x18] sm:$0xf]
      %v148 = vld [vmem:[%s138 + $0x20] sm:$0xf]
      %v149 = vld [vmem:[%s138 + $0x28] sm:$0xf]
      %v150 = vld [vmem:[%s138 + $0x30] sm:$0xf]
      %v151 = vld [vmem:[%s138 + $0x38] sm:$0xf]
      %v152 = vunpack.c.l.bf16 %v144
      %v153 = vunpack.c.l.bf16 %v145
      %v154 = vunpack.c.l.bf16 %v146
      %v155 = vunpack.c.l.bf16 %v147
      %v156 = vunpack.c.l.bf16 %v148
      %v157 = vunpack.c.l.bf16 %v149
      %v158 = vunpack.c.l.bf16 %v150
      %v159 = vunpack.c.l.bf16 %v151
      %v160 = vld [vmem:[%s1] sm:$0x1]
      %v162 = vlaneseq
      %v163 = vshrl.u32 %v162, 7
      %v164 = vsub.s32 0, %v163
      %v165 = vrot.slane %v160, %v164
      %v167 = vmul.f32 %v152, %v165
      %v168 = vmul.f32 %v153, %v165
      %v169 = vmul.f32 %v154, %v165
      %v170 = vmul.f32 %v155, %v165
      %v171 = vmul.f32 %v156, %v165
      %v172 = vmul.f32 %v157, %v165
      %v173 = vmul.f32 %v158, %v165
      %v174 = vmul.f32 %v159, %v165
      %v175 = vadd.f32 %v167, 0.0
      %v176 = vadd.f32 %v168, 0.0
      %v177 = vadd.f32 %v169, 0.0
      %v178 = vadd.f32 %v170, 0.0
      %v179 = vadd.f32 %v171, 0.0
      %v180 = vadd.f32 %v172, 0.0
      %v181 = vadd.f32 %v173, 0.0
      %v182 = vadd.f32 %v174, 0.0
      %s183 = scalar_lea.vmem %s138, 72
      %v184 = vld [vmem:[%s183] sm:$0xf]
      %v185 = vld [vmem:[%s183 + $0x8] sm:$0xf]
      %v186 = vld [vmem:[%s183 + $0x10] sm:$0xf]
      %v187 = vld [vmem:[%s183 + $0x18] sm:$0xf]
      %v188 = vld [vmem:[%s183 + $0x20] sm:$0xf]
      %v189 = vld [vmem:[%s183 + $0x28] sm:$0xf]
      %v190 = vld [vmem:[%s183 + $0x30] sm:$0xf]
      %v191 = vld [vmem:[%s183 + $0x38] sm:$0xf]
      %v192 = vunpack.c.l.bf16 %v184
      %v193 = vunpack.c.l.bf16 %v185
      %v194 = vunpack.c.l.bf16 %v186
      %v195 = vunpack.c.l.bf16 %v187
      %v196 = vunpack.c.l.bf16 %v188
      %v197 = vunpack.c.l.bf16 %v189
      %v198 = vunpack.c.l.bf16 %v190
      %v199 = vunpack.c.l.bf16 %v191
      %s200 = scalar_lea.vmem %s1, 1
      %v201 = vld [vmem:[%s200] sm:$0x1]
      %v203 = vlaneseq
      %v204 = vshrl.u32 %v203, 7
      %v205 = vsub.s32 0, %v204
      %v206 = vrot.slane %v201, %v205
      %v208 = vmul.f32 %v192, %v206
      %v209 = vmul.f32 %v193, %v206
      %v210 = vmul.f32 %v194, %v206
      %v211 = vmul.f32 %v195, %v206
      %v212 = vmul.f32 %v196, %v206
      %v213 = vmul.f32 %v197, %v206
      %v214 = vmul.f32 %v198, %v206
      %v215 = vmul.f32 %v199, %v206
      %v216 = vadd.f32 %v175, %v208
      %v217 = vadd.f32 %v176, %v209
      %v218 = vadd.f32 %v177, %v210
      %v219 = vadd.f32 %v178, %v211
      %v220 = vadd.f32 %v179, %v212
      %v221 = vadd.f32 %v180, %v213
      %v222 = vadd.f32 %v181, %v214
      %v223 = vadd.f32 %v182, %v215
      %v224 = vld [vmem:[%s138 + $0x4] sm:$0x1]
      %v225 = vld [vmem:[%s138 + $0xc] sm:$0x1]
      %v226 = vld [vmem:[%s138 + $0x14] sm:$0x1]
      %v227 = vld [vmem:[%s138 + $0x1c] sm:$0x1]
      %v228 = vld [vmem:[%s138 + $0x24] sm:$0x1]
      %v229 = vld [vmem:[%s138 + $0x2c] sm:$0x1]
      %v230 = vld [vmem:[%s138 + $0x34] sm:$0x1]
      %v231 = vld [vmem:[%s138 + $0x3c] sm:$0x1]
      %v232 = vunpack.c.l.bf16 %v224
      %v233 = vunpack.c.l.bf16 %v225
      %v234 = vunpack.c.l.bf16 %v226
      %v235 = vunpack.c.l.bf16 %v227
      %v236 = vunpack.c.l.bf16 %v228
      %v237 = vunpack.c.l.bf16 %v229
      %v238 = vunpack.c.l.bf16 %v230
      %v239 = vunpack.c.l.bf16 %v231
      %s240 = scalar_lea.vmem %s1, 2
      %v241 = vld [vmem:[%s240] sm:$0x1]
      %v243 = vlaneseq
      %v244 = vshrl.u32 %v243, 7
      %v245 = vsub.s32 0, %v244
      %v246 = vrot.slane %v241, %v245
      %v248 = vmul.f32 %v152, %v246
      %v249 = vmul.f32 %v232, %v246
      %v250 = vmul.f32 %v153, %v246
      %v251 = vmul.f32 %v233, %v246
      %v252 = vmul.f32 %v154, %v246
      %v253 = vmul.f32 %v234, %v246
      %v254 = vmul.f32 %v155, %v246
      %v255 = vmul.f32 %v235, %v246
      %v256 = vmul.f32 %v156, %v246
      %v257 = vmul.f32 %v236, %v246
      %v258 = vmul.f32 %v157, %v246
      %v259 = vmul.f32 %v237, %v246
      %v260 = vmul.f32 %v158, %v246
      %v261 = vmul.f32 %v238, %v246
      %v262 = vmul.f32 %v159, %v246
      %v263 = vmul.f32 %v239, %v246
      %vm280 = vcmask 1046528
      %v281 = vrot.slane %v248, 1
      %v282 = vrot.slane %v249, 1
      %v283 = vsel %vm280, %v281, %v282
      %v284 = vrot.slane %v250, 1
      %v285 = vrot.slane %v251, 1
      %v286 = vsel %vm280, %v284, %v285
      %v287 = vrot.slane %v252, 1
      %v288 = vrot.slane %v253, 1
      %v289 = vsel %vm280, %v287, %v288
      %v290 = vrot.slane %v254, 1
      %v291 = vrot.slane %v255, 1
      %v292 = vsel %vm280, %v290, %v291
      %v293 = vrot.slane %v256, 1
      %v294 = vrot.slane %v257, 1
      %v295 = vsel %vm280, %v293, %v294
      %v296 = vrot.slane %v258, 1
      %v297 = vrot.slane %v259, 1
      %v298 = vsel %vm280, %v296, %v297
      %v299 = vrot.slane %v260, 1
      %v300 = vrot.slane %v261, 1
      %v301 = vsel %vm280, %v299, %v300
      %v302 = vrot.slane %v262, 1
      %v303 = vrot.slane %v263, 1
      %v304 = vsel %vm280, %v302, %v303
      %v313 = vadd.f32 %v216, %v283
      %v314 = vadd.f32 %v217, %v286
      %v315 = vadd.f32 %v218, %v289
      %v316 = vadd.f32 %v219, %v292
      %v317 = vadd.f32 %v220, %v295
      %v318 = vadd.f32 %v221, %v298
      %v319 = vadd.f32 %v222, %v301
      %v320 = vadd.f32 %v223, %v304
      %s321 = scalar_lea.vmem %s138, 144
      %v322 = vld [vmem:[%s321] sm:$0xf]
      %v323 = vld [vmem:[%s321 + $0x8] sm:$0xf]
      %v324 = vld [vmem:[%s321 + $0x10] sm:$0xf]
      %v325 = vld [vmem:[%s321 + $0x18] sm:$0xf]
      %v326 = vld [vmem:[%s321 + $0x20] sm:$0xf]
      %v327 = vld [vmem:[%s321 + $0x28] sm:$0xf]
      %v328 = vld [vmem:[%s321 + $0x30] sm:$0xf]
      %v329 = vld [vmem:[%s321 + $0x38] sm:$0xf]
      %v330 = vunpack.c.l.bf16 %v322
      %v331 = vunpack.c.l.bf16 %v323
      %v332 = vunpack.c.l.bf16 %v324
      %v333 = vunpack.c.l.bf16 %v325
      %v334 = vunpack.c.l.bf16 %v326
      %v335 = vunpack.c.l.bf16 %v327
      %v336 = vunpack.c.l.bf16 %v328
      %v337 = vunpack.c.l.bf16 %v329
      %s338 = scalar_lea.vmem %s1, 3
      %v339 = vld [vmem:[%s338] sm:$0x1]
      %v341 = vlaneseq
      %v342 = vshrl.u32 %v341, 7
      %v343 = vsub.s32 0, %v342
      %v344 = vrot.slane %v339, %v343
      %v346 = vmul.f32 %v330, %v344
      %v347 = vmul.f32 %v331, %v344
      %v348 = vmul.f32 %v332, %v344
      %v349 = vmul.f32 %v333, %v344
      %v350 = vmul.f32 %v334, %v344
      %v351 = vmul.f32 %v335, %v344
      %v352 = vmul.f32 %v336, %v344
      %v353 = vmul.f32 %v337, %v344
      %v354 = vadd.f32 %v313, %v346
      %v355 = vadd.f32 %v314, %v347
      %v356 = vadd.f32 %v315, %v348
      %v357 = vadd.f32 %v316, %v349
      %v358 = vadd.f32 %v317, %v350
      %v359 = vadd.f32 %v318, %v351
      %v360 = vadd.f32 %v319, %v352
      %v361 = vadd.f32 %v320, %v353
      %s362 = scalar_lea.vmem %s138, 216
      %v363 = vld [vmem:[%s362] sm:$0xf]
      %v364 = vld [vmem:[%s362 + $0x8] sm:$0xf]
      %v365 = vld [vmem:[%s362 + $0x10] sm:$0xf]
      %v366 = vld [vmem:[%s362 + $0x18] sm:$0xf]
      %v367 = vld [vmem:[%s362 + $0x20] sm:$0xf]
      %v368 = vld [vmem:[%s362 + $0x28] sm:$0xf]
      %v369 = vld [vmem:[%s362 + $0x30] sm:$0xf]
      %v370 = vld [vmem:[%s362 + $0x38] sm:$0xf]
      %v371 = vunpack.c.l.bf16 %v363
      %v372 = vunpack.c.l.bf16 %v364
      %v373 = vunpack.c.l.bf16 %v365
      %v374 = vunpack.c.l.bf16 %v366
      %v375 = vunpack.c.l.bf16 %v367
      %v376 = vunpack.c.l.bf16 %v368
      %v377 = vunpack.c.l.bf16 %v369
      %v378 = vunpack.c.l.bf16 %v370
      %s379 = scalar_lea.vmem %s1, 4
      %v380 = vld [vmem:[%s379] sm:$0x1]
      %v382 = vlaneseq
      %v383 = vshrl.u32 %v382, 7
      %v384 = vsub.s32 0, %v383
      %v385 = vrot.slane %v380, %v384
      %v387 = vmul.f32 %v371, %v385
      %v388 = vmul.f32 %v372, %v385
      %v389 = vmul.f32 %v373, %v385
      %v390 = vmul.f32 %v374, %v385
      %v391 = vmul.f32 %v375, %v385
      %v392 = vmul.f32 %v376, %v385
      %v393 = vmul.f32 %v377, %v385
      %v394 = vmul.f32 %v378, %v385
      %v395 = vadd.f32 %v354, %v387
      %v396 = vadd.f32 %v355, %v388
      %v397 = vadd.f32 %v356, %v389
      %v398 = vadd.f32 %v357, %v390
      %v399 = vadd.f32 %v358, %v391
      %v400 = vadd.f32 %v359, %v392
      %v401 = vadd.f32 %v360, %v393
      %v402 = vadd.f32 %v361, %v394
      %v403 = vld [vmem:[%s321 + $0x4] sm:$0x1]
      %v404 = vld [vmem:[%s321 + $0xc] sm:$0x1]
      %v405 = vld [vmem:[%s321 + $0x14] sm:$0x1]
      %v406 = vld [vmem:[%s321 + $0x1c] sm:$0x1]
      %v407 = vld [vmem:[%s321 + $0x24] sm:$0x1]
      %v408 = vld [vmem:[%s321 + $0x2c] sm:$0x1]
      %v409 = vld [vmem:[%s321 + $0x34] sm:$0x1]
      %v410 = vld [vmem:[%s321 + $0x3c] sm:$0x1]
      %v411 = vunpack.c.l.bf16 %v403
      %v412 = vunpack.c.l.bf16 %v404
      %v413 = vunpack.c.l.bf16 %v405
      %v414 = vunpack.c.l.bf16 %v406
      %v415 = vunpack.c.l.bf16 %v407
      %v416 = vunpack.c.l.bf16 %v408
      %v417 = vunpack.c.l.bf16 %v409
      %v418 = vunpack.c.l.bf16 %v410
      %s419 = scalar_lea.vmem %s1, 5
      %v420 = vld [vmem:[%s419] sm:$0x1]
      %v422 = vlaneseq
      %v423 = vshrl.u32 %v422, 7
      %v424 = vsub.s32 0, %v423
      %v425 = vrot.slane %v420, %v424
      %v427 = vmul.f32 %v330, %v425
      %v428 = vmul.f32 %v411, %v425
      %v429 = vmul.f32 %v331, %v425
      %v430 = vmul.f32 %v412, %v425
      %v431 = vmul.f32 %v332, %v425
      %v432 = vmul.f32 %v413, %v425
      %v433 = vmul.f32 %v333, %v425
      %v434 = vmul.f32 %v414, %v425
      %v435 = vmul.f32 %v334, %v425
      %v436 = vmul.f32 %v415, %v425
      %v437 = vmul.f32 %v335, %v425
      %v438 = vmul.f32 %v416, %v425
      %v439 = vmul.f32 %v336, %v425
      %v440 = vmul.f32 %v417, %v425
      %v441 = vmul.f32 %v337, %v425
      %v442 = vmul.f32 %v418, %v425
      %v459 = vrot.slane %v427, 1
      %v460 = vrot.slane %v428, 1
      %v461 = vsel %vm280, %v459, %v460
      %v462 = vrot.slane %v429, 1
      %v463 = vrot.slane %v430, 1
      %v464 = vsel %vm280, %v462, %v463
      %v465 = vrot.slane %v431, 1
      %v466 = vrot.slane %v432, 1
      %v467 = vsel %vm280, %v465, %v466
      %v468 = vrot.slane %v433, 1
      %v469 = vrot.slane %v434, 1
      %v470 = vsel %vm280, %v468, %v469
      %v471 = vrot.slane %v435, 1
      %v472 = vrot.slane %v436, 1
      %v473 = vsel %vm280, %v471, %v472
      %v474 = vrot.slane %v437, 1
      %v475 = vrot.slane %v438, 1
      %v476 = vsel %vm280, %v474, %v475
      %v477 = vrot.slane %v439, 1
      %v478 = vrot.slane %v440, 1
      %v479 = vsel %vm280, %v477, %v478
      %v480 = vrot.slane %v441, 1
      %v481 = vrot.slane %v442, 1
      %v482 = vsel %vm280, %v480, %v481
      %v491 = vadd.f32 %v395, %v461
      %v492 = vadd.f32 %v396, %v464
      %v493 = vadd.f32 %v397, %v467
      %v494 = vadd.f32 %v398, %v470
      %v495 = vadd.f32 %v399, %v473
      %v496 = vadd.f32 %v400, %v476
      %v497 = vadd.f32 %v401, %v479
      %v498 = vadd.f32 %v402, %v482
      %s499 = scalar_lea.vmem %s138, 8
      %v500 = vld [vmem:[%s499] sm:$0xf]
      %v501 = vld [vmem:[%s499 + $0x8] sm:$0xf]
      %v502 = vld [vmem:[%s499 + $0x10] sm:$0xf]
      %v503 = vld [vmem:[%s499 + $0x18] sm:$0xf]
      %v504 = vld [vmem:[%s499 + $0x20] sm:$0xf]
      %v505 = vld [vmem:[%s499 + $0x28] sm:$0xf]
      %v506 = vld [vmem:[%s499 + $0x30] sm:$0xf]
      %v507 = vld [vmem:[%s499 + $0x38] sm:$0xf]
      %v508 = vunpack.c.l.bf16 %v500
      %v509 = vunpack.c.l.bf16 %v501
      %v510 = vunpack.c.l.bf16 %v502
      %v511 = vunpack.c.l.bf16 %v503
      %v512 = vunpack.c.l.bf16 %v504
      %v513 = vunpack.c.l.bf16 %v505
      %v514 = vunpack.c.l.bf16 %v506
      %v515 = vunpack.c.l.bf16 %v507
      %s516 = scalar_lea.vmem %s1, 6
      %v517 = vld [vmem:[%s516] sm:$0x1]
      %v519 = vlaneseq
      %v520 = vshrl.u32 %v519, 7
      %v521 = vsub.s32 0, %v520
      %v522 = vrot.slane %v517, %v521
      %v524 = vmul.f32 %v508, %v522
      %v525 = vmul.f32 %v509, %v522
      %v526 = vmul.f32 %v510, %v522
      %v527 = vmul.f32 %v511, %v522
      %v528 = vmul.f32 %v512, %v522
      %v529 = vmul.f32 %v513, %v522
      %v530 = vmul.f32 %v514, %v522
      %v531 = vmul.f32 %v515, %v522
      %v532 = vadd.f32 %v491, %v524
      %v533 = vadd.f32 %v492, %v525
      %v534 = vadd.f32 %v493, %v526
      %v535 = vadd.f32 %v494, %v527
      %v536 = vadd.f32 %v495, %v528
      %v537 = vadd.f32 %v496, %v529
      %v538 = vadd.f32 %v497, %v530
      %v539 = vadd.f32 %v498, %v531
      %s540 = scalar_lea.vmem %s138, 80
      %v541 = vld [vmem:[%s540] sm:$0xf]
      %v542 = vld [vmem:[%s540 + $0x8] sm:$0xf]
      %v543 = vld [vmem:[%s540 + $0x10] sm:$0xf]
      %v544 = vld [vmem:[%s540 + $0x18] sm:$0xf]
      %v545 = vld [vmem:[%s540 + $0x20] sm:$0xf]
      %v546 = vld [vmem:[%s540 + $0x28] sm:$0xf]
      %v547 = vld [vmem:[%s540 + $0x30] sm:$0xf]
      %v548 = vld [vmem:[%s540 + $0x38] sm:$0xf]
      %v549 = vunpack.c.l.bf16 %v541
      %v550 = vunpack.c.l.bf16 %v542
      %v551 = vunpack.c.l.bf16 %v543
      %v552 = vunpack.c.l.bf16 %v544
      %v553 = vunpack.c.l.bf16 %v545
      %v554 = vunpack.c.l.bf16 %v546
      %v555 = vunpack.c.l.bf16 %v547
      %v556 = vunpack.c.l.bf16 %v548
      %s557 = scalar_lea.vmem %s1, 7
      %v558 = vld [vmem:[%s557] sm:$0x1]
      %v560 = vlaneseq
      %v561 = vshrl.u32 %v560, 7
      %v562 = vsub.s32 0, %v561
      %v563 = vrot.slane %v558, %v562
      %v565 = vmul.f32 %v549, %v563
      %v566 = vmul.f32 %v550, %v563
      %v567 = vmul.f32 %v551, %v563
      %v568 = vmul.f32 %v552, %v563
      %v569 = vmul.f32 %v553, %v563
      %v570 = vmul.f32 %v554, %v563
      %v571 = vmul.f32 %v555, %v563
      %v572 = vmul.f32 %v556, %v563
      %v573 = vadd.f32 %v532, %v565
      %v574 = vadd.f32 %v533, %v566
      %v575 = vadd.f32 %v534, %v567
      %v576 = vadd.f32 %v535, %v568
      %v577 = vadd.f32 %v536, %v569
      %v578 = vadd.f32 %v537, %v570
      %v579 = vadd.f32 %v538, %v571
      %v580 = vadd.f32 %v539, %v572
      %v581 = vld [vmem:[%s499 + $0x4] sm:$0x1]
      %v582 = vld [vmem:[%s499 + $0xc] sm:$0x1]
      %v583 = vld [vmem:[%s499 + $0x14] sm:$0x1]
      %v584 = vld [vmem:[%s499 + $0x1c] sm:$0x1]
      %v585 = vld [vmem:[%s499 + $0x24] sm:$0x1]
      %v586 = vld [vmem:[%s499 + $0x2c] sm:$0x1]
      %v587 = vld [vmem:[%s499 + $0x34] sm:$0x1]
      %v588 = vld [vmem:[%s499 + $0x3c] sm:$0x1]
      %v589 = vunpack.c.l.bf16 %v581
      %v590 = vunpack.c.l.bf16 %v582
      %v591 = vunpack.c.l.bf16 %v583
      %v592 = vunpack.c.l.bf16 %v584
      %v593 = vunpack.c.l.bf16 %v585
      %v594 = vunpack.c.l.bf16 %v586
      %v595 = vunpack.c.l.bf16 %v587
      %v596 = vunpack.c.l.bf16 %v588
      %s597 = scalar_lea.vmem %s1, 8
      %v598 = vld [vmem:[%s597] sm:$0x1]
      %v600 = vlaneseq
      %v601 = vshrl.u32 %v600, 7
      %v602 = vsub.s32 0, %v601
      %v603 = vrot.slane %v598, %v602
      %v605 = vmul.f32 %v508, %v603
      %v606 = vmul.f32 %v589, %v603
      %v607 = vmul.f32 %v509, %v603
      %v608 = vmul.f32 %v590, %v603
      %v609 = vmul.f32 %v510, %v603
      %v610 = vmul.f32 %v591, %v603
      %v611 = vmul.f32 %v511, %v603
      %v612 = vmul.f32 %v592, %v603
      %v613 = vmul.f32 %v512, %v603
      %v614 = vmul.f32 %v593, %v603
      %v615 = vmul.f32 %v513, %v603
      %v616 = vmul.f32 %v594, %v603
      %v617 = vmul.f32 %v514, %v603
      %v618 = vmul.f32 %v595, %v603
      %v619 = vmul.f32 %v515, %v603
      %v620 = vmul.f32 %v596, %v603
      %v637 = vrot.slane %v605, 1
      %v638 = vrot.slane %v606, 1
      %v639 = vsel %vm280, %v637, %v638
      %v640 = vrot.slane %v607, 1
      %v641 = vrot.slane %v608, 1
      %v642 = vsel %vm280, %v640, %v641
      %v643 = vrot.slane %v609, 1
      %v644 = vrot.slane %v610, 1
      %v645 = vsel %vm280, %v643, %v644
      %v646 = vrot.slane %v611, 1
      %v647 = vrot.slane %v612, 1
      %v648 = vsel %vm280, %v646, %v647
      %v649 = vrot.slane %v613, 1
      %v650 = vrot.slane %v614, 1
      %v651 = vsel %vm280, %v649, %v650
      %v652 = vrot.slane %v615, 1
      %v653 = vrot.slane %v616, 1
      %v654 = vsel %vm280, %v652, %v653
      %v655 = vrot.slane %v617, 1
      %v656 = vrot.slane %v618, 1
      %v657 = vsel %vm280, %v655, %v656
      %v658 = vrot.slane %v619, 1
      %v659 = vrot.slane %v620, 1
      %v660 = vsel %vm280, %v658, %v659
      %v669 = vadd.f32 %v573, %v639
      %v670 = vadd.f32 %v574, %v642
      %v671 = vadd.f32 %v575, %v645
      %v672 = vadd.f32 %v576, %v648
      %v673 = vadd.f32 %v577, %v651
      %v674 = vadd.f32 %v578, %v654
      %v675 = vadd.f32 %v579, %v657
      %v676 = vadd.f32 %v580, %v660
      %v677 = vmax.f32 %v669, 0.0
      %v678 = vmax.f32 %v670, 0.0
      %v679 = vmax.f32 %v671, 0.0
      %v680 = vmax.f32 %v672, 0.0
      %v681 = vmax.f32 %v673, 0.0
      %v682 = vmax.f32 %v674, 0.0
      %v683 = vmax.f32 %v675, 0.0
      %v684 = vmax.f32 %v676, 0.0
      %v685 = vmin.f32 %v677, 6.0
      %v686 = vmin.f32 %v678, 6.0
      %v687 = vmin.f32 %v679, 6.0
      %v688 = vmin.f32 %v680, 6.0
      %v689 = vmin.f32 %v681, 6.0
      %v690 = vmin.f32 %v682, 6.0
      %v691 = vmin.f32 %v683, 6.0
      %v692 = vmin.f32 %v684, 6.0
      %v693 = vpack.c.bf16 %v685, %v685
      %v694 = vpack.c.bf16 %v686, %v686
      %v695 = vpack.c.bf16 %v687, %v687
      %v696 = vpack.c.bf16 %v688, %v688
      %v697 = vpack.c.bf16 %v689, %v689
      %v698 = vpack.c.bf16 %v690, %v690
      %v699 = vpack.c.bf16 %v691, %v691
      %v700 = vpack.c.bf16 %v692, %v692
      %vm701 = vcmask 781312
      %702 = vst.msk [vmem:[%s143] sm:$0xf] %vm701, %v693
      %703 = vst.msk [vmem:[%s143 + $0x4] sm:$0xf] %vm701, %v694
      %704 = vst.msk [vmem:[%s143 + $0x8] sm:$0xf] %vm701, %v695
      %705 = vst.msk [vmem:[%s143 + $0xc] sm:$0xf] %vm701, %v696
      %706 = vst.msk [vmem:[%s143 + $0x10] sm:$0xf] %vm701, %v697
      %707 = vst.msk [vmem:[%s143 + $0x14] sm:$0xf] %vm701, %v698
      %708 = vst.msk [vmem:[%s143 + $0x18] sm:$0xf] %vm701, %v699
      %709 = vst.msk [vmem:[%s143 + $0x1c] sm:$0xf] %vm701, %v700
      %p710 = scmp.lt.s32.totalorder %s13, 1
      %s711 = scalar_select %p710, %s13, 1
      %s712 = smul.addr %s711, 8
      %s713 = smul.addr %s712, 4
      %s714 = scalar_lea.vmem %s2, %s713
      // Predicated region
      $region29: #{_lambda_.7} parent=27 // pred_check
        %p715 = pneg %p78
      $region30: #{_lambda_.7} parent=27 // pred_check_branch
        %717 = sbr.rel (%p715) target = $region32
      $region31: #{_lambda_.7} parent=27 // pred_region
        _
      $region32: #{_lambda_.7} parent=27 // pred_fallthru
        _
    $region28: #{_lambda_.7} parent=5 // pred_fallthru
      _
    %p718 = scmp.le.s32.totalorder 2, %s8
    // Predicated region
    $region33: #{_lambda_.7} parent=5 // pred_check
      %p719 = pneg %p718
    $region34: #{_lambda_.7} parent=5 // pred_check_branch
      %721 = sbr.rel (%p719) target = $region36
    $region35: #{_lambda_.7} parent=5 // pred_region
      %s722 = ssub.s32 %s8, 2
      // Predicated region
      $region37: #{_lambda_.7} parent=35 // pred_check
        %p723 = pneg %p84
      $region38: #{_lambda_.7} parent=35 // pred_check_branch
        %725 = sbr.rel (%p723) target = $region40
      $region39: #{_lambda_.7} parent=35 // pred_region
        %p726 = scmp.lt.s32.totalorder %s14, 1
        %s727 = scalar_select %p726, %s14, 1
        %s728 = smul.addr %s727, 8
        %s729 = smul.addr %s728, 4
        %s730 = scalar_lea.vmem %s2, %s729
      $region40: #{_lambda_.7} parent=35 // pred_fallthru
        _
    $region36: #{_lambda_.7} parent=5 // pred_fallthru
      _
  $region6: #{_lambda_.7} parent=0 // loop_footer
    %s12 = sadd.s32 1, %s8
  $region7: #{_lambda_.7} parent=0 // loop_footer_branch
    %7 = sbr.rel target = $region3
  $region8: #{_lambda_.7} parent=0 // loop_exit
    _

// kernel: _lambda_.9
$region0: #{_lambda_.9}
  #allocation0 [shape = 'u32[]', space=smem, size = 0x4, offset = 0x4, fixed_abs, tag = 'smem constant byte address 0x4 - core index']
  #allocation1 [shape = 'u32[144,128]{1,0:T(1,128)}', space=vmem, size = 0x12000, scoped, tag = 'internal scratch']
  %s0 = inlined_call_operand.vmem [shape: bf16[128,24], index: 0, kind: input, shape index: {}]
  %s1 = inlined_call_operand.vmem [shape: bf16[24,144], index: 1, kind: input, shape index: {}]
  %s2 = inlined_call_operand.vmem [shape: bf16[128,144], index: 2, kind: output, shape index: {}]
  %s3 = sld [smem:[#allocation0]]
  $region41: #{_lambda_.9} parent=0
    _
  %s5 = ssub.s32 1, %s3
  %s6 = scalar_select 0, %s5, %s3
  loop: start=0, step=1, limit=4
  $region2: #{_lambda_.9} parent=0 // loop_pre_header
    _
  $region3: #{_lambda_.9} parent=0 // loop_header
    %s8 = sphi 0, %s12
    %p9 = scmp.ge.s32.totalorder %s8, 4
    %s18 = sphi 0, %s20
    %s21 = sphi 0, %s18
    %s22 = sphi 0, %s21
    %s38 = sphi 0, %s22
    %s42 = sphi 0, %s42
    %s44 = sphi 0, %s42
    %s45 = sphi 0, %s44
    %s59 = sphi 0, %s45
    %s65 = sphi 0, %s67
    %s68 = sphi 0, %s65
    %s69 = sphi 0, %s68
    %s85 = sphi 0, %s69
  $region4: #{_lambda_.9} parent=0 // loop_header_branch
    %11 = sbr.rel (%p9) target = $region8
  $region5: #{_lambda_.9} parent=0 // loop_body
    %s13 = ssub.s32 %s8, 1
    %s14 = ssub.s32 %s8, 2
    %s15 = sadd.s32 %s8, 1
    %s16 = ssub.s32 %s8, %s15
    %p17 = scmp.eq.s32.totalorder %s16, 0
    %s19 = sadd.s32 %s18, 1
    %s20 = scalar_select %p17, %s18, %s19
    %p23 = pneg %p17
    %p24 = scmp.eq.s32.totalorder %s8, 1
    %p25 = por %p23, %p24
    %p26 = scmp.ne.s32.totalorder %s18, %s21
    %p27 = scmp.eq.s32.totalorder %s8, 0
    %p28 = por %p26, %p27
    %p29 = scmp.ne.s32.totalorder %s18, %s21
    %p30 = scmp.eq.s32.totalorder %s13, 1
    %p31 = por %p29, %p30
    %p32 = scmp.ne.s32.totalorder %s21, %s22
    %p33 = scmp.eq.s32.totalorder %s13, 0
    %p34 = por %p32, %p33
    %p35 = scmp.ne.s32.totalorder %s21, %s22
    %p36 = scmp.eq.s32.totalorder %s14, 1
    %p37 = por %p35, %p36
    %p39 = scmp.ne.s32.totalorder %s22, %s38
    %p40 = scmp.eq.s32.totalorder %s14, 0
    %p41 = por %p39, %p40
    %s43 = sadd.s32 %s42, 1
    %p46 = scmp.eq.s32.totalorder %s8, 1
    %p47 = scmp.ne.s32.totalorder %s42, %s44
    %p48 = scmp.eq.s32.totalorder %s8, 0
    %p49 = por %p47, %p48
    %p50 = scmp.ne.s32.totalorder %s42, %s44
    %p51 = scmp.eq.s32.totalorder %s13, 1
    %p52 = por %p50, %p51
    %p53 = scmp.ne.s32.totalorder %s44, %s45
    %p54 = scmp.eq.s32.totalorder %s13, 0
    %p55 = por %p53, %p54
    %p56 = scmp.ne.s32.totalorder %s44, %s45
    %p57 = scmp.eq.s32.totalorder %s14, 1
    %p58 = por %p56, %p57
    %p60 = scmp.ne.s32.totalorder %s45, %s59
    %p61 = scmp.eq.s32.totalorder %s14, 0
    %p62 = por %p60, %p61
    %s63 = ssub.s32 %s8, %s15
    %p64 = scmp.eq.s32.totalorder %s63, 0
    %s66 = sadd.s32 %s65, 1
    %s67 = scalar_select %p64, %s65, %s66
    %p70 = pneg %p64
    %p71 = scmp.eq.s32.totalorder %s8, 1
    %p72 = por %p70, %p71
    %p73 = scmp.ne.s32.totalorder %s65, %s68
    %p74 = scmp.eq.s32.totalorder %s8, 0
    %p75 = por %p73, %p74
    %p76 = scmp.ne.s32.totalorder %s65, %s68
    %p77 = scmp.eq.s32.totalorder %s13, 1
    %p78 = por %p76, %p77
    %p79 = scmp.ne.s32.totalorder %s68, %s69
    %p80 = scmp.eq.s32.totalorder %s13, 0
    %p81 = por %p79, %p80
    %p82 = scmp.ne.s32.totalorder %s68, %s69
    %p83 = scmp.eq.s32.totalorder %s14, 1
    %p84 = por %p82, %p83
    %p86 = scmp.ne.s32.totalorder %s69, %s85
    %p87 = scmp.eq.s32.totalorder %s14, 0
    %p88 = por %p86, %p87
    %p89 = scmp.le.s32.totalorder 1, %s8
    %p90 = scmp.lt.s32.totalorder %s8, 3
    %p91 = pnand %p89, %p90
    %p92 = pneg %p91
    // Predicated region
    $region9: #{_lambda_.9} parent=5 // pred_check
      _
    $region10: #{_lambda_.9} parent=5 // pred_check_branch
      %94 = sbr.rel (%p91) target = $region12
    $region11: #{_lambda_.9} parent=5 // pred_region
      %s95 = ssub.s32 %s8, 1
      // Predicated region
      $region13: #{_lambda_.9} parent=11 // pred_check
        %p96 = pneg %p55
      $region14: #{_lambda_.9} parent=11 // pred_check_branch
        %98 = sbr.rel (%p96) target = $region16
      $region15: #{_lambda_.9} parent=11 // pred_region
        _
      $region16: #{_lambda_.9} parent=11 // pred_fallthru
        _
    $region12: #{_lambda_.9} parent=5 // pred_fallthru
      _
    %p99 = scmp.lt.s32.totalorder %s8, 2
    // Predicated region
    $region17: #{_lambda_.9} parent=5 // pred_check
      %p100 = pneg %p99
    $region18: #{_lambda_.9} parent=5 // pred_check_branch
      %102 = sbr.rel (%p100) target = $region20
    $region19: #{_lambda_.9} parent=5 // pred_region
      // Predicated region
      $region21: #{_lambda_.9} parent=19 // pred_check
        %p103 = pneg %p28
      $region22: #{_lambda_.9} parent=19 // pred_check_branch
        %105 = sbr.rel (%p103) target = $region24
      $region23: #{_lambda_.9} parent=19 // pred_region
        %s106 = smul.u32 8, %s8
        %p107 = scmp.lt.s32.totalorder %s106, 15
        %s108 = scalar_select %p107, %s106, 15
        %s109 = smul.addr %s108, 4
        %s110 = scalar_lea.vmem %s0, %s109
        %s111 = smul.u32 8, %s8
      $region24: #{_lambda_.9} parent=19 // pred_fallthru
        _
    $region20: #{_lambda_.9} parent=5 // pred_fallthru
      _
    %p112 = scmp.le.s32.totalorder 1, %s8
    %p113 = scmp.lt.s32.totalorder %s8, 3
    %p114 = pnand %p112, %p113
    %p115 = pneg %p114
    // Predicated region
    $region25: #{_lambda_.9} parent=5 // pred_check
      _
    $region26: #{_lambda_.9} parent=5 // pred_check_branch
      %117 = sbr.rel (%p114) target = $region28
    $region27: #{_lambda_.9} parent=5 // pred_region
      %s118 = ssub.s32 %s8, 1
      %s119 = smul.u32 8, %s13
      %p120 = scmp.lt.s32.totalorder %s119, 15
      %s121 = scalar_select %p120, %s119, 15
      %s122 = smul.addr %s121, 4
      %s123 = scalar_lea.vmem %s0, %s122
      %p124 = pneg %p34
      %p125 = pneg %p31
      %p126 = pneg %p55
      %p127 = pneg %p52
      %p128 = pneg %p81
      %p129 = pneg %p78
      %s130 = smul.u32 8, %s13
      %p131 = scmp.lt.s32.totalorder %s130, 15
      %s132 = scalar_select %p131, %s130, 15
      %s133 = smul.addr %s132, 2
      %s134 = smul.addr %s133, 4
      %s135 = scalar_lea.vmem %s2, %s134
      %s136 = smul.u32 8, %s13
      %p137 = scmp.lt.s32.totalorder %s136, 15
      %s138 = scalar_select %p137, %s136, 15
      %s139 = smul.addr %s138, 4
      %s140 = scalar_lea.vmem %s0, %s139
      %s141 = smul.u32 8, %s13
      %s142 = smul.u32 8, %s13
      %p143 = scmp.lt.s32.totalorder %s142, 15
      %s144 = scalar_select %p143, %s142, 15
      %s145 = smul.addr %s144, 2
      %s146 = smul.addr %s145, 4
      %s147 = scalar_lea.vmem %s2, %s146
      %s148 = smul.u32 8, %s13
      %v150 = vld [vmem:[%s140] sm:$0xf]
      %v151 = vld [vmem:[%s140 + $0x4] sm:$0xf]
      %v152 = vld [vmem:[%s140 + $0x8] sm:$0xf]
      %v153 = vld [vmem:[%s140 + $0xc] sm:$0xf]
      %v154 = vld [vmem:[%s140 + $0x10] sm:$0xf]
      %v155 = vld [vmem:[%s140 + $0x14] sm:$0xf]
      %v156 = vld [vmem:[%s140 + $0x18] sm:$0xf]
      %v157 = vld [vmem:[%s140 + $0x1c] sm:$0xf]
      %v158 = vld [vmem:[%s1] sm:$0xff]
      %v159 = vld [vmem:[%s1 + $0x8] sm:$0xff]
      %v160 = vld [vmem:[%s1 + $0x10] sm:$0xff]
      %v169 = vunpack.c.l.b16 %v150
      %v170 = vunpack.c.l.b16 %v151
      %v171 = vunpack.c.l.b16 %v152
      %v172 = vunpack.c.l.b16 %v153
      %v173 = vunpack.c.l.b16 %v154
      %v174 = vunpack.c.l.b16 %v155
      %v175 = vunpack.c.l.b16 %v156
      %v176 = vunpack.c.l.b16 %v157
      %v177 = vpack.c.b16 %v170, %v169
      %v178 = vpack.c.b16 %v172, %v171
      %v179 = vpack.c.b16 %v174, %v173
      %v180 = vpack.c.b16 %v176, %v175
      %v184 = vunpack.c.l.b16 %v158
      %v185 = vunpack.c.h.b16 %v158
      %v186 = vunpack.c.l.b16 %v159
      %v187 = vunpack.c.h.b16 %v159
      %v188 = vunpack.c.l.b16 %v160
      %v189 = vunpack.c.h.b16 %v160
      %v190 = vpack.c.b16 %v186, %v184
      %v191 = vpack.c.b16 %v187, %v185
      %v192 = vpack.c.b16 %v188, %v188
      %v193 = vpack.c.b16 %v189, %v189
      %vm196 = vcmask 195584
      %v198 = vsel %vm196, %v177, 0
      %v201 = vsel %vm196, %v178, 0
      %v204 = vsel %vm196, %v179, 0
      %v207 = vsel %vm196, %v180, 0
      %vm209 = vcmask 1043456
      %v211 = vsel %vm209, %v192, 0
      %v214 = vsel %vm209, %v193, 0
      %216 = vmatprep.subr.bf16.mxu0 0
      %217 = vmatpush1.bf16.msra.mxu0 0
      %218 = vmatprep.subr.bf16.mxu0 0
      %219 = vmatpush1.bf16.msra.mxu0 0
      %220 = vmatprep.subr.bf16.mxu0 0
      %221 = vmatpush1.bf16.msra.mxu0 0
      %222 = vmatprep.subr.bf16.mxu0 0
      %223 = vmatpush1.bf16.msra.mxu0 0
      %224 = vmatprep.subr.bf16.mxu0 0
      %225 = vmatpush1.bf16.msra.mxu0 0
      %226 = vmatprep.subr.bf16.mxu0 0
      %227 = vmatpush1.bf16.msra.mxu0 0
      %228 = vmatprep.subr.bf16.mxu0 %v214
      %229 = vmatpush1.bf16.msra.mxu0 %v211
      %230 = vmatprep.subr.bf16.mxu0 %v191
      %231 = vmatpush1.bf16.msra.mxu0 %v190
      %232 = vmatprep.subr.bf16.mxu0 0
      %233 = vmatpush2.bf16.msra.mxu0 0
      %234 = vmatprep.subr.bf16.mxu0 0
      %235 = vmatpush2.bf16.msra.mxu0 0
      %236 = vmatprep.subr.bf16.mxu0 0
      %237 = vmatpush2.bf16.msra.mxu0 0
      %238 = vmatprep.subr.bf16.mxu0 0
      %239 = vmatpush2.bf16.msra.mxu0 0
      %240 = vmatprep.subr.bf16.mxu0 0
      %241 = vmatpush2.bf16.msra.mxu0 0
      %242 = vmatprep.subr.bf16.mxu0 0
      %243 = vmatpush2.bf16.msra.mxu0 0
      %244 = vmatprep.subr.bf16.mxu0 0
      %245 = vmatpush2.bf16.msra.mxu0 0
      %246 = vmatprep.subr.bf16.mxu0 0
      %247 = vmatpush2.bf16.msra.mxu0 0
      %248 = vmatprep.mubr.bf16.mxu0 0
      %249 = vmatmul.mubr.bf16.gmra.mxu0 %v198
      %v250 = vpop.f32.mrf.mxu0
      %v251 = vadd.f32 0.0, %v250
      %v252 = vpop.f32.mrf.mxu0
      %v253 = vadd.f32 0.0, %v252
      %v254 = vpop.f32.mrf.mxu0
      %v255 = vadd.f32 0.0, %v254
      %v256 = vpop.f32.mrf.mxu0
      %v257 = vadd.f32 0.0, %v256
      %258 = vmatprep.mubr.bf16.mxu0 0
      %259 = vmatmul.mubr.bf16.gmra.mxu0 %v201
      %v260 = vpop.f32.mrf.mxu0
      %v261 = vadd.f32 0.0, %v260
      %v262 = vpop.f32.mrf.mxu0
      %v263 = vadd.f32 0.0, %v262
      %v264 = vpop.f32.mrf.mxu0
      %v265 = vadd.f32 0.0, %v264
      %v266 = vpop.f32.mrf.mxu0
      %v267 = vadd.f32 0.0, %v266
      %268 = vmatprep.mubr.bf16.mxu0 0
      %269 = vmatmul.mubr.bf16.gmra.mxu0 %v204
      %v270 = vpop.f32.mrf.mxu0
      %v271 = vadd.f32 0.0, %v270
      %v272 = vpop.f32.mrf.mxu0
      %v273 = vadd.f32 0.0, %v272
      %v274 = vpop.f32.mrf.mxu0
      %v275 = vadd.f32 0.0, %v274
      %v276 = vpop.f32.mrf.mxu0
      %v277 = vadd.f32 0.0, %v276
      %278 = vmatprep.mubr.bf16.mxu0 0
      %279 = vmatmul.mubr.bf16.gmra.mxu0 %v207
      %v280 = vpop.f32.mrf.mxu0
      %v281 = vadd.f32 0.0, %v280
      %v282 = vpop.f32.mrf.mxu0
      %v283 = vadd.f32 0.0, %v282
      %v284 = vpop.f32.mrf.mxu0
      %v285 = vadd.f32 0.0, %v284
      %v286 = vpop.f32.mrf.mxu0
      %v287 = vadd.f32 0.0, %v286
      %288 = vdwg.mxu0
      %v289 = vmax.f32 %v251, 0.0
      %v290 = vmax.f32 %v253, 0.0
      %v291 = vmax.f32 %v255, 0.0
      %v292 = vmax.f32 %v257, 0.0
      %v293 = vmax.f32 %v261, 0.0
      %v294 = vmax.f32 %v263, 0.0
      %v295 = vmax.f32 %v265, 0.0
      %v296 = vmax.f32 %v267, 0.0
      %v297 = vmax.f32 %v271, 0.0
      %v298 = vmax.f32 %v273, 0.0
      %v299 = vmax.f32 %v275, 0.0
      %v300 = vmax.f32 %v277, 0.0
      %v301 = vmax.f32 %v281, 0.0
      %v302 = vmax.f32 %v283, 0.0
      %v303 = vmax.f32 %v285, 0.0
      %v304 = vmax.f32 %v287, 0.0
      %v305 = vmin.f32 %v289, 6.0
      %v306 = vmin.f32 %v290, 6.0
      %v307 = vmin.f32 %v291, 6.0
      %v308 = vmin.f32 %v292, 6.0
      %v309 = vmin.f32 %v293, 6.0
      %v310 = vmin.f32 %v294, 6.0
      %v311 = vmin.f32 %v295, 6.0
      %v312 = vmin.f32 %v296, 6.0
      %v313 = vmin.f32 %v297, 6.0
      %v314 = vmin.f32 %v298, 6.0
      %v315 = vmin.f32 %v299, 6.0
      %v316 = vmin.f32 %v300, 6.0
      %v317 = vmin.f32 %v301, 6.0
      %v318 = vmin.f32 %v302, 6.0
      %v319 = vmin.f32 %v303, 6.0
      %v320 = vmin.f32 %v304, 6.0
      %v321 = vpack.c.bf16 %v307, %v305
      %v322 = vpack.c.bf16 %v308, %v306
      %v323 = vpack.c.bf16 %v311, %v309
      %v324 = vpack.c.bf16 %v312, %v310
      %v325 = vpack.c.bf16 %v315, %v313
      %v326 = vpack.c.bf16 %v316, %v314
      %v327 = vpack.c.bf16 %v319, %v317
      %v328 = vpack.c.bf16 %v320, %v318
      %v337 = vunpack.c.l.b16 %v321
      %v338 = vunpack.c.l.b16 %v322
      %v339 = vunpack.c.h.b16 %v321
      %v340 = vunpack.c.h.b16 %v322
      %v341 = vunpack.c.l.b16 %v323
      %v342 = vunpack.c.l.b16 %v324
      %v343 = vunpack.c.h.b16 %v323
      %v344 = vunpack.c.h.b16 %v324
      %v345 = vunpack.c.l.b16 %v325
      %v346 = vunpack.c.l.b16 %v326
      %v347 = vunpack.c.h.b16 %v325
      %v348 = vunpack.c.h.b16 %v326
      %v349 = vunpack.c.l.b16 %v327
      %v350 = vunpack.c.l.b16 %v328
      %v351 = vunpack.c.h.b16 %v327
      %v352 = vunpack.c.h.b16 %v328
      %v353 = vpack.c.b16 %v338, %v337
      %v354 = vpack.c.b16 %v340, %v339
      %v355 = vpack.c.b16 %v342, %v341
      %v356 = vpack.c.b16 %v344, %v343
      %v357 = vpack.c.b16 %v346, %v345
      %v358 = vpack.c.b16 %v348, %v347
      %v359 = vpack.c.b16 %v350, %v349
      %v360 = vpack.c.b16 %v352, %v351
      %vm369 = vcmask 130052
      %vm370 = vmor %vm369, %vm209
      %371 = vst.msk [vmem:[%s147] sm:$0xff] %vm370, %v353
      %372 = vst.msk [vmem:[%s147 + $0x8] sm:$0xff] %vm370, %v354
      %373 = vst.msk [vmem:[%s147 + $0x10] sm:$0xff] %vm370, %v355
      %374 = vst.msk [vmem:[%s147 + $0x18] sm:$0xff] %vm370, %v356
      %375 = vst.msk [vmem:[%s147 + $0x20] sm:$0xff] %vm370, %v357
      %376 = vst.msk [vmem:[%s147 + $0x28] sm:$0xff] %vm370, %v358
      %377 = vst.msk [vmem:[%s147 + $0x30] sm:$0xff] %vm370, %v359
      %378 = vst.msk [vmem:[%s147 + $0x38] sm:$0xff] %vm370, %v360
      %s379 = smul.u32 8, %s13
      %p380 = scmp.lt.s32.totalorder %s379, 15
      %s381 = scalar_select %p380, %s379, 15
      %s382 = smul.addr %s381, 2
      %s383 = smul.addr %s382, 4
      %s384 = scalar_lea.vmem %s2, %s383
      // Predicated region
      $region29: #{_lambda_.9} parent=27 // pred_check
        %p385 = pneg %p78
      $region30: #{_lambda_.9} parent=27 // pred_check_branch
        %387 = sbr.rel (%p385) target = $region32
      $region31: #{_lambda_.9} parent=27 // pred_region
        %s388 = smul.u32 8, %s13
      $region32: #{_lambda_.9} parent=27 // pred_fallthru
        _
    $region28: #{_lambda_.9} parent=5 // pred_fallthru
      _
    %p389 = scmp.le.s32.totalorder 2, %s8
    // Predicated region
    $region33: #{_lambda_.9} parent=5 // pred_check
      %p390 = pneg %p389
    $region34: #{_lambda_.9} parent=5 // pred_check_branch
      %392 = sbr.rel (%p390) target = $region36
    $region35: #{_lambda_.9} parent=5 // pred_region
      %s393 = ssub.s32 %s8, 2
      // Predicated region
      $region37: #{_lambda_.9} parent=35 // pred_check
        %p394 = pneg %p84
      $region38: #{_lambda_.9} parent=35 // pred_check_branch
        %396 = sbr.rel (%p394) target = $region40
      $region39: #{_lambda_.9} parent=35 // pred_region
        %s397 = smul.u32 8, %s14
        %p398 = scmp.lt.s32.totalorder %s397, 15
        %s399 = scalar_select %p398, %s397, 15
        %s400 = smul.addr %s399, 2
        %s401 = smul.addr %s400, 4
        %s402 = scalar_lea.vmem %s2, %s401
      $region40: #{_lambda_.9} parent=35 // pred_fallthru
        _
    $region36: #{_lambda_.9} parent=5 // pred_fallthru
      _
  $region6: #{_lambda_.9} parent=0 // loop_footer
    %s12 = sadd.s32 1, %s8
  $region7: #{_lambda_.9} parent=0 // loop_footer_branch
    %7 = sbr.rel target = $region3
  $region8: #{_lambda_.9} parent=0 // loop_exit
    _

// kernel: _lambda_.11
$region0: #{_lambda_.11}
  #allocation0 [shape = 'u32[]', space=smem, size = 0x4, offset = 0x4, fixed_abs, tag = 'smem constant byte address 0x4 - core index']
  #allocation1 [shape = 'u32[144,128]{1,0:T(1,128)}', space=vmem, size = 0x12000, scoped, tag = 'internal scratch']
  %s0 = inlined_call_operand.vmem [shape: bf16[128,144], index: 0, kind: input, shape index: {}]
  %s1 = inlined_call_operand.vmem [shape: bf16[144,24], index: 1, kind: input, shape index: {}]
  %s2 = inlined_call_operand.vmem [shape: bf16[128,24], index: 2, kind: input, shape index: {}]
  %s3 = inlined_call_operand.vmem [shape: bf16[128,24], index: 3, kind: output, shape index: {}]
  %s4 = sld [smem:[#allocation0]]
  $region45: #{_lambda_.11} parent=0
    _
  %s6 = ssub.s32 1, %s4
  %s7 = scalar_select 0, %s6, %s4
  loop: start=0, step=1, limit=4
  $region2: #{_lambda_.11} parent=0 // loop_pre_header
    _
  $region3: #{_lambda_.11} parent=0 // loop_header
    %s9 = sphi 0, %s13
    %p10 = scmp.ge.s32.totalorder %s9, 4
    %s19 = sphi 0, %s21
    %s22 = sphi 0, %s19
    %s23 = sphi 0, %s22
    %s39 = sphi 0, %s23
    %s43 = sphi 0, %s43
    %s45 = sphi 0, %s43
    %s46 = sphi 0, %s45
    %s60 = sphi 0, %s46
    %s66 = sphi 0, %s68
    %s69 = sphi 0, %s66
    %s70 = sphi 0, %s69
    %s86 = sphi 0, %s70
    %s92 = sphi 0, %s94
    %s95 = sphi 0, %s92
    %s96 = sphi 0, %s95
    %s112 = sphi 0, %s96
  $region4: #{_lambda_.11} parent=0 // loop_header_branch
    %12 = sbr.rel (%p10) target = $region8
  $region5: #{_lambda_.11} parent=0 // loop_body
    %s14 = ssub.s32 %s9, 1
    %s15 = ssub.s32 %s9, 2
    %s16 = sadd.s32 %s9, 1
    %s17 = ssub.s32 %s9, %s16
    %p18 = scmp.eq.s32.totalorder %s17, 0
    %s20 = sadd.s32 %s19, 1
    %s21 = scalar_select %p18, %s19, %s20
    %p24 = pneg %p18
    %p25 = scmp.eq.s32.totalorder %s9, 1
    %p26 = por %p24, %p25
    %p27 = scmp.ne.s32.totalorder %s19, %s22
    %p28 = scmp.eq.s32.totalorder %s9, 0
    %p29 = por %p27, %p28
    %p30 = scmp.ne.s32.totalorder %s19, %s22
    %p31 = scmp.eq.s32.totalorder %s14, 1
    %p32 = por %p30, %p31
    %p33 = scmp.ne.s32.totalorder %s22, %s23
    %p34 = scmp.eq.s32.totalorder %s14, 0
    %p35 = por %p33, %p34
    %p36 = scmp.ne.s32.totalorder %s22, %s23
    %p37 = scmp.eq.s32.totalorder %s15, 1
    %p38 = por %p36, %p37
    %p40 = scmp.ne.s32.totalorder %s23, %s39
    %p41 = scmp.eq.s32.totalorder %s15, 0
    %p42 = por %p40, %p41
    %s44 = sadd.s32 %s43, 1
    %p47 = scmp.eq.s32.totalorder %s9, 1
    %p48 = scmp.ne.s32.totalorder %s43, %s45
    %p49 = scmp.eq.s32.totalorder %s9, 0
    %p50 = por %p48, %p49
    %p51 = scmp.ne.s32.totalorder %s43, %s45
    %p52 = scmp.eq.s32.totalorder %s14, 1
    %p53 = por %p51, %p52
    %p54 = scmp.ne.s32.totalorder %s45, %s46
    %p55 = scmp.eq.s32.totalorder %s14, 0
    %p56 = por %p54, %p55
    %p57 = scmp.ne.s32.totalorder %s45, %s46
    %p58 = scmp.eq.s32.totalorder %s15, 1
    %p59 = por %p57, %p58
    %p61 = scmp.ne.s32.totalorder %s46, %s60
    %p62 = scmp.eq.s32.totalorder %s15, 0
    %p63 = por %p61, %p62
    %s64 = ssub.s32 %s9, %s16
    %p65 = scmp.eq.s32.totalorder %s64, 0
    %s67 = sadd.s32 %s66, 1
    %s68 = scalar_select %p65, %s66, %s67
    %p71 = pneg %p65
    %p72 = scmp.eq.s32.totalorder %s9, 1
    %p73 = por %p71, %p72
    %p74 = scmp.ne.s32.totalorder %s66, %s69
    %p75 = scmp.eq.s32.totalorder %s9, 0
    %p76 = por %p74, %p75
    %p77 = scmp.ne.s32.totalorder %s66, %s69
    %p78 = scmp.eq.s32.totalorder %s14, 1
    %p79 = por %p77, %p78
    %p80 = scmp.ne.s32.totalorder %s69, %s70
    %p81 = scmp.eq.s32.totalorder %s14, 0
    %p82 = por %p80, %p81
    %p83 = scmp.ne.s32.totalorder %s69, %s70
    %p84 = scmp.eq.s32.totalorder %s15, 1
    %p85 = por %p83, %p84
    %p87 = scmp.ne.s32.totalorder %s70, %s86
    %p88 = scmp.eq.s32.totalorder %s15, 0
    %p89 = por %p87, %p88
    %s90 = ssub.s32 %s9, %s16
    %p91 = scmp.eq.s32.totalorder %s90, 0
    %s93 = sadd.s32 %s92, 1
    %s94 = scalar_select %p91, %s92, %s93
    %p97 = pneg %p91
    %p98 = scmp.eq.s32.totalorder %s9, 1
    %p99 = por %p97, %p98
    %p100 = scmp.ne.s32.totalorder %s92, %s95
    %p101 = scmp.eq.s32.totalorder %s9, 0
    %p102 = por %p100, %p101
    %p103 = scmp.ne.s32.totalorder %s92, %s95
    %p104 = scmp.eq.s32.totalorder %s14, 1
    %p105 = por %p103, %p104
    %p106 = scmp.ne.s32.totalorder %s95, %s96
    %p107 = scmp.eq.s32.totalorder %s14, 0
    %p108 = por %p106, %p107
    %p109 = scmp.ne.s32.totalorder %s95, %s96
    %p110 = scmp.eq.s32.totalorder %s15, 1
    %p111 = por %p109, %p110
    %p113 = scmp.ne.s32.totalorder %s96, %s112
    %p114 = scmp.eq.s32.totalorder %s15, 0
    %p115 = por %p113, %p114
    %p116 = scmp.le.s32.totalorder 1, %s9
    %p117 = scmp.lt.s32.totalorder %s9, 3
    %p118 = pnand %p116, %p117
    %p119 = pneg %p118
    // Predicated region
    $region9: #{_lambda_.11} parent=5 // pred_check
      _
    $region10: #{_lambda_.11} parent=5 // pred_check_branch
      %121 = sbr.rel (%p118) target = $region12
    $region11: #{_lambda_.11} parent=5 // pred_region
      %s122 = ssub.s32 %s9, 1
      // Predicated region
      $region13: #{_lambda_.11} parent=11 // pred_check
        %p123 = pneg %p56
      $region14: #{_lambda_.11} parent=11 // pred_check_branch
        %125 = sbr.rel (%p123) target = $region16
      $region15: #{_lambda_.11} parent=11 // pred_region
        _
      $region16: #{_lambda_.11} parent=11 // pred_fallthru
        _
    $region12: #{_lambda_.11} parent=5 // pred_fallthru
      _
    %p126 = scmp.lt.s32.totalorder %s9, 2
    // Predicated region
    $region17: #{_lambda_.11} parent=5 // pred_check
      %p127 = pneg %p126
    $region18: #{_lambda_.11} parent=5 // pred_check_branch
      %129 = sbr.rel (%p127) target = $region20
    $region19: #{_lambda_.11} parent=5 // pred_region
      // Predicated region
      $region21: #{_lambda_.11} parent=19 // pred_check
        %p130 = pneg %p29
      $region22: #{_lambda_.11} parent=19 // pred_check_branch
        %132 = sbr.rel (%p130) target = $region24
      $region23: #{_lambda_.11} parent=19 // pred_region
        %s133 = smul.u32 8, %s9
        %p134 = scmp.lt.s32.totalorder %s133, 15
        %s135 = scalar_select %p134, %s133, 15
        %s136 = smul.addr %s135, 2
        %s137 = smul.addr %s136, 4
        %s138 = scalar_lea.vmem %s0, %s137
        %s139 = smul.u32 8, %s9
      $region24: #{_lambda_.11} parent=19 // pred_fallthru
        _
      // Predicated region
      $region25: #{_lambda_.11} parent=19 // pred_check
        %p140 = pneg %p76
      $region26: #{_lambda_.11} parent=19 // pred_check_branch
        %142 = sbr.rel (%p140) target = $region28
      $region27: #{_lambda_.11} parent=19 // pred_region
        %s143 = smul.u32 8, %s9
        %p144 = scmp.lt.s32.totalorder %s143, 15
        %s145 = scalar_select %p144, %s143, 15
        %s146 = smul.addr %s145, 4
        %s147 = scalar_lea.vmem %s2, %s146
        %s148 = smul.u32 8, %s9
      $region28: #{_lambda_.11} parent=19 // pred_fallthru
        _
    $region20: #{_lambda_.11} parent=5 // pred_fallthru
      _
    %p149 = scmp.le.s32.totalorder 1, %s9
    %p150 = scmp.lt.s32.totalorder %s9, 3
    %p151 = pnand %p149, %p150
    %p152 = pneg %p151
    // Predicated region
    $region29: #{_lambda_.11} parent=5 // pred_check
      _
    $region30: #{_lambda_.11} parent=5 // pred_check_branch
      %154 = sbr.rel (%p151) target = $region32
    $region31: #{_lambda_.11} parent=5 // pred_region
      %s155 = ssub.s32 %s9, 1
      %s156 = smul.u32 8, %s14
      %p157 = scmp.lt.s32.totalorder %s156, 15
      %s158 = scalar_select %p157, %s156, 15
      %s159 = smul.addr %s158, 2
      %s160 = smul.addr %s159, 4
      %s161 = scalar_lea.vmem %s0, %s160
      %p162 = pneg %p35
      %p163 = pneg %p32
      %p164 = pneg %p56
      %p165 = pneg %p53
      %s166 = smul.u32 8, %s14
      %p167 = scmp.lt.s32.totalorder %s166, 15
      %s168 = scalar_select %p167, %s166, 15
      %s169 = smul.addr %s168, 4
      %s170 = scalar_lea.vmem %s2, %s169
      %p171 = pneg %p82
      %p172 = pneg %p79
      %p173 = pneg %p108
      %p174 = pneg %p105
      %s175 = smul.u32 8, %s14
      %p176 = scmp.lt.s32.totalorder %s175, 15
      %s177 = scalar_select %p176, %s175, 15
      %s178 = smul.addr %s177, 4
      %s179 = scalar_lea.vmem %s3, %s178
      %s180 = smul.u32 8, %s14
      %p181 = scmp.lt.s32.totalorder %s180, 15
      %s182 = scalar_select %p181, %s180, 15
      %s183 = smul.addr %s182, 2
      %s184 = smul.addr %s183, 4
      %s185 = scalar_lea.vmem %s0, %s184
      %s186 = smul.u32 8, %s14
      %s187 = smul.u32 8, %s14
      %p188 = scmp.lt.s32.totalorder %s187, 15
      %s189 = scalar_select %p188, %s187, 15
      %s190 = smul.addr %s189, 4
      %s191 = scalar_lea.vmem %s2, %s190
      %s192 = smul.u32 8, %s14
      %s193 = smul.u32 8, %s14
      %p194 = scmp.lt.s32.totalorder %s193, 15
      %s195 = scalar_select %p194, %s193, 15
      %s196 = smul.addr %s195, 4
      %s197 = scalar_lea.vmem %s3, %s196
      %s198 = smul.u32 8, %s14
      %v200 = vld [vmem:[%s185] sm:$0xff]
      %v201 = vld [vmem:[%s185 + $0x8] sm:$0xff]
      %v202 = vld [vmem:[%s185 + $0x10] sm:$0xff]
      %v203 = vld [vmem:[%s185 + $0x18] sm:$0xff]
      %v204 = vld [vmem:[%s185 + $0x20] sm:$0xff]
      %v205 = vld [vmem:[%s185 + $0x28] sm:$0xff]
      %v206 = vld [vmem:[%s185 + $0x30] sm:$0xff]
      %v207 = vld [vmem:[%s185 + $0x38] sm:$0xff]
      %v208 = vld [vmem:[%s1] sm:$0xf]
      %v209 = vld [vmem:[%s1 + $0x4] sm:$0xf]
      %v210 = vld [vmem:[%s1 + $0x8] sm:$0xf]
      %v211 = vld [vmem:[%s1 + $0xc] sm:$0xf]
      %v212 = vld [vmem:[%s1 + $0x10] sm:$0xf]
      %v213 = vld [vmem:[%s1 + $0x14] sm:$0xf]
      %v214 = vld [vmem:[%s1 + $0x18] sm:$0xf]
      %v215 = vld [vmem:[%s1 + $0x1c] sm:$0xf]
      %v216 = vld [vmem:[%s1 + $0x20] sm:$0xf]
      %v217 = vld [vmem:[%s1 + $0x24] sm:$0xf]
      %v218 = vld [vmem:[%s1 + $0x28] sm:$0xf]
      %v219 = vld [vmem:[%s1 + $0x2c] sm:$0xf]
      %v220 = vld [vmem:[%s1 + $0x30] sm:$0xf]
      %v221 = vld [vmem:[%s1 + $0x34] sm:$0xf]
      %v222 = vld [vmem:[%s1 + $0x38] sm:$0xf]
      %v223 = vld [vmem:[%s1 + $0x3c] sm:$0xf]
      %v224 = vld [vmem:[%s1 + $0x40] sm:$0xf]
      %v225 = vld [vmem:[%s1 + $0x44] sm:$0xf]
      %v226 = vld [vmem:[%s191] sm:$0xf]
      %v227 = vld [vmem:[%s191 + $0x4] sm:$0xf]
      %v228 = vld [vmem:[%s191 + $0x8] sm:$0xf]
      %v229 = vld [vmem:[%s191 + $0xc] sm:$0xf]
      %v230 = vld [vmem:[%s191 + $0x10] sm:$0xf]
      %v231 = vld [vmem:[%s191 + $0x14] sm:$0xf]
      %v232 = vld [vmem:[%s191 + $0x18] sm:$0xf]
      %v233 = vld [vmem:[%s191 + $0x1c] sm:$0xf]
      %v234 = vunpack.c.l.bf16 %v226
      %v235 = vunpack.c.l.bf16 %v227
      %v236 = vunpack.c.l.bf16 %v228
      %v237 = vunpack.c.l.bf16 %v229
      %v238 = vunpack.c.l.bf16 %v230
      %v239 = vunpack.c.l.bf16 %v231
      %v240 = vunpack.c.l.bf16 %v232
      %v241 = vunpack.c.l.bf16 %v233
      %v250 = vunpack.c.l.b16 %v200
      %v251 = vunpack.c.h.b16 %v200
      %v252 = vunpack.c.l.b16 %v201
      %v253 = vunpack.c.h.b16 %v201
      %v254 = vunpack.c.l.b16 %v202
      %v255 = vunpack.c.h.b16 %v202
      %v256 = vunpack.c.l.b16 %v203
      %v257 = vunpack.c.h.b16 %v203
      %v258 = vunpack.c.l.b16 %v204
      %v259 = vunpack.c.h.b16 %v204
      %v260 = vunpack.c.l.b16 %v205
      %v261 = vunpack.c.h.b16 %v205
      %v262 = vunpack.c.l.b16 %v206
      %v263 = vunpack.c.h.b16 %v206
      %v264 = vunpack.c.l.b16 %v207
      %v265 = vunpack.c.h.b16 %v207
      %v266 = vpack.c.b16 %v252, %v250
      %v267 = vpack.c.b16 %v253, %v251
      %v268 = vpack.c.b16 %v256, %v254
      %v269 = vpack.c.b16 %v257, %v255
      %v270 = vpack.c.b16 %v260, %v258
      %v271 = vpack.c.b16 %v261, %v259
      %v272 = vpack.c.b16 %v264, %v262
      %v273 = vpack.c.b16 %v265, %v263
      %v296 = vunpack.c.l.b16 %v208
      %v297 = vunpack.c.l.b16 %v209
      %v298 = vunpack.c.l.b16 %v210
      %v299 = vunpack.c.l.b16 %v211
      %v300 = vunpack.c.l.b16 %v212
      %v301 = vunpack.c.l.b16 %v213
      %v302 = vunpack.c.l.b16 %v214
      %v303 = vunpack.c.l.b16 %v215
      %v304 = vunpack.c.l.b16 %v216
      %v305 = vunpack.c.l.b16 %v217
      %v306 = vunpack.c.l.b16 %v218
      %v307 = vunpack.c.l.b16 %v219
      %v308 = vunpack.c.l.b16 %v220
      %v309 = vunpack.c.l.b16 %v221
      %v310 = vunpack.c.l.b16 %v222
      %v311 = vunpack.c.l.b16 %v223
      %v312 = vunpack.c.l.b16 %v224
      %v313 = vunpack.c.l.b16 %v225
      %v314 = vpack.c.b16 %v297, %v296
      %v315 = vpack.c.b16 %v299, %v298
      %v316 = vpack.c.b16 %v301, %v300
      %v317 = vpack.c.b16 %v303, %v302
      %v318 = vpack.c.b16 %v305, %v304
      %v319 = vpack.c.b16 %v307, %v306
      %v320 = vpack.c.b16 %v309, %v308
      %v321 = vpack.c.b16 %v311, %v310
      %v322 = vpack.c.b16 %v313, %v312
      %vm332 = vcmask 130048
      %v334 = vsel %vm332, %v267, 0
      %v337 = vsel %vm332, %v269, 0
      %v340 = vsel %vm332, %v271, 0
      %v343 = vsel %vm332, %v273, 0
      %345 = vmatprep.subr.bf16.mxu0 0
      %346 = vmatpush1.bf16.msra.mxu0 %v321
      %347 = vmatprep.subr.bf16.mxu0 0
      %348 = vmatpush1.bf16.msra.mxu0 %v320
      %349 = vmatprep.subr.bf16.mxu0 0
      %350 = vmatpush1.bf16.msra.mxu0 %v319
      %351 = vmatprep.subr.bf16.mxu0 0
      %352 = vmatpush1.bf16.msra.mxu0 %v318
      %353 = vmatprep.subr.bf16.mxu0 0
      %354 = vmatpush1.bf16.msra.mxu0 %v317
      %355 = vmatprep.subr.bf16.mxu0 0
      %356 = vmatpush1.bf16.msra.mxu0 %v316
      %357 = vmatprep.subr.bf16.mxu0 0
      %358 = vmatpush1.bf16.msra.mxu0 %v315
      %359 = vmatprep.subr.bf16.mxu0 0
      %360 = vmatpush1.bf16.msra.mxu0 %v314
      %361 = vmatprep.subr.bf16.mxu0 0
      %362 = vmatpush2.bf16.msra.mxu0 0
      %363 = vmatprep.subr.bf16.mxu0 0
      %364 = vmatpush2.bf16.msra.mxu0 0
      %365 = vmatprep.subr.bf16.mxu0 0
      %366 = vmatpush2.bf16.msra.mxu0 0
      %367 = vmatprep.subr.bf16.mxu0 0
      %368 = vmatpush2.bf16.msra.mxu0 0
      %369 = vmatprep.subr.bf16.mxu0 0
      %370 = vmatpush2.bf16.msra.mxu0 0
      %371 = vmatprep.subr.bf16.mxu0 0
      %372 = vmatpush2.bf16.msra.mxu0 0
      %373 = vmatprep.subr.bf16.mxu0 0
      %374 = vmatpush2.bf16.msra.mxu0 0
      %375 = vmatprep.subr.bf16.mxu0 0
      %376 = vmatpush2.bf16.msra.mxu0 %v322
      %377 = vmatprep.mubr.bf16.mxu0 %v334
      %378 = vmatmul.mubr.bf16.gmra.mxu0 %v266
      %v379 = vpop.f32.mrf.mxu0
      %v380 = vadd.f32 %v234, %v379
      %v381 = vpop.f32.mrf.mxu0
      %v382 = vpop.f32.mrf.mxu0
      %v383 = vadd.f32 %v235, %v382
      %v384 = vpop.f32.mrf.mxu0
      %385 = vmatprep.mubr.bf16.mxu0 %v337
      %386 = vmatmul.mubr.bf16.gmra.mxu0 %v268
      %v387 = vpop.f32.mrf.mxu0
      %v388 = vadd.f32 %v236, %v387
      %v389 = vpop.f32.mrf.mxu0
      %v390 = vpop.f32.mrf.mxu0
      %v391 = vadd.f32 %v237, %v390
      %v392 = vpop.f32.mrf.mxu0
      %393 = vmatprep.mubr.bf16.mxu0 %v340
      %394 = vmatmul.mubr.bf16.gmra.mxu0 %v270
      %v395 = vpop.f32.mrf.mxu0
      %v396 = vadd.f32 %v238, %v395
      %v397 = vpop.f32.mrf.mxu0
      %v398 = vpop.f32.mrf.mxu0
      %v399 = vadd.f32 %v239, %v398
      %v400 = vpop.f32.mrf.mxu0
      %401 = vmatprep.mubr.bf16.mxu0 %v343
      %402 = vmatmul.mubr.bf16.gmra.mxu0 %v272
      %v403 = vpop.f32.mrf.mxu0
      %v404 = vadd.f32 %v240, %v403
      %v405 = vpop.f32.mrf.mxu0
      %v406 = vpop.f32.mrf.mxu0
      %v407 = vadd.f32 %v241, %v406
      %v408 = vpop.f32.mrf.mxu0
      %409 = vdwg.mxu0
      %v410 = vpack.c.bf16 %v383, %v380
      %v411 = vpack.c.bf16 %v391, %v388
      %v412 = vpack.c.bf16 %v399, %v396
      %v413 = vpack.c.bf16 %v407, %v404
      %v418 = vunpack.c.l.b16 %v410
      %v419 = vunpack.c.h.b16 %v410
      %v420 = vunpack.c.l.b16 %v411
      %v421 = vunpack.c.h.b16 %v411
      %v422 = vunpack.c.l.b16 %v412
      %v423 = vunpack.c.h.b16 %v412
      %v424 = vunpack.c.l.b16 %v413
      %v425 = vunpack.c.h.b16 %v413
      %v426 = vpack.c.b16 %v418, %v418
      %v427 = vpack.c.b16 %v419, %v419
      %v428 = vpack.c.b16 %v420, %v420
      %v429 = vpack.c.b16 %v421, %v421
      %v430 = vpack.c.b16 %v422, %v422
      %v431 = vpack.c.b16 %v423, %v423
      %v432 = vpack.c.b16 %v424, %v424
      %v433 = vpack.c.b16 %v425, %v425
      %vm442 = vcmask 191488
      %443 = vst.msk [vmem:[%s197] sm:$0xf] %vm442, %v426
      %444 = vst.msk [vmem:[%s197 + $0x4] sm:$0xf] %vm442, %v427
      %445 = vst.msk [vmem:[%s197 + $0x8] sm:$0xf] %vm442, %v428
      %446 = vst.msk [vmem:[%s197 + $0xc] sm:$0xf] %vm442, %v429
      %447 = vst.msk [vmem:[%s197 + $0x10] sm:$0xf] %vm442, %v430
      %448 = vst.msk [vmem:[%s197 + $0x14] sm:$0xf] %vm442, %v431
      %449 = vst.msk [vmem:[%s197 + $0x18] sm:$0xf] %vm442, %v432
      %450 = vst.msk [vmem:[%s197 + $0x1c] sm:$0xf] %vm442, %v433
      %s451 = smul.u32 8, %s14
      %p452 = scmp.lt.s32.totalorder %s451, 15
      %s453 = scalar_select %p452, %s451, 15
      %s454 = smul.addr %s453, 4
      %s455 = scalar_lea.vmem %s3, %s454
      // Predicated region
      $region33: #{_lambda_.11} parent=31 // pred_check
        %p456 = pneg %p105
      $region34: #{_lambda_.11} parent=31 // pred_check_branch
        %458 = sbr.rel (%p456) target = $region36
      $region35: #{_lambda_.11} parent=31 // pred_region
        %s459 = smul.u32 8, %s14
      $region36: #{_lambda_.11} parent=31 // pred_fallthru
        _
    $region32: #{_lambda_.11} parent=5 // pred_fallthru
      _
    %p460 = scmp.le.s32.totalorder 2, %s9
    // Predicated region
    $region37: #{_lambda_.11} parent=5 // pred_check
      %p461 = pneg %p460
    $region38: #{_lambda_.11} parent=5 // pred_check_branch
      %463 = sbr.rel (%p461) target = $region40
    $region39: #{_lambda_.11} parent=5 // pred_region
      %s464 = ssub.s32 %s9, 2
      // Predicated region
      $region41: #{_lambda_.11} parent=39 // pred_check
        %p465 = pneg %p111
      $region42: #{_lambda_.11} parent=39 // pred_check_branch
        %467 = sbr.rel (%p465) target = $region44
      $region43: #{_lambda_.11} parent=39 // pred_region
        %s468 = smul.u32 8, %s15
        %p469 = scmp.lt.s32.totalorder %s468, 15
        %s470 = scalar_select %p469, %s468, 15
        %s471 = smul.addr %s470, 4
        %s472 = scalar_lea.vmem %s3, %s471
      $region44: #{_lambda_.11} parent=39 // pred_fallthru
        _
    $region40: #{_lambda_.11} parent=5 // pred_fallthru
      _
  $region6: #{_lambda_.11} parent=0 // loop_footer
    %s13 = sadd.s32 1, %s9
  $region7: #{_lambda_.11} parent=0 // loop_footer_branch
    %8 = sbr.rel target = $region3
  $region8: #{_lambda_.11} parent=0 // loop_exit
    _

// kernel: _lambda_.10
$region0: #{_lambda_.10}
  #allocation0 [shape = 'u32[]', space=smem, size = 0x4, offset = 0x4, fixed_abs, tag = 'smem constant byte address 0x4 - core index']
  #allocation1 [shape = 'u32[144,128]{1,0:T(1,128)}', space=vmem, size = 0x12000, scoped, tag = 'internal scratch']
  %s0 = inlined_call_operand.vmem [shape: bf16[2,10,10,144], index: 0, kind: input, shape index: {}]
  %s1 = inlined_call_operand.vmem [shape: f32[9,1,1,144], index: 1, kind: input, shape index: {}]
  %s2 = inlined_call_operand.vmem [shape: bf16[2,8,8,144], index: 2, kind: output, shape index: {}]
  %s3 = sld [smem:[#allocation0]]
  $region41: #{_lambda_.10} parent=0
    _
  %s5 = ssub.s32 1, %s3
  %s6 = scalar_select 0, %s5, %s3
  loop: start=0, step=1, limit=4
  $region2: #{_lambda_.10} parent=0 // loop_pre_header
    _
  $region3: #{_lambda_.10} parent=0 // loop_header
    %s8 = sphi 0, %s12
    %p9 = scmp.ge.s32.totalorder %s8, 4
    %s18 = sphi 0, %s20
    %s21 = sphi 0, %s18
    %s22 = sphi 0, %s21
    %s38 = sphi 0, %s22
    %s42 = sphi 0, %s42
    %s44 = sphi 0, %s42
    %s45 = sphi 0, %s44
    %s59 = sphi 0, %s45
    %s65 = sphi 0, %s67
    %s68 = sphi 0, %s65
    %s69 = sphi 0, %s68
    %s85 = sphi 0, %s69
  $region4: #{_lambda_.10} parent=0 // loop_header_branch
    %11 = sbr.rel (%p9) target = $region8
  $region5: #{_lambda_.10} parent=0 // loop_body
    %s13 = ssub.s32 %s8, 1
    %s14 = ssub.s32 %s8, 2
    %s15 = sadd.s32 %s8, 1
    %s16 = ssub.s32 %s8, %s15
    %p17 = scmp.eq.s32.totalorder %s16, 0
    %s19 = sadd.s32 %s18, 1
    %s20 = scalar_select %p17, %s18, %s19
    %p23 = pneg %p17
    %p24 = scmp.eq.s32.totalorder %s8, 1
    %p25 = por %p23, %p24
    %p26 = scmp.ne.s32.totalorder %s18, %s21
    %p27 = scmp.eq.s32.totalorder %s8, 0
    %p28 = por %p26, %p27
    %p29 = scmp.ne.s32.totalorder %s18, %s21
    %p30 = scmp.eq.s32.totalorder %s13, 1
    %p31 = por %p29, %p30
    %p32 = scmp.ne.s32.totalorder %s21, %s22
    %p33 = scmp.eq.s32.totalorder %s13, 0
    %p34 = por %p32, %p33
    %p35 = scmp.ne.s32.totalorder %s21, %s22
    %p36 = scmp.eq.s32.totalorder %s14, 1
    %p37 = por %p35, %p36
    %p39 = scmp.ne.s32.totalorder %s22, %s38
    %p40 = scmp.eq.s32.totalorder %s14, 0
    %p41 = por %p39, %p40
    %s43 = sadd.s32 %s42, 1
    %p46 = scmp.eq.s32.totalorder %s8, 1
    %p47 = scmp.ne.s32.totalorder %s42, %s44
    %p48 = scmp.eq.s32.totalorder %s8, 0
    %p49 = por %p47, %p48
    %p50 = scmp.ne.s32.totalorder %s42, %s44
    %p51 = scmp.eq.s32.totalorder %s13, 1
    %p52 = por %p50, %p51
    %p53 = scmp.ne.s32.totalorder %s44, %s45
    %p54 = scmp.eq.s32.totalorder %s13, 0
    %p55 = por %p53, %p54
    %p56 = scmp.ne.s32.totalorder %s44, %s45
    %p57 = scmp.eq.s32.totalorder %s14, 1
    %p58 = por %p56, %p57
    %p60 = scmp.ne.s32.totalorder %s45, %s59
    %p61 = scmp.eq.s32.totalorder %s14, 0
    %p62 = por %p60, %p61
    %s63 = ssub.s32 %s8, %s15
    %p64 = scmp.eq.s32.totalorder %s63, 0
    %s66 = sadd.s32 %s65, 1
    %s67 = scalar_select %p64, %s65, %s66
    %p70 = pneg %p64
    %p71 = scmp.eq.s32.totalorder %s8, 1
    %p72 = por %p70, %p71
    %p73 = scmp.ne.s32.totalorder %s65, %s68
    %p74 = scmp.eq.s32.totalorder %s8, 0
    %p75 = por %p73, %p74
    %p76 = scmp.ne.s32.totalorder %s65, %s68
    %p77 = scmp.eq.s32.totalorder %s13, 1
    %p78 = por %p76, %p77
    %p79 = scmp.ne.s32.totalorder %s68, %s69
    %p80 = scmp.eq.s32.totalorder %s13, 0
    %p81 = por %p79, %p80
    %p82 = scmp.ne.s32.totalorder %s68, %s69
    %p83 = scmp.eq.s32.totalorder %s14, 1
    %p84 = por %p82, %p83
    %p86 = scmp.ne.s32.totalorder %s69, %s85
    %p87 = scmp.eq.s32.totalorder %s14, 0
    %p88 = por %p86, %p87
    %p89 = scmp.le.s32.totalorder 1, %s8
    %p90 = scmp.lt.s32.totalorder %s8, 3
    %p91 = pnand %p89, %p90
    %p92 = pneg %p91
    // Predicated region
    $region9: #{_lambda_.10} parent=5 // pred_check
      _
    $region10: #{_lambda_.10} parent=5 // pred_check_branch
      %94 = sbr.rel (%p91) target = $region12
    $region11: #{_lambda_.10} parent=5 // pred_region
      %s95 = ssub.s32 %s8, 1
      // Predicated region
      $region13: #{_lambda_.10} parent=11 // pred_check
        %p96 = pneg %p55
      $region14: #{_lambda_.10} parent=11 // pred_check_branch
        %98 = sbr.rel (%p96) target = $region16
      $region15: #{_lambda_.10} parent=11 // pred_region
        _
      $region16: #{_lambda_.10} parent=11 // pred_fallthru
        _
    $region12: #{_lambda_.10} parent=5 // pred_fallthru
      _
    %p99 = scmp.lt.s32.totalorder %s8, 2
    // Predicated region
    $region17: #{_lambda_.10} parent=5 // pred_check
      %p100 = pneg %p99
    $region18: #{_lambda_.10} parent=5 // pred_check_branch
      %102 = sbr.rel (%p100) target = $region20
    $region19: #{_lambda_.10} parent=5 // pred_region
      // Predicated region
      $region21: #{_lambda_.10} parent=19 // pred_check
        %p103 = pneg %p28
      $region22: #{_lambda_.10} parent=19 // pred_check_branch
        %105 = sbr.rel (%p103) target = $region24
      $region23: #{_lambda_.10} parent=19 // pred_region
        %p106 = scmp.lt.s32.totalorder %s8, 1
        %s107 = scalar_select %p106, %s8, 1
        %s108 = smul.addr %s107, 40
        %s109 = smul.addr %s108, 4
        %s110 = scalar_lea.vmem %s0, %s109
      $region24: #{_lambda_.10} parent=19 // pred_fallthru
        _
    $region20: #{_lambda_.10} parent=5 // pred_fallthru
      _
    %p111 = scmp.le.s32.totalorder 1, %s8
    %p112 = scmp.lt.s32.totalorder %s8, 3
    %p113 = pnand %p111, %p112
    %p114 = pneg %p113
    // Predicated region
    $region25: #{_lambda_.10} parent=5 // pred_check
      _
    $region26: #{_lambda_.10} parent=5 // pred_check_branch
      %116 = sbr.rel (%p113) target = $region28
    $region27: #{_lambda_.10} parent=5 // pred_region
      %s117 = ssub.s32 %s8, 1
      %p118 = scmp.lt.s32.totalorder %s13, 1
      %s119 = scalar_select %p118, %s13, 1
      %s120 = smul.addr %s119, 40
      %s121 = smul.addr %s120, 4
      %s122 = scalar_lea.vmem %s0, %s121
      %p123 = pneg %p34
      %p124 = pneg %p31
      %p125 = pneg %p55
      %p126 = pneg %p52
      %p127 = pneg %p81
      %p128 = pneg %p78
      %p129 = scmp.lt.s32.totalorder %s13, 1
      %s130 = scalar_select %p129, %s13, 1
      %s131 = smul.addr %s130, 16
      %s132 = smul.addr %s131, 4
      %s133 = scalar_lea.vmem %s2, %s132
      %p134 = scmp.lt.s32.totalorder %s13, 1
      %s135 = scalar_select %p134, %s13, 1
      %s136 = smul.addr %s135, 40
      %s137 = smul.addr %s136, 4
      %s138 = scalar_lea.vmem %s0, %s137
      %p139 = scmp.lt.s32.totalorder %s13, 1
      %s140 = scalar_select %p139, %s13, 1
      %s141 = smul.addr %s140, 16
      %s142 = smul.addr %s141, 4
      %s143 = scalar_lea.vmem %s2, %s142
      %v144 = vld [vmem:[%s138] sm:$0xff]
      %v145 = vld [vmem:[%s138 + $0x10] sm:$0xff]
      %v146 = vld [vmem:[%s138 + $0x20] sm:$0xff]
      %v147 = vld [vmem:[%s138 + $0x30] sm:$0xff]
      %v148 = vld [vmem:[%s138 + $0x40] sm:$0xff]
      %v149 = vld [vmem:[%s138 + $0x50] sm:$0xff]
      %v150 = vld [vmem:[%s138 + $0x60] sm:$0xff]
      %v151 = vld [vmem:[%s138 + $0x70] sm:$0xff]
      %v152 = vunpack.c.l.bf16 %v144
      %v153 = vunpack.c.h.bf16 %v144
      %v154 = vunpack.c.l.bf16 %v145
      %v155 = vunpack.c.h.bf16 %v145
      %v156 = vunpack.c.l.bf16 %v146
      %v157 = vunpack.c.h.bf16 %v146
      %v158 = vunpack.c.l.bf16 %v147
      %v159 = vunpack.c.h.bf16 %v147
      %v160 = vunpack.c.l.bf16 %v148
      %v161 = vunpack.c.h.bf16 %v148
      %v162 = vunpack.c.l.bf16 %v149
      %v163 = vunpack.c.h.bf16 %v149
      %v164 = vunpack.c.l.bf16 %v150
      %v165 = vunpack.c.h.bf16 %v150
      %v166 = vunpack.c.l.bf16 %v151
      %v167 = vunpack.c.h.bf16 %v151
      %v168 = vld [vmem:[%s1] sm:$0x3]
      %v170 = vlaneseq
      %v171 = vshrl.u32 %v170, 7
      %v172 = vsub.s32 0, %v171
      %v173 = vrot.slane %v168, %v172
      %v174 = vlaneseq
      %v175 = vshrl.u32 %v174, 7
      %v176 = vsub.s32 1, %v175
      %v177 = vrot.slane %v168, %v176
      %v180 = vmul.f32 %v152, %v173
      %v181 = vmul.f32 %v153, %v177
      %v182 = vmul.f32 %v154, %v173
      %v183 = vmul.f32 %v155, %v177
      %v184 = vmul.f32 %v156, %v173
      %v185 = vmul.f32 %v157, %v177
      %v186 = vmul.f32 %v158, %v173
      %v187 = vmul.f32 %v159, %v177
      %v188 = vmul.f32 %v160, %v173
      %v189 = vmul.f32 %v161, %v177
      %v190 = vmul.f32 %v162, %v173
      %v191 = vmul.f32 %v163, %v177
      %v192 = vmul.f32 %v164, %v173
      %v193 = vmul.f32 %v165, %v177
      %v194 = vmul.f32 %v166, %v173
      %v195 = vmul.f32 %v167, %v177
      %v196 = vadd.f32 %v180, 0.0
      %v197 = vadd.f32 %v181, 0.0
      %v198 = vadd.f32 %v182, 0.0
      %v199 = vadd.f32 %v183, 0.0
      %v200 = vadd.f32 %v184, 0.0
      %v201 = vadd.f32 %v185, 0.0
      %v202 = vadd.f32 %v186, 0.0
      %v203 = vadd.f32 %v187, 0.0
      %v204 = vadd.f32 %v188, 0.0
      %v205 = vadd.f32 %v189, 0.0
      %v206 = vadd.f32 %v190, 0.0
      %v207 = vadd.f32 %v191, 0.0
      %v208 = vadd.f32 %v192, 0.0
      %v209 = vadd.f32 %v193, 0.0
      %v210 = vadd.f32 %v194, 0.0
      %v211 = vadd.f32 %v195, 0.0
      %v212 = vld [vmem:[%s138 + $0x8] sm:$0x11]
      %v213 = vld [vmem:[%s138 + $0x18] sm:$0x11]
      %v214 = vld [vmem:[%s138 + $0x28] sm:$0x11]
      %v215 = vld [vmem:[%s138 + $0x38] sm:$0x11]
      %v216 = vld [vmem:[%s138 + $0x48] sm:$0x11]
      %v217 = vld [vmem:[%s138 + $0x58] sm:$0x11]
      %v218 = vld [vmem:[%s138 + $0x68] sm:$0x11]
      %v219 = vld [vmem:[%s138 + $0x78] sm:$0x11]
      %v220 = vunpack.c.l.bf16 %v212
      %v221 = vunpack.c.h.bf16 %v212
      %v222 = vunpack.c.l.bf16 %v213
      %v223 = vunpack.c.h.bf16 %v213
      %v224 = vunpack.c.l.bf16 %v214
      %v225 = vunpack.c.h.bf16 %v214
      %v226 = vunpack.c.l.bf16 %v215
      %v227 = vunpack.c.h.bf16 %v215
      %v228 = vunpack.c.l.bf16 %v216
      %v229 = vunpack.c.h.bf16 %v216
      %v230 = vunpack.c.l.bf16 %v217
      %v231 = vunpack.c.h.bf16 %v217
      %v232 = vunpack.c.l.bf16 %v218
      %v233 = vunpack.c.h.bf16 %v218
      %v234 = vunpack.c.l.bf16 %v219
      %v235 = vunpack.c.h.bf16 %v219
      %s236 = scalar_lea.vmem %s1, 2
      %v237 = vld [vmem:[%s236] sm:$0x3]
      %v239 = vlaneseq
      %v240 = vshrl.u32 %v239, 7
      %v241 = vsub.s32 0, %v240
      %v242 = vrot.slane %v237, %v241
      %v243 = vlaneseq
      %v244 = vshrl.u32 %v243, 7
      %v245 = vsub.s32 1, %v244
      %v246 = vrot.slane %v237, %v245
      %v249 = vmul.f32 %v152, %v242
      %v250 = vmul.f32 %v153, %v246
      %v251 = vmul.f32 %v220, %v242
      %v252 = vmul.f32 %v221, %v246
      %v253 = vmul.f32 %v154, %v242
      %v254 = vmul.f32 %v155, %v246
      %v255 = vmul.f32 %v222, %v242
      %v256 = vmul.f32 %v223, %v246
      %v257 = vmul.f32 %v156, %v242
      %v258 = vmul.f32 %v157, %v246
      %v259 = vmul.f32 %v224, %v242
      %v260 = vmul.f32 %v225, %v246
      %v261 = vmul.f32 %v158, %v242
      %v262 = vmul.f32 %v159, %v246
      %v263 = vmul.f32 %v226, %v242
      %v264 = vmul.f32 %v227, %v246
      %v265 = vmul.f32 %v160, %v242
      %v266 = vmul.f32 %v161, %v246
      %v267 = vmul.f32 %v228, %v242
      %v268 = vmul.f32 %v229, %v246
      %v269 = vmul.f32 %v162, %v242
      %v270 = vmul.f32 %v163, %v246
      %v271 = vmul.f32 %v230, %v242
      %v272 = vmul.f32 %v231, %v246
      %v273 = vmul.f32 %v164, %v242
      %v274 = vmul.f32 %v165, %v246
      %v275 = vmul.f32 %v232, %v242
      %v276 = vmul.f32 %v233, %v246
      %v277 = vmul.f32 %v166, %v242
      %v278 = vmul.f32 %v167, %v246
      %v279 = vmul.f32 %v234, %v242
      %v280 = vmul.f32 %v235, %v246
      %vm313 = vcmask 1046528
      %v314 = vrot.slane %v249, 1
      %v315 = vrot.slane %v251, 1
      %v316 = vsel %vm313, %v314, %v315
      %v317 = vrot.slane %v250, 1
      %v318 = vrot.slane %v252, 1
      %v319 = vsel %vm313, %v317, %v318
      %v320 = vrot.slane %v253, 1
      %v321 = vrot.slane %v255, 1
      %v322 = vsel %vm313, %v320, %v321
      %v323 = vrot.slane %v254, 1
      %v324 = vrot.slane %v256, 1
      %v325 = vsel %vm313, %v323, %v324
      %v326 = vrot.slane %v257, 1
      %v327 = vrot.slane %v259, 1
      %v328 = vsel %vm313, %v326, %v327
      %v329 = vrot.slane %v258, 1
      %v330 = vrot.slane %v260, 1
      %v331 = vsel %vm313, %v329, %v330
      %v332 = vrot.slane %v261, 1
      %v333 = vrot.slane %v263, 1
      %v334 = vsel %vm313, %v332, %v333
      %v335 = vrot.slane %v262, 1
      %v336 = vrot.slane %v264, 1
      %v337 = vsel %vm313, %v335, %v336
      %v338 = vrot.slane %v265, 1
      %v339 = vrot.slane %v267, 1
      %v340 = vsel %vm313, %v338, %v339
      %v341 = vrot.slane %v266, 1
      %v342 = vrot.slane %v268, 1
      %v343 = vsel %vm313, %v341, %v342
      %v344 = vrot.slane %v269, 1
      %v345 = vrot.slane %v271, 1
      %v346 = vsel %vm313, %v344, %v345
      %v347 = vrot.slane %v270, 1
      %v348 = vrot.slane %v272, 1
      %v349 = vsel %vm313, %v347, %v348
      %v350 = vrot.slane %v273, 1
      %v351 = vrot.slane %v275, 1
      %v352 = vsel %vm313, %v350, %v351
      %v353 = vrot.slane %v274, 1
      %v354 = vrot.slane %v276, 1
      %v355 = vsel %vm313, %v353, %v354
      %v356 = vrot.slane %v277, 1
      %v357 = vrot.slane %v279, 1
      %v358 = vsel %vm313, %v356, %v357
      %v359 = vrot.slane %v278, 1
      %v360 = vrot.slane %v280, 1
      %v361 = vsel %vm313, %v359, %v360
      %v378 = vadd.f32 %v196, %v316
      %v379 = vadd.f32 %v197, %v319
      %v380 = vadd.f32 %v198, %v322
      %v381 = vadd.f32 %v199, %v325
      %v382 = vadd.f32 %v200, %v328
      %v383 = vadd.f32 %v201, %v331
      %v384 = vadd.f32 %v202, %v334
      %v385 = vadd.f32 %v203, %v337
      %v386 = vadd.f32 %v204, %v340
      %v387 = vadd.f32 %v205, %v343
      %v388 = vadd.f32 %v206, %v346
      %v389 = vadd.f32 %v207, %v349
      %v390 = vadd.f32 %v208, %v352
      %v391 = vadd.f32 %v209, %v355
      %v392 = vadd.f32 %v210, %v358
      %v393 = vadd.f32 %v211, %v361
      %v394 = vld [vmem:[%s138] sm:$0xee]
      %v395 = vld [vmem:[%s138 + $0x10] sm:$0xee]
      %v396 = vld [vmem:[%s138 + $0x20] sm:$0xee]
      %v397 = vld [vmem:[%s138 + $0x30] sm:$0xee]
      %v398 = vld [vmem:[%s138 + $0x40] sm:$0xee]
      %v399 = vld [vmem:[%s138 + $0x50] sm:$0xee]
      %v400 = vld [vmem:[%s138 + $0x60] sm:$0xee]
      %v401 = vld [vmem:[%s138 + $0x70] sm:$0xee]
      %v402 = vunpack.c.l.bf16 %v394
      %v403 = vunpack.c.h.bf16 %v394
      %v404 = vunpack.c.l.bf16 %v395
      %v405 = vunpack.c.h.bf16 %v395
      %v406 = vunpack.c.l.bf16 %v396
      %v407 = vunpack.c.h.bf16 %v396
      %v408 = vunpack.c.l.bf16 %v397
      %v409 = vunpack.c.h.bf16 %v397
      %v410 = vunpack.c.l.bf16 %v398
      %v411 = vunpack.c.h.bf16 %v398
      %v412 = vunpack.c.l.bf16 %v399
      %v413 = vunpack.c.h.bf16 %v399
      %v414 = vunpack.c.l.bf16 %v400
      %v415 = vunpack.c.h.bf16 %v400
      %v416 = vunpack.c.l.bf16 %v401
      %v417 = vunpack.c.h.bf16 %v401
      %s418 = scalar_lea.vmem %s1, 4
      %v419 = vld [vmem:[%s418] sm:$0x3]
      %v421 = vlaneseq
      %v422 = vshrl.u32 %v421, 7
      %v423 = vsub.s32 0, %v422
      %v424 = vrot.slane %v419, %v423
      %v425 = vlaneseq
      %v426 = vshrl.u32 %v425, 7
      %v427 = vsub.s32 1, %v426
      %v428 = vrot.slane %v419, %v427
      %v431 = vmul.f32 %v402, %v424
      %v432 = vmul.f32 %v403, %v428
      %v433 = vmul.f32 %v220, %v424
      %v434 = vmul.f32 %v221, %v428
      %v435 = vmul.f32 %v404, %v424
      %v436 = vmul.f32 %v405, %v428
      %v437 = vmul.f32 %v222, %v424
      %v438 = vmul.f32 %v223, %v428
      %v439 = vmul.f32 %v406, %v424
      %v440 = vmul.f32 %v407, %v428
      %v441 = vmul.f32 %v224, %v424
      %v442 = vmul.f32 %v225, %v428
      %v443 = vmul.f32 %v408, %v424
      %v444 = vmul.f32 %v409, %v428
      %v445 = vmul.f32 %v226, %v424
      %v446 = vmul.f32 %v227, %v428
      %v447 = vmul.f32 %v410, %v424
      %v448 = vmul.f32 %v411, %v428
      %v449 = vmul.f32 %v228, %v424
      %v450 = vmul.f32 %v229, %v428
      %v451 = vmul.f32 %v412, %v424
      %v452 = vmul.f32 %v413, %v428
      %v453 = vmul.f32 %v230, %v424
      %v454 = vmul.f32 %v231, %v428
      %v455 = vmul.f32 %v414, %v424
      %v456 = vmul.f32 %v415, %v428
      %v457 = vmul.f32 %v232, %v424
      %v458 = vmul.f32 %v233, %v428
      %v459 = vmul.f32 %v416, %v424
      %v460 = vmul.f32 %v417, %v428
      %v461 = vmul.f32 %v234, %v424
      %v462 = vmul.f32 %v235, %v428
      %vm495 = vcmask 1045504
      %v496 = vrot.slane %v431, 2
      %v497 = vrot.slane %v433, 2
      %v498 = vsel %vm495, %v496, %v497
      %v499 = vrot.slane %v432, 2
      %v500 = vrot.slane %v434, 2
      %v501 = vsel %vm495, %v499, %v500
      %v502 = vrot.slane %v435, 2
      %v503 = vrot.slane %v437, 2
      %v504 = vsel %vm495, %v502, %v503
      %v505 = vrot.slane %v436, 2
      %v506 = vrot.slane %v438, 2
      %v507 = vsel %vm495, %v505, %v506
      %v508 = vrot.slane %v439, 2
      %v509 = vrot.slane %v441, 2
      %v510 = vsel %vm495, %v508, %v509
      %v511 = vrot.slane %v440, 2
      %v512 = vrot.slane %v442, 2
      %v513 = vsel %vm495, %v511, %v512
      %v514 = vrot.slane %v443, 2
      %v515 = vrot.slane %v445, 2
      %v516 = vsel %vm495, %v514, %v515
      %v517 = vrot.slane %v444, 2
      %v518 = vrot.slane %v446, 2
      %v519 = vsel %vm495, %v517, %v518
      %v520 = vrot.slane %v447, 2
      %v521 = vrot.slane %v449, 2
      %v522 = vsel %vm495, %v520, %v521
      %v523 = vrot.slane %v448, 2
      %v524 = vrot.slane %v450, 2
      %v525 = vsel %vm495, %v523, %v524
      %v526 = vrot.slane %v451, 2
      %v527 = vrot.slane %v453, 2
      %v528 = vsel %vm495, %v526, %v527
      %v529 = vrot.slane %v452, 2
      %v530 = vrot.slane %v454, 2
      %v531 = vsel %vm495, %v529, %v530
      %v532 = vrot.slane %v455, 2
      %v533 = vrot.slane %v457, 2
      %v534 = vsel %vm495, %v532, %v533
      %v535 = vrot.slane %v456, 2
      %v536 = vrot.slane %v458, 2
      %v537 = vsel %vm495, %v535, %v536
      %v538 = vrot.slane %v459, 2
      %v539 = vrot.slane %v461, 2
      %v540 = vsel %vm495, %v538, %v539
      %v541 = vrot.slane %v460, 2
      %v542 = vrot.slane %v462, 2
      %v543 = vsel %vm495, %v541, %v542
      %v560 = vadd.f32 %v378, %v498
      %v561 = vadd.f32 %v379, %v501
      %v562 = vadd.f32 %v380, %v504
      %v563 = vadd.f32 %v381, %v507
      %v564 = vadd.f32 %v382, %v510
      %v565 = vadd.f32 %v383, %v513
      %v566 = vadd.f32 %v384, %v516
      %v567 = vadd.f32 %v385, %v519
      %v568 = vadd.f32 %v386, %v522
      %v569 = vadd.f32 %v387, %v525
      %v570 = vadd.f32 %v388, %v528
      %v571 = vadd.f32 %v389, %v531
      %v572 = vadd.f32 %v390, %v534
      %v573 = vadd.f32 %v391, %v537
      %v574 = vadd.f32 %v392, %v540
      %v575 = vadd.f32 %v393, %v543
      %s576 = scalar_lea.vmem %s138, 16
      %v577 = vld [vmem:[%s576] sm:$0xff]
      %v578 = vld [vmem:[%s576 + $0x10] sm:$0xff]
      %v579 = vld [vmem:[%s576 + $0x20] sm:$0xff]
      %v580 = vld [vmem:[%s576 + $0x30] sm:$0xff]
      %v581 = vld [vmem:[%s576 + $0x40] sm:$0xff]
      %v582 = vld [vmem:[%s576 + $0x50] sm:$0xff]
      %v583 = vld [vmem:[%s576 + $0x60] sm:$0xff]
      %v584 = vld [vmem:[%s576 + $0x70] sm:$0xff]
      %v585 = vunpack.c.l.bf16 %v577
      %v586 = vunpack.c.h.bf16 %v577
      %v587 = vunpack.c.l.bf16 %v578
      %v588 = vunpack.c.h.bf16 %v578
      %v589 = vunpack.c.l.bf16 %v579
      %v590 = vunpack.c.h.bf16 %v579
      %v591 = vunpack.c.l.bf16 %v580
      %v592 = vunpack.c.h.bf16 %v580
      %v593 = vunpack.c.l.bf16 %v581
      %v594 = vunpack.c.h.bf16 %v581
      %v595 = vunpack.c.l.bf16 %v582
      %v596 = vunpack.c.h.bf16 %v582
      %v597 = vunpack.c.l.bf16 %v583
      %v598 = vunpack.c.h.bf16 %v583
      %v599 = vunpack.c.l.bf16 %v584
      %v600 = vunpack.c.h.bf16 %v584
      %s601 = scalar_lea.vmem %s1, 6
      %v602 = vld [vmem:[%s601] sm:$0x3]
      %v604 = vlaneseq
      %v605 = vshrl.u32 %v604, 7
      %v606 = vsub.s32 0, %v605
      %v607 = vrot.slane %v602, %v606
      %v608 = vlaneseq
      %v609 = vshrl.u32 %v608, 7
      %v610 = vsub.s32 1, %v609
      %v611 = vrot.slane %v602, %v610
      %v614 = vmul.f32 %v585, %v607
      %v615 = vmul.f32 %v586, %v611
      %v616 = vmul.f32 %v587, %v607
      %v617 = vmul.f32 %v588, %v611
      %v618 = vmul.f32 %v589, %v607
      %v619 = vmul.f32 %v590, %v611
      %v620 = vmul.f32 %v591, %v607
      %v621 = vmul.f32 %v592, %v611
      %v622 = vmul.f32 %v593, %v607
      %v623 = vmul.f32 %v594, %v611
      %v624 = vmul.f32 %v595, %v607
      %v625 = vmul.f32 %v596, %v611
      %v626 = vmul.f32 %v597, %v607
      %v627 = vmul.f32 %v598, %v611
      %v628 = vmul.f32 %v599, %v607
      %v629 = vmul.f32 %v600, %v611
      %v630 = vadd.f32 %v560, %v614
      %v631 = vadd.f32 %v561, %v615
      %v632 = vadd.f32 %v562, %v616
      %v633 = vadd.f32 %v563, %v617
      %v634 = vadd.f32 %v564, %v618
      %v635 = vadd.f32 %v565, %v619
      %v636 = vadd.f32 %v566, %v620
      %v637 = vadd.f32 %v567, %v621
      %v638 = vadd.f32 %v568, %v622
      %v639 = vadd.f32 %v569, %v623
      %v640 = vadd.f32 %v570, %v624
      %v641 = vadd.f32 %v571, %v625
      %v642 = vadd.f32 %v572, %v626
      %v643 = vadd.f32 %v573, %v627
      %v644 = vadd.f32 %v574, %v628
      %v645 = vadd.f32 %v575, %v629
      %v646 = vld [vmem:[%s576 + $0x8] sm:$0x11]
      %v647 = vld [vmem:[%s576 + $0x18] sm:$0x11]
      %v648 = vld [vmem:[%s576 + $0x28] sm:$0x11]
      %v649 = vld [vmem:[%s576 + $0x38] sm:$0x11]
      %v650 = vld [vmem:[%s576 + $0x48] sm:$0x11]
      %v651 = vld [vmem:[%s576 + $0x58] sm:$0x11]
      %v652 = vld [vmem:[%s576 + $0x68] sm:$0x11]
      %v653 = vld [vmem:[%s576 + $0x78] sm:$0x11]
      %v654 = vunpack.c.l.bf16 %v646
      %v655 = vunpack.c.h.bf16 %v646
      %v656 = vunpack.c.l.bf16 %v647
      %v657 = vunpack.c.h.bf16 %v647
      %v658 = vunpack.c.l.bf16 %v648
      %v659 = vunpack.c.h.bf16 %v648
      %v660 = vunpack.c.l.bf16 %v649
      %v661 = vunpack.c.h.bf16 %v649
      %v662 = vunpack.c.l.bf16 %v650
      %v663 = vunpack.c.h.bf16 %v650
      %v664 = vunpack.c.l.bf16 %v651
      %v665 = vunpack.c.h.bf16 %v651
      %v666 = vunpack.c.l.bf16 %v652
      %v667 = vunpack.c.h.bf16 %v652
      %v668 = vunpack.c.l.bf16 %v653
      %v669 = vunpack.c.h.bf16 %v653
      %s670 = scalar_lea.vmem %s1, 8
      %v671 = vld [vmem:[%s670] sm:$0x3]
      %v673 = vlaneseq
      %v674 = vshrl.u32 %v673, 7
      %v675 = vsub.s32 0, %v674
      %v676 = vrot.slane %v671, %v675
      %v677 = vlaneseq
      %v678 = vshrl.u32 %v677, 7
      %v679 = vsub.s32 1, %v678
      %v680 = vrot.slane %v671, %v679
      %v683 = vmul.f32 %v585, %v676
      %v684 = vmul.f32 %v586, %v680
      %v685 = vmul.f32 %v654, %v676
      %v686 = vmul.f32 %v655, %v680
      %v687 = vmul.f32 %v587, %v676
      %v688 = vmul.f32 %v588, %v680
      %v689 = vmul.f32 %v656, %v676
      %v690 = vmul.f32 %v657, %v680
      %v691 = vmul.f32 %v589, %v676
      %v692 = vmul.f32 %v590, %v680
      %v693 = vmul.f32 %v658, %v676
      %v694 = vmul.f32 %v659, %v680
      %v695 = vmul.f32 %v591, %v676
      %v696 = vmul.f32 %v592, %v680
      %v697 = vmul.f32 %v660, %v676
      %v698 = vmul.f32 %v661, %v680
      %v699 = vmul.f32 %v593, %v676
      %v700 = vmul.f32 %v594, %v680
      %v701 = vmul.f32 %v662, %v676
      %v702 = vmul.f32 %v663, %v680
      %v703 = vmul.f32 %v595, %v676
      %v704 = vmul.f32 %v596, %v680
      %v705 = vmul.f32 %v664, %v676
      %v706 = vmul.f32 %v665, %v680
      %v707 = vmul.f32 %v597, %v676
      %v708 = vmul.f32 %v598, %v680
      %v709 = vmul.f32 %v666, %v676
      %v710 = vmul.f32 %v667, %v680
      %v711 = vmul.f32 %v599, %v676
      %v712 = vmul.f32 %v600, %v680
      %v713 = vmul.f32 %v668, %v676
      %v714 = vmul.f32 %v669, %v680
      %v747 = vrot.slane %v683, 1
      %v748 = vrot.slane %v685, 1
      %v749 = vsel %vm313, %v747, %v748
      %v750 = vrot.slane %v684, 1
      %v751 = vrot.slane %v686, 1
      %v752 = vsel %vm313, %v750, %v751
      %v753 = vrot.slane %v687, 1
      %v754 = vrot.slane %v689, 1
      %v755 = vsel %vm313, %v753, %v754
      %v756 = vrot.slane %v688, 1
      %v757 = vrot.slane %v690, 1
      %v758 = vsel %vm313, %v756, %v757
      %v759 = vrot.slane %v691, 1
      %v760 = vrot.slane %v693, 1
      %v761 = vsel %vm313, %v759, %v760
      %v762 = vrot.slane %v692, 1
      %v763 = vrot.slane %v694, 1
      %v764 = vsel %vm313, %v762, %v763
      %v765 = vrot.slane %v695, 1
      %v766 = vrot.slane %v697, 1
      %v767 = vsel %vm313, %v765, %v766
      %v768 = vrot.slane %v696, 1
      %v769 = vrot.slane %v698, 1
      %v770 = vsel %vm313, %v768, %v769
      %v771 = vrot.slane %v699, 1
      %v772 = vrot.slane %v701, 1
      %v773 = vsel %vm313, %v771, %v772
      %v774 = vrot.slane %v700, 1
      %v775 = vrot.slane %v702, 1
      %v776 = vsel %vm313, %v774, %v775
      %v777 = vrot.slane %v703, 1
      %v778 = vrot.slane %v705, 1
      %v779 = vsel %vm313, %v777, %v778
      %v780 = vrot.slane %v704, 1
      %v781 = vrot.slane %v706, 1
      %v782 = vsel %vm313, %v780, %v781
      %v783 = vrot.slane %v707, 1
      %v784 = vrot.slane %v709, 1
      %v785 = vsel %vm313, %v783, %v784
      %v786 = vrot.slane %v708, 1
      %v787 = vrot.slane %v710, 1
      %v788 = vsel %vm313, %v786, %v787
      %v789 = vrot.slane %v711, 1
      %v790 = vrot.slane %v713, 1
      %v791 = vsel %vm313, %v789, %v790
      %v792 = vrot.slane %v712, 1
      %v793 = vrot.slane %v714, 1
      %v794 = vsel %vm313, %v792, %v793
      %v811 = vadd.f32 %v630, %v749
      %v812 = vadd.f32 %v631, %v752
      %v813 = vadd.f32 %v632, %v755
      %v814 = vadd.f32 %v633, %v758
      %v815 = vadd.f32 %v634, %v761
      %v816 = vadd.f32 %v635, %v764
      %v817 = vadd.f32 %v636, %v767
      %v818 = vadd.f32 %v637, %v770
      %v819 = vadd.f32 %v638, %v773
      %v820 = vadd.f32 %v639, %v776
      %v821 = vadd.f32 %v640, %v779
      %v822 = vadd.f32 %v641, %v782
      %v823 = vadd.f32 %v642, %v785
      %v824 = vadd.f32 %v643, %v788
      %v825 = vadd.f32 %v644, %v791
      %v826 = vadd.f32 %v645, %v794
      %v827 = vld [vmem:[%s576] sm:$0xee]
      %v828 = vld [vmem:[%s576 + $0x10] sm:$0xee]
      %v829 = vld [vmem:[%s576 + $0x20] sm:$0xee]
      %v830 = vld [vmem:[%s576 + $0x30] sm:$0xee]
      %v831 = vld [vmem:[%s576 + $0x40] sm:$0xee]
      %v832 = vld [vmem:[%s576 + $0x50] sm:$0xee]
      %v833 = vld [vmem:[%s576 + $0x60] sm:$0xee]
      %v834 = vld [vmem:[%s576 + $0x70] sm:$0xee]
      %v835 = vunpack.c.l.bf16 %v827
      %v836 = vunpack.c.h.bf16 %v827
      %v837 = vunpack.c.l.bf16 %v828
      %v838 = vunpack.c.h.bf16 %v828
      %v839 = vunpack.c.l.bf16 %v829
      %v840 = vunpack.c.h.bf16 %v829
      %v841 = vunpack.c.l.bf16 %v830
      %v842 = vunpack.c.h.bf16 %v830
      %v843 = vunpack.c.l.bf16 %v831
      %v844 = vunpack.c.h.bf16 %v831
      %v845 = vunpack.c.l.bf16 %v832
      %v846 = vunpack.c.h.bf16 %v832
      %v847 = vunpack.c.l.bf16 %v833
      %v848 = vunpack.c.h.bf16 %v833
      %v849 = vunpack.c.l.bf16 %v834
      %v850 = vunpack.c.h.bf16 %v834
      %s851 = scalar_lea.vmem %s1, 10
      %v852 = vld [vmem:[%s851] sm:$0x3]
      %v854 = vlaneseq
      %v855 = vshrl.u32 %v854, 7
      %v856 = vsub.s32 0, %v855
      %v857 = vrot.slane %v852, %v856
      %v858 = vlaneseq
      %v859 = vshrl.u32 %v858, 7
      %v860 = vsub.s32 1, %v859
      %v861 = vrot.slane %v852, %v860
      %v864 = vmul.f32 %v835, %v857
      %v865 = vmul.f32 %v836, %v861
      %v866 = vmul.f32 %v654, %v857
      %v867 = vmul.f32 %v655, %v861
      %v868 = vmul.f32 %v837, %v857
      %v869 = vmul.f32 %v838, %v861
      %v870 = vmul.f32 %v656, %v857
      %v871 = vmul.f32 %v657, %v861
      %v872 = vmul.f32 %v839, %v857
      %v873 = vmul.f32 %v840, %v861
      %v874 = vmul.f32 %v658, %v857
      %v875 = vmul.f32 %v659, %v861
      %v876 = vmul.f32 %v841, %v857
      %v877 = vmul.f32 %v842, %v861
      %v878 = vmul.f32 %v660, %v857
      %v879 = vmul.f32 %v661, %v861
      %v880 = vmul.f32 %v843, %v857
      %v881 = vmul.f32 %v844, %v861
      %v882 = vmul.f32 %v662, %v857
      %v883 = vmul.f32 %v663, %v861
      %v884 = vmul.f32 %v845, %v857
      %v885 = vmul.f32 %v846, %v861
      %v886 = vmul.f32 %v664, %v857
      %v887 = vmul.f32 %v665, %v861
      %v888 = vmul.f32 %v847, %v857
      %v889 = vmul.f32 %v848, %v861
      %v890 = vmul.f32 %v666, %v857
      %v891 = vmul.f32 %v667, %v861
      %v892 = vmul.f32 %v849, %v857
      %v893 = vmul.f32 %v850, %v861
      %v894 = vmul.f32 %v668, %v857
      %v895 = vmul.f32 %v669, %v861
      %v928 = vrot.slane %v864, 2
      %v929 = vrot.slane %v866, 2
      %v930 = vsel %vm495, %v928, %v929
      %v931 = vrot.slane %v865, 2
      %v932 = vrot.slane %v867, 2
      %v933 = vsel %vm495, %v931, %v932
      %v934 = vrot.slane %v868, 2
      %v935 = vrot.slane %v870, 2
      %v936 = vsel %vm495, %v934, %v935
      %v937 = vrot.slane %v869, 2
      %v938 = vrot.slane %v871, 2
      %v939 = vsel %vm495, %v937, %v938
      %v940 = vrot.slane %v872, 2
      %v941 = vrot.slane %v874, 2
      %v942 = vsel %vm495, %v940, %v941
      %v943 = vrot.slane %v873, 2
      %v944 = vrot.slane %v875, 2
      %v945 = vsel %vm495, %v943, %v944
      %v946 = vrot.slane %v876, 2
      %v947 = vrot.slane %v878, 2
      %v948 = vsel %vm495, %v946, %v947
      %v949 = vrot.slane %v877, 2
      %v950 = vrot.slane %v879, 2
      %v951 = vsel %vm495, %v949, %v950
      %v952 = vrot.slane %v880, 2
      %v953 = vrot.slane %v882, 2
      %v954 = vsel %vm495, %v952, %v953
      %v955 = vrot.slane %v881, 2
      %v956 = vrot.slane %v883, 2
      %v957 = vsel %vm495, %v955, %v956
      %v958 = vrot.slane %v884, 2
      %v959 = vrot.slane %v886, 2
      %v960 = vsel %vm495, %v958, %v959
      %v961 = vrot.slane %v885, 2
      %v962 = vrot.slane %v887, 2
      %v963 = vsel %vm495, %v961, %v962
      %v964 = vrot.slane %v888, 2
      %v965 = vrot.slane %v890, 2
      %v966 = vsel %vm495, %v964, %v965
      %v967 = vrot.slane %v889, 2
      %v968 = vrot.slane %v891, 2
      %v969 = vsel %vm495, %v967, %v968
      %v970 = vrot.slane %v892, 2
      %v971 = vrot.slane %v894, 2
      %v972 = vsel %vm495, %v970, %v971
      %v973 = vrot.slane %v893, 2
      %v974 = vrot.slane %v895, 2
      %v975 = vsel %vm495, %v973, %v974
      %v992 = vadd.f32 %v811, %v930
      %v993 = vadd.f32 %v812, %v933
      %v994 = vadd.f32 %v813, %v936
      %v995 = vadd.f32 %v814, %v939
      %v996 = vadd.f32 %v815, %v942
      %v997 = vadd.f32 %v816, %v945
      %v998 = vadd.f32 %v817, %v948
      %v999 = vadd.f32 %v818, %v951
      %v1000 = vadd.f32 %v819, %v954
      %v1001 = vadd.f32 %v820, %v957
      %v1002 = vadd.f32 %v821, %v960
      %v1003 = vadd.f32 %v822, %v963
      %v1004 = vadd.f32 %v823, %v966
      %v1005 = vadd.f32 %v824, %v969
      %v1006 = vadd.f32 %v825, %v972
      %v1007 = vadd.f32 %v826, %v975
      %s1008 = scalar_lea.vmem %s138, 32
      %v1009 = vld [vmem:[%s1008] sm:$0xff]
      %v1010 = vld [vmem:[%s1008 + $0x10] sm:$0xff]
      %v1011 = vld [vmem:[%s1008 + $0x20] sm:$0xff]
      %v1012 = vld [vmem:[%s1008 + $0x30] sm:$0xff]
      %v1013 = vld [vmem:[%s1008 + $0x40] sm:$0xff]
      %v1014 = vld [vmem:[%s1008 + $0x50] sm:$0xff]
      %v1015 = vld [vmem:[%s1008 + $0x60] sm:$0xff]
      %v1016 = vld [vmem:[%s1008 + $0x70] sm:$0xff]
      %v1017 = vunpack.c.l.bf16 %v1009
      %v1018 = vunpack.c.h.bf16 %v1009
      %v1019 = vunpack.c.l.bf16 %v1010
      %v1020 = vunpack.c.h.bf16 %v1010
      %v1021 = vunpack.c.l.bf16 %v1011
      %v1022 = vunpack.c.h.bf16 %v1011
      %v1023 = vunpack.c.l.bf16 %v1012
      %v1024 = vunpack.c.h.bf16 %v1012
      %v1025 = vunpack.c.l.bf16 %v1013
      %v1026 = vunpack.c.h.bf16 %v1013
      %v1027 = vunpack.c.l.bf16 %v1014
      %v1028 = vunpack.c.h.bf16 %v1014
      %v1029 = vunpack.c.l.bf16 %v1015
      %v1030 = vunpack.c.h.bf16 %v1015
      %v1031 = vunpack.c.l.bf16 %v1016
      %v1032 = vunpack.c.h.bf16 %v1016
      %s1033 = scalar_lea.vmem %s1, 12
      %v1034 = vld [vmem:[%s1033] sm:$0x3]
      %v1036 = vlaneseq
      %v1037 = vshrl.u32 %v1036, 7
      %v1038 = vsub.s32 0, %v1037
      %v1039 = vrot.slane %v1034, %v1038
      %v1040 = vlaneseq
      %v1041 = vshrl.u32 %v1040, 7
      %v1042 = vsub.s32 1, %v1041
      %v1043 = vrot.slane %v1034, %v1042
      %v1046 = vmul.f32 %v1017, %v1039
      %v1047 = vmul.f32 %v1018, %v1043
      %v1048 = vmul.f32 %v1019, %v1039
      %v1049 = vmul.f32 %v1020, %v1043
      %v1050 = vmul.f32 %v1021, %v1039
      %v1051 = vmul.f32 %v1022, %v1043
      %v1052 = vmul.f32 %v1023, %v1039
      %v1053 = vmul.f32 %v1024, %v1043
      %v1054 = vmul.f32 %v1025, %v1039
      %v1055 = vmul.f32 %v1026, %v1043
      %v1056 = vmul.f32 %v1027, %v1039
      %v1057 = vmul.f32 %v1028, %v1043
      %v1058 = vmul.f32 %v1029, %v1039
      %v1059 = vmul.f32 %v1030, %v1043
      %v1060 = vmul.f32 %v1031, %v1039
      %v1061 = vmul.f32 %v1032, %v1043
      %v1062 = vadd.f32 %v992, %v1046
      %v1063 = vadd.f32 %v993, %v1047
      %v1064 = vadd.f32 %v994, %v1048
      %v1065 = vadd.f32 %v995, %v1049
      %v1066 = vadd.f32 %v996, %v1050
      %v1067 = vadd.f32 %v997, %v1051
      %v1068 = vadd.f32 %v998, %v1052
      %v1069 = vadd.f32 %v999, %v1053
      %v1070 = vadd.f32 %v1000, %v1054
      %v1071 = vadd.f32 %v1001, %v1055
      %v1072 = vadd.f32 %v1002, %v1056
      %v1073 = vadd.f32 %v1003, %v1057
      %v1074 = vadd.f32 %v1004, %v1058
      %v1075 = vadd.f32 %v1005, %v1059
      %v1076 = vadd.f32 %v1006, %v1060
      %v1077 = vadd.f32 %v1007, %v1061
      %v1078 = vld [vmem:[%s1008 + $0x8] sm:$0x11]
      %v1079 = vld [vmem:[%s1008 + $0x18] sm:$0x11]
      %v1080 = vld [vmem:[%s1008 + $0x28] sm:$0x11]
      %v1081 = vld [vmem:[%s1008 + $0x38] sm:$0x11]
      %v1082 = vld [vmem:[%s1008 + $0x48] sm:$0x11]
      %v1083 = vld [vmem:[%s1008 + $0x58] sm:$0x11]
      %v1084 = vld [vmem:[%s1008 + $0x68] sm:$0x11]
      %v1085 = vld [vmem:[%s1008 + $0x78] sm:$0x11]
      %v1086 = vunpack.c.l.bf16 %v1078
      %v1087 = vunpack.c.h.bf16 %v1078
      %v1088 = vunpack.c.l.bf16 %v1079
      %v1089 = vunpack.c.h.bf16 %v1079
      %v1090 = vunpack.c.l.bf16 %v1080
      %v1091 = vunpack.c.h.bf16 %v1080
      %v1092 = vunpack.c.l.bf16 %v1081
      %v1093 = vunpack.c.h.bf16 %v1081
      %v1094 = vunpack.c.l.bf16 %v1082
      %v1095 = vunpack.c.h.bf16 %v1082
      %v1096 = vunpack.c.l.bf16 %v1083
      %v1097 = vunpack.c.h.bf16 %v1083
      %v1098 = vunpack.c.l.bf16 %v1084
      %v1099 = vunpack.c.h.bf16 %v1084
      %v1100 = vunpack.c.l.bf16 %v1085
      %v1101 = vunpack.c.h.bf16 %v1085
      %s1102 = scalar_lea.vmem %s1, 14
      %v1103 = vld [vmem:[%s1102] sm:$0x3]
      %v1105 = vlaneseq
      %v1106 = vshrl.u32 %v1105, 7
      %v1107 = vsub.s32 0, %v1106
      %v1108 = vrot.slane %v1103, %v1107
      %v1109 = vlaneseq
      %v1110 = vshrl.u32 %v1109, 7
      %v1111 = vsub.s32 1, %v1110
      %v1112 = vrot.slane %v1103, %v1111
      %v1115 = vmul.f32 %v1017, %v1108
      %v1116 = vmul.f32 %v1018, %v1112
      %v1117 = vmul.f32 %v1086, %v1108
      %v1118 = vmul.f32 %v1087, %v1112
      %v1119 = vmul.f32 %v1019, %v1108
      %v1120 = vmul.f32 %v1020, %v1112
      %v1121 = vmul.f32 %v1088, %v1108
      %v1122 = vmul.f32 %v1089, %v1112
      %v1123 = vmul.f32 %v1021, %v1108
      %v1124 = vmul.f32 %v1022, %v1112
      %v1125 = vmul.f32 %v1090, %v1108
      %v1126 = vmul.f32 %v1091, %v1112
      %v1127 = vmul.f32 %v1023, %v1108
      %v1128 = vmul.f32 %v1024, %v1112
      %v1129 = vmul.f32 %v1092, %v1108
      %v1130 = vmul.f32 %v1093, %v1112
      %v1131 = vmul.f32 %v1025, %v1108
      %v1132 = vmul.f32 %v1026, %v1112
      %v1133 = vmul.f32 %v1094, %v1108
      %v1134 = vmul.f32 %v1095, %v1112
      %v1135 = vmul.f32 %v1027, %v1108
      %v1136 = vmul.f32 %v1028, %v1112
      %v1137 = vmul.f32 %v1096, %v1108
      %v1138 = vmul.f32 %v1097, %v1112
      %v1139 = vmul.f32 %v1029, %v1108
      %v1140 = vmul.f32 %v1030, %v1112
      %v1141 = vmul.f32 %v1098, %v1108
      %v1142 = vmul.f32 %v1099, %v1112
      %v1143 = vmul.f32 %v1031, %v1108
      %v1144 = vmul.f32 %v1032, %v1112
      %v1145 = vmul.f32 %v1100, %v1108
      %v1146 = vmul.f32 %v1101, %v1112
      %v1179 = vrot.slane %v1115, 1
      %v1180 = vrot.slane %v1117, 1
      %v1181 = vsel %vm313, %v1179, %v1180
      %v1182 = vrot.slane %v1116, 1
      %v1183 = vrot.slane %v1118, 1
      %v1184 = vsel %vm313, %v1182, %v1183
      %v1185 = vrot.slane %v1119, 1
      %v1186 = vrot.slane %v1121, 1
      %v1187 = vsel %vm313, %v1185, %v1186
      %v1188 = vrot.slane %v1120, 1
      %v1189 = vrot.slane %v1122, 1
      %v1190 = vsel %vm313, %v1188, %v1189
      %v1191 = vrot.slane %v1123, 1
      %v1192 = vrot.slane %v1125, 1
      %v1193 = vsel %vm313, %v1191, %v1192
      %v1194 = vrot.slane %v1124, 1
      %v1195 = vrot.slane %v1126, 1
      %v1196 = vsel %vm313, %v1194, %v1195
      %v1197 = vrot.slane %v1127, 1
      %v1198 = vrot.slane %v1129, 1
      %v1199 = vsel %vm313, %v1197, %v1198
      %v1200 = vrot.slane %v1128, 1
      %v1201 = vrot.slane %v1130, 1
      %v1202 = vsel %vm313, %v1200, %v1201
      %v1203 = vrot.slane %v1131, 1
      %v1204 = vrot.slane %v1133, 1
      %v1205 = vsel %vm313, %v1203, %v1204
      %v1206 = vrot.slane %v1132, 1
      %v1207 = vrot.slane %v1134, 1
      %v1208 = vsel %vm313, %v1206, %v1207
      %v1209 = vrot.slane %v1135, 1
      %v1210 = vrot.slane %v1137, 1
      %v1211 = vsel %vm313, %v1209, %v1210
      %v1212 = vrot.slane %v1136, 1
      %v1213 = vrot.slane %v1138, 1
      %v1214 = vsel %vm313, %v1212, %v1213
      %v1215 = vrot.slane %v1139, 1
      %v1216 = vrot.slane %v1141, 1
      %v1217 = vsel %vm313, %v1215, %v1216
      %v1218 = vrot.slane %v1140, 1
      %v1219 = vrot.slane %v1142, 1
      %v1220 = vsel %vm313, %v1218, %v1219
      %v1221 = vrot.slane %v1143, 1
      %v1222 = vrot.slane %v1145, 1
      %v1223 = vsel %vm313, %v1221, %v1222
      %v1224 = vrot.slane %v1144, 1
      %v1225 = vrot.slane %v1146, 1
      %v1226 = vsel %vm313, %v1224, %v1225
      %v1243 = vadd.f32 %v1062, %v1181
      %v1244 = vadd.f32 %v1063, %v1184
      %v1245 = vadd.f32 %v1064, %v1187
      %v1246 = vadd.f32 %v1065, %v1190
      %v1247 = vadd.f32 %v1066, %v1193
      %v1248 = vadd.f32 %v1067, %v1196
      %v1249 = vadd.f32 %v1068, %v1199
      %v1250 = vadd.f32 %v1069, %v1202
      %v1251 = vadd.f32 %v1070, %v1205
      %v1252 = vadd.f32 %v1071, %v1208
      %v1253 = vadd.f32 %v1072, %v1211
      %v1254 = vadd.f32 %v1073, %v1214
      %v1255 = vadd.f32 %v1074, %v1217
      %v1256 = vadd.f32 %v1075, %v1220
      %v1257 = vadd.f32 %v1076, %v1223
      %v1258 = vadd.f32 %v1077, %v1226
      %v1259 = vld [vmem:[%s1008] sm:$0xee]
      %v1260 = vld [vmem:[%s1008 + $0x10] sm:$0xee]
      %v1261 = vld [vmem:[%s1008 + $0x20] sm:$0xee]
      %v1262 = vld [vmem:[%s1008 + $0x30] sm:$0xee]
      %v1263 = vld [vmem:[%s1008 + $0x40] sm:$0xee]
      %v1264 = vld [vmem:[%s1008 + $0x50] sm:$0xee]
      %v1265 = vld [vmem:[%s1008 + $0x60] sm:$0xee]
      %v1266 = vld [vmem:[%s1008 + $0x70] sm:$0xee]
      %v1267 = vunpack.c.l.bf16 %v1259
      %v1268 = vunpack.c.h.bf16 %v1259
      %v1269 = vunpack.c.l.bf16 %v1260
      %v1270 = vunpack.c.h.bf16 %v1260
      %v1271 = vunpack.c.l.bf16 %v1261
      %v1272 = vunpack.c.h.bf16 %v1261
      %v1273 = vunpack.c.l.bf16 %v1262
      %v1274 = vunpack.c.h.bf16 %v1262
      %v1275 = vunpack.c.l.bf16 %v1263
      %v1276 = vunpack.c.h.bf16 %v1263
      %v1277 = vunpack.c.l.bf16 %v1264
      %v1278 = vunpack.c.h.bf16 %v1264
      %v1279 = vunpack.c.l.bf16 %v1265
      %v1280 = vunpack.c.h.bf16 %v1265
      %v1281 = vunpack.c.l.bf16 %v1266
      %v1282 = vunpack.c.h.bf16 %v1266
      %s1283 = scalar_lea.vmem %s1, 16
      %v1284 = vld [vmem:[%s1283] sm:$0x3]
      %v1286 = vlaneseq
      %v1287 = vshrl.u32 %v1286, 7
      %v1288 = vsub.s32 0, %v1287
      %v1289 = vrot.slane %v1284, %v1288
      %v1290 = vlaneseq
      %v1291 = vshrl.u32 %v1290, 7
      %v1292 = vsub.s32 1, %v1291
      %v1293 = vrot.slane %v1284, %v1292
      %v1296 = vmul.f32 %v1267, %v1289
      %v1297 = vmul.f32 %v1268, %v1293
      %v1298 = vmul.f32 %v1086, %v1289
      %v1299 = vmul.f32 %v1087, %v1293
      %v1300 = vmul.f32 %v1269, %v1289
      %v1301 = vmul.f32 %v1270, %v1293
      %v1302 = vmul.f32 %v1088, %v1289
      %v1303 = vmul.f32 %v1089, %v1293
      %v1304 = vmul.f32 %v1271, %v1289
      %v1305 = vmul.f32 %v1272, %v1293
      %v1306 = vmul.f32 %v1090, %v1289
      %v1307 = vmul.f32 %v1091, %v1293
      %v1308 = vmul.f32 %v1273, %v1289
      %v1309 = vmul.f32 %v1274, %v1293
      %v1310 = vmul.f32 %v1092, %v1289
      %v1311 = vmul.f32 %v1093, %v1293
      %v1312 = vmul.f32 %v1275, %v1289
      %v1313 = vmul.f32 %v1276, %v1293
      %v1314 = vmul.f32 %v1094, %v1289
      %v1315 = vmul.f32 %v1095, %v1293
      %v1316 = vmul.f32 %v1277, %v1289
      %v1317 = vmul.f32 %v1278, %v1293
      %v1318 = vmul.f32 %v1096, %v1289
      %v1319 = vmul.f32 %v1097, %v1293
      %v1320 = vmul.f32 %v1279, %v1289
      %v1321 = vmul.f32 %v1280, %v1293
      %v1322 = vmul.f32 %v1098, %v1289
      %v1323 = vmul.f32 %v1099, %v1293
      %v1324 = vmul.f32 %v1281, %v1289
      %v1325 = vmul.f32 %v1282, %v1293
      %v1326 = vmul.f32 %v1100, %v1289
      %v1327 = vmul.f32 %v1101, %v1293
      %v1360 = vrot.slane %v1296, 2
      %v1361 = vrot.slane %v1298, 2
      %v1362 = vsel %vm495, %v1360, %v1361
      %v1363 = vrot.slane %v1297, 2
      %v1364 = vrot.slane %v1299, 2
      %v1365 = vsel %vm495, %v1363, %v1364
      %v1366 = vrot.slane %v1300, 2
      %v1367 = vrot.slane %v1302, 2
      %v1368 = vsel %vm495, %v1366, %v1367
      %v1369 = vrot.slane %v1301, 2
      %v1370 = vrot.slane %v1303, 2
      %v1371 = vsel %vm495, %v1369, %v1370
      %v1372 = vrot.slane %v1304, 2
      %v1373 = vrot.slane %v1306, 2
      %v1374 = vsel %vm495, %v1372, %v1373
      %v1375 = vrot.slane %v1305, 2
      %v1376 = vrot.slane %v1307, 2
      %v1377 = vsel %vm495, %v1375, %v1376
      %v1378 = vrot.slane %v1308, 2
      %v1379 = vrot.slane %v1310, 2
      %v1380 = vsel %vm495, %v1378, %v1379
      %v1381 = vrot.slane %v1309, 2
      %v1382 = vrot.slane %v1311, 2
      %v1383 = vsel %vm495, %v1381, %v1382
      %v1384 = vrot.slane %v1312, 2
      %v1385 = vrot.slane %v1314, 2
      %v1386 = vsel %vm495, %v1384, %v1385
      %v1387 = vrot.slane %v1313, 2
      %v1388 = vrot.slane %v1315, 2
      %v1389 = vsel %vm495, %v1387, %v1388
      %v1390 = vrot.slane %v1316, 2
      %v1391 = vrot.slane %v1318, 2
      %v1392 = vsel %vm495, %v1390, %v1391
      %v1393 = vrot.slane %v1317, 2
      %v1394 = vrot.slane %v1319, 2
      %v1395 = vsel %vm495, %v1393, %v1394
      %v1396 = vrot.slane %v1320, 2
      %v1397 = vrot.slane %v1322, 2
      %v1398 = vsel %vm495, %v1396, %v1397
      %v1399 = vrot.slane %v1321, 2
      %v1400 = vrot.slane %v1323, 2
      %v1401 = vsel %vm495, %v1399, %v1400
      %v1402 = vrot.slane %v1324, 2
      %v1403 = vrot.slane %v1326, 2
      %v1404 = vsel %vm495, %v1402, %v1403
      %v1405 = vrot.slane %v1325, 2
      %v1406 = vrot.slane %v1327, 2
      %v1407 = vsel %vm495, %v1405, %v1406
      %v1424 = vadd.f32 %v1243, %v1362
      %v1425 = vadd.f32 %v1244, %v1365
      %v1426 = vadd.f32 %v1245, %v1368
      %v1427 = vadd.f32 %v1246, %v1371
      %v1428 = vadd.f32 %v1247, %v1374
      %v1429 = vadd.f32 %v1248, %v1377
      %v1430 = vadd.f32 %v1249, %v1380
      %v1431 = vadd.f32 %v1250, %v1383
      %v1432 = vadd.f32 %v1251, %v1386
      %v1433 = vadd.f32 %v1252, %v1389
      %v1434 = vadd.f32 %v1253, %v1392
      %v1435 = vadd.f32 %v1254, %v1395
      %v1436 = vadd.f32 %v1255, %v1398
      %v1437 = vadd.f32 %v1256, %v1401
      %v1438 = vadd.f32 %v1257, %v1404
      %v1439 = vadd.f32 %v1258, %v1407
      %v1440 = vmax.f32 %v1424, 0.0
      %v1441 = vmax.f32 %v1425, 0.0
      %v1442 = vmax.f32 %v1426, 0.0
      %v1443 = vmax.f32 %v1427, 0.0
      %v1444 = vmax.f32 %v1428, 0.0
      %v1445 = vmax.f32 %v1429, 0.0
      %v1446 = vmax.f32 %v1430, 0.0
      %v1447 = vmax.f32 %v1431, 0.0
      %v1448 = vmax.f32 %v1432, 0.0
      %v1449 = vmax.f32 %v1433, 0.0
      %v1450 = vmax.f32 %v1434, 0.0
      %v1451 = vmax.f32 %v1435, 0.0
      %v1452 = vmax.f32 %v1436, 0.0
      %v1453 = vmax.f32 %v1437, 0.0
      %v1454 = vmax.f32 %v1438, 0.0
      %v1455 = vmax.f32 %v1439, 0.0
      %v1456 = vmin.f32 %v1440, 6.0
      %v1457 = vmin.f32 %v1441, 6.0
      %v1458 = vmin.f32 %v1442, 6.0
      %v1459 = vmin.f32 %v1443, 6.0
      %v1460 = vmin.f32 %v1444, 6.0
      %v1461 = vmin.f32 %v1445, 6.0
      %v1462 = vmin.f32 %v1446, 6.0
      %v1463 = vmin.f32 %v1447, 6.0
      %v1464 = vmin.f32 %v1448, 6.0
      %v1465 = vmin.f32 %v1449, 6.0
      %v1466 = vmin.f32 %v1450, 6.0
      %v1467 = vmin.f32 %v1451, 6.0
      %v1468 = vmin.f32 %v1452, 6.0
      %v1469 = vmin.f32 %v1453, 6.0
      %v1470 = vmin.f32 %v1454, 6.0
      %v1471 = vmin.f32 %v1455, 6.0
      %v1472 = vpack.c.bf16 %v1456, %v1456
      %v1473 = vpack.c.bf16 %v1457, %v1457
      %v1474 = vpack.c.bf16 %v1458, %v1458
      %v1475 = vpack.c.bf16 %v1459, %v1459
      %v1476 = vpack.c.bf16 %v1460, %v1460
      %v1477 = vpack.c.bf16 %v1461, %v1461
      %v1478 = vpack.c.bf16 %v1462, %v1462
      %v1479 = vpack.c.bf16 %v1463, %v1463
      %v1480 = vpack.c.bf16 %v1464, %v1464
      %v1481 = vpack.c.bf16 %v1465, %v1465
      %v1482 = vpack.c.bf16 %v1466, %v1466
      %v1483 = vpack.c.bf16 %v1467, %v1467
      %v1484 = vpack.c.bf16 %v1468, %v1468
      %v1485 = vpack.c.bf16 %v1469, %v1469
      %v1486 = vpack.c.bf16 %v1470, %v1470
      %v1487 = vpack.c.bf16 %v1471, %v1471
      %v1504 = vunpack.c.l.b16 %v1472
      %v1505 = vunpack.c.l.b16 %v1473
      %v1506 = vunpack.c.l.b16 %v1474
      %v1507 = vunpack.c.l.b16 %v1475
      %v1508 = vunpack.c.l.b16 %v1476
      %v1509 = vunpack.c.l.b16 %v1477
      %v1510 = vunpack.c.l.b16 %v1478
      %v1511 = vunpack.c.l.b16 %v1479
      %v1512 = vunpack.c.l.b16 %v1480
      %v1513 = vunpack.c.l.b16 %v1481
      %v1514 = vunpack.c.l.b16 %v1482
      %v1515 = vunpack.c.l.b16 %v1483
      %v1516 = vunpack.c.l.b16 %v1484
      %v1517 = vunpack.c.l.b16 %v1485
      %v1518 = vunpack.c.l.b16 %v1486
      %v1519 = vunpack.c.l.b16 %v1487
      %v1520 = vpack.c.b16 %v1505, %v1504
      %v1521 = vpack.c.b16 %v1507, %v1506
      %v1522 = vpack.c.b16 %v1509, %v1508
      %v1523 = vpack.c.b16 %v1511, %v1510
      %v1524 = vpack.c.b16 %v1513, %v1512
      %v1525 = vpack.c.b16 %v1515, %v1514
      %v1526 = vpack.c.b16 %v1517, %v1516
      %v1527 = vpack.c.b16 %v1519, %v1518
      %vm1536 = vcmask 1043456
      %vm1537 = vcmask 130052
      %vm1538 = vmor %vm1537, %vm1536
      %1539 = vst.msk [vmem:[%s143] sm:$0xff] %vm1538, %v1520
      %1540 = vst.msk [vmem:[%s143 + $0x8] sm:$0xff] %vm1538, %v1521
      %1541 = vst.msk [vmem:[%s143 + $0x10] sm:$0xff] %vm1538, %v1522
      %1542 = vst.msk [vmem:[%s143 + $0x18] sm:$0xff] %vm1538, %v1523
      %1543 = vst.msk [vmem:[%s143 + $0x20] sm:$0xff] %vm1538, %v1524
      %1544 = vst.msk [vmem:[%s143 + $0x28] sm:$0xff] %vm1538, %v1525
      %1545 = vst.msk [vmem:[%s143 + $0x30] sm:$0xff] %vm1538, %v1526
      %1546 = vst.msk [vmem:[%s143 + $0x38] sm:$0xff] %vm1538, %v1527
      %p1547 = scmp.lt.s32.totalorder %s13, 1
      %s1548 = scalar_select %p1547, %s13, 1
      %s1549 = smul.addr %s1548, 16
      %s1550 = smul.addr %s1549, 4
      %s1551 = scalar_lea.vmem %s2, %s1550
      // Predicated region
      $region29: #{_lambda_.10} parent=27 // pred_check
        %p1552 = pneg %p78
      $region30: #{_lambda_.10} parent=27 // pred_check_branch
        %1554 = sbr.rel (%p1552) target = $region32
      $region31: #{_lambda_.10} parent=27 // pred_region
        _
      $region32: #{_lambda_.10} parent=27 // pred_fallthru
        _
    $region28: #{_lambda_.10} parent=5 // pred_fallthru
      _
    %p1555 = scmp.le.s32.totalorder 2, %s8
    // Predicated region
    $region33: #{_lambda_.10} parent=5 // pred_check
      %p1556 = pneg %p1555
    $region34: #{_lambda_.10} parent=5 // pred_check_branch
      %1558 = sbr.rel (%p1556) target = $region36
    $region35: #{_lambda_.10} parent=5 // pred_region
      %s1559 = ssub.s32 %s8, 2
      // Predicated region
      $region37: #{_lambda_.10} parent=35 // pred_check
        %p1560 = pneg %p84
      $region38: #{_lambda_.10} parent=35 // pred_check_branch
        %1562 = sbr.rel (%p1560) target = $region40
      $region39: #{_lambda_.10} parent=35 // pred_region
        %p1563 = scmp.lt.s32.totalorder %s14, 1
        %s1564 = scalar_select %p1563, %s14, 1
        %s1565 = smul.addr %s1564, 16
        %s1566 = smul.addr %s1565, 4
        %s1567 = scalar_lea.vmem %s2, %s1566
      $region40: #{_lambda_.10} parent=35 // pred_fallthru
        _
    $region36: #{_lambda_.10} parent=5 // pred_fallthru
      _
  $region6: #{_lambda_.10} parent=0 // loop_footer
    %s12 = sadd.s32 1, %s8
  $region7: #{_lambda_.10} parent=0 // loop_footer_branch
    %7 = sbr.rel target = $region3
  $region8: #{_lambda_.10} parent=0 // loop_exit
    _

</llo_original>
